<compile_context>
chip_gen: v5e
topology: v5e:2x2
jax: 0.10.0
libtpu: 0.0.40
codegen_flags: <defaults>
</compile_context>

<pallas_src>
import jax
import jax.numpy as jnp
from jax.experimental import pallas as pl
from jax.experimental.pallas import tpu as pltpu

# ---- synthetic hyper-parameters (small, consistent with the module) ----
N_CLASSES = 8
LATENT_DIM = 32
CHANNELS = 1
IMG_SIZE = 16
IMG_PROD = CHANNELS * IMG_SIZE * IMG_SIZE          # 256
IN_DIM = LATENT_DIM + N_CLASSES                    # 40
BN_EPS = 0.8                                       # positional 0.8 in BatchNorm1d is eps
LRELU_SLOPE = 0.2


def _leaky_relu(x):
    return jnp.where(x > 0, x, LRELU_SLOPE * x)


def _bn_lrelu(h, gamma, beta):
    # Training-mode BatchNorm1d folded into one scale/shift:
    #   single reduction pass for mean and E[x^2]; var = E[x^2] - mean^2 (eps=0.8 dominates,
    #   so the cancellation is benign); then y = h*scale + shift, LeakyReLU on top.
    mean = jnp.mean(h, axis=0, keepdims=True)
    mean_sq = jnp.mean(h * h, axis=0, keepdims=True)
    var = mean_sq - mean * mean
    scale = jax.lax.rsqrt(var + BN_EPS) * gamma     # EUP rsqrt, broadcast FMA on VPU
    shift = beta - mean * scale
    return _leaky_relu(h * scale + shift)


def generator_kernel(labels_ref, noise_ref,
                     w1e_ref, w1n_ref, b1_ref,
                     w2_ref, b2_ref, g2_ref, be2_ref,
                     w3_ref, b3_ref, g3_ref, be3_ref,
                     w4_ref, b4_ref, g4_ref, be4_ref,
                     w5_ref, b5_ref,
                     out_ref):
    bf16 = jnp.bfloat16

    labels = labels_ref[...]                               # (B, 1) int32
    b = labels.shape[0]
    one_hot = (labels == jax.lax.broadcasted_iota(jnp.int32, (b, N_CLASSES), 1)).astype(bf16)
    noise = noise_ref[...].astype(bf16)                    # (B, LATENT_DIM)

    # block(in, 128, normalize=False): embedding folded into the first Linear.
    h = (jnp.dot(one_hot, w1e_ref[...], preferred_element_type=jnp.float32)
         + jnp.dot(noise, w1n_ref[...], preferred_element_type=jnp.float32)
         + b1_ref[...])
    h = _leaky_relu(h)

    # block(128, 256): Linear + BN + LeakyReLU
    h = jnp.dot(h.astype(bf16), w2_ref[...], preferred_element_type=jnp.float32) + b2_ref[...]
    h = _bn_lrelu(h, g2_ref[...], be2_ref[...])

    # block(256, 512)
    h = jnp.dot(h.astype(bf16), w3_ref[...], preferred_element_type=jnp.float32) + b3_ref[...]
    h = _bn_lrelu(h, g3_ref[...], be3_ref[...])

    # block(512, 1024)
    h = jnp.dot(h.astype(bf16), w4_ref[...], preferred_element_type=jnp.float32) + b4_ref[...]
    h = _bn_lrelu(h, g4_ref[...], be4_ref[...])

    # Linear(1024, C*H*W) + Tanh
    h = jnp.dot(h.astype(bf16), w5_ref[...], preferred_element_type=jnp.float32) + b5_ref[...]
    out_ref[...] = jnp.tanh(h)


def init_params(key):
    """Deterministic f32 parameter init (shapes match the PyTorch module)."""
    ks = jax.random.split(key, 6)

    def lin(k, fan_in, fan_out):
        bound = 1.0 / jnp.sqrt(fan_in)
        kw, kb = jax.random.split(k)
        w = jax.random.uniform(kw, (fan_in, fan_out), jnp.float32, -bound, bound)
        b = jax.random.uniform(kb, (1, fan_out), jnp.float32, -bound, bound)
        return w, b

    p = {}
    p["emb"] = jax.random.normal(ks[0], (N_CLASSES, N_CLASSES), jnp.float32)
    p["w1"], p["b1"] = lin(ks[1], IN_DIM, 128)
    p["w2"], p["b2"] = lin(ks[2], 128, 256)
    p["w3"], p["b3"] = lin(ks[3], 256, 512)
    p["w4"], p["b4"] = lin(ks[4], 512, 1024)
    p["w5"], p["b5"] = lin(ks[5], 1024, IMG_PROD)
    for dim, name in ((256, "2"), (512, "3"), (1024, "4")):
        p["g" + name] = jnp.ones((1, dim), jnp.float32)
        p["be" + name] = jnp.zeros((1, dim), jnp.float32)
    return p


def prepare_kernel_params(params):
    """One-time conversion to kernel-ready params: embedding folded into the first Linear,
    bf16 weights, f32 biases / BN params."""
    bf16 = jnp.bfloat16
    kp = {}
    # [emb(labels), noise] @ W1 == one_hot(labels) @ (emb @ W1[:n_classes]) + noise @ W1[n_classes:]
    kp["w1e"] = (params["emb"] @ params["w1"][:N_CLASSES]).astype(bf16)   # (n_classes, 128)
    kp["w1n"] = params["w1"][N_CLASSES:].astype(bf16)                      # (latent_dim, 128)
    for name in ("w2", "w3", "w4", "w5"):
        kp[name] = params[name].astype(bf16)
    for name in ("b1", "b2", "b3", "b4", "b5",
                 "g2", "be2", "g3", "be3", "g4", "be4"):
        kp[name] = params[name]
    return kp


@jax.jit
def generator_forward(kparams, noise, labels):
    """noise: (G, B, LATENT_DIM) f32, labels: (G, B) int.

    Each of the G groups is one independent Generator.forward() batch: BatchNorm statistics
    are computed per group inside a single grid step, matching PyTorch training-mode BN.
    """
    G, B, _ = noise.shape
    labels3 = labels.reshape(G, B, 1).astype(jnp.int32)

    weight_args = (
        kparams["w1e"], kparams["w1n"], kparams["b1"],
        kparams["w2"], kparams["b2"], kparams["g2"], kparams["be2"],
        kparams["w3"], kparams["b3"], kparams["g3"], kparams["be3"],
        kparams["w4"], kparams["b4"], kparams["g4"], kparams["be4"],
        kparams["w5"], kparams["b5"],
    )

    def _const_spec(arr):
        # Full-array block, constant index map: loaded once per core, VMEM-resident across
        # all grid steps (no per-step re-DMA of the weights).
        return pl.BlockSpec(arr.shape, lambda i: (0,) * arr.ndim)

    in_specs = (
        [pl.BlockSpec((None, B, 1), lambda i: (i, 0, 0)),            # labels
         pl.BlockSpec((None, B, LATENT_DIM), lambda i: (i, 0, 0))]   # noise
        + [_const_spec(a) for a in weight_args]
    )
    out_spec = pl.BlockSpec((None, B, IMG_PROD), lambda i: (i, 0, 0))

    # Advisory cost estimate so XLA can overlap this short custom call with neighbors.
    flops_per_row = 2 * (N_CLASSES * 128 + LATENT_DIM * 128
                         + 128 * 256 + 256 * 512 + 512 * 1024 + 1024 * IMG_PROD)
    param_bytes = sum(int(a.size) * int(a.dtype.itemsize) for a in weight_args)
    cost = pl.CostEstimate(
        flops=G * B * flops_per_row,
        transcendentals=G * B * IMG_PROD,
        bytes_accessed=param_bytes + int(noise.size) * 4 + int(labels3.size) * 4
                       + G * B * IMG_PROD * 4,
    )

    flat = pl.pallas_call(
        generator_kernel,
        grid=(G,),
        out_shape=jax.ShapeDtypeStruct((G, B, IMG_PROD), jnp.float32),
        in_specs=in_specs,
        out_specs=out_spec,
        compiler_params=pltpu.CompilerParams(
            dimension_semantics=("parallel",),   # v7x: split groups across the 2 TensorCores
            vmem_limit_bytes=16 << 20,
        ),
        cost_estimate=cost,
    )(labels3, noise, *weight_args)

    # Reshape to NCHW per group, like torch `img.view(img.size(0), *img_shape)`.
    return flat.reshape(G, B, CHANNELS, IMG_SIZE, IMG_SIZE)


def generator_reference(params, noise, labels):
    """Pure-JAX f32 reference of the PyTorch forward (training-mode BN) for ONE batch."""
    emb = jnp.take(params["emb"], labels.astype(jnp.int32), axis=0)
    h = jnp.concatenate([emb, noise], axis=-1)

    def bn(x, g, b):
        mean = jnp.mean(x, axis=0, keepdims=True)
        var = jnp.mean((x - mean) ** 2, axis=0, keepdims=True)
        return (x - mean) * jax.lax.rsqrt(var + BN_EPS) * g + b

    h = _leaky_relu(h @ params["w1"] + params["b1"])
    h = _leaky_relu(bn(h @ params["w2"] + params["b2"], params["g2"], params["be2"]))
    h = _leaky_relu(bn(h @ params["w3"] + params["b3"], params["g3"], params["be3"]))
    h = _leaky_relu(bn(h @ params["w4"] + params["b4"], params["g4"], params["be4"]))
    h = jnp.tanh(h @ params["w5"] + params["b5"])
    return h.reshape(h.shape[0], CHANNELS, IMG_SIZE, IMG_SIZE)


if __name__ == "__main__":
    key = jax.random.PRNGKey(0)
    k_param, k_noise, k_label = jax.random.split(key, 3)

    G, B = 4, 16   # 4 independent generator batches of 16 rows each (one grid step per batch)
    params = init_params(k_param)
    kparams = prepare_kernel_params(params)
    noise = jax.random.normal(k_noise, (G, B, LATENT_DIM), jnp.float32)
    labels = jax.random.randint(k_label, (G, B), 0, N_CLASSES, jnp.int32)

    img = generator_forward(kparams, noise, labels)
    jax.block_until_ready(img)

    assert img.shape == (G, B, CHANNELS, IMG_SIZE, IMG_SIZE)
    assert img.dtype == jnp.float32
    assert bool(jnp.all(jnp.isfinite(img)))

    # bf16 weights drift slightly vs the f32 reference; tanh output is bounded,
    # so a loose absolute tolerance is the right check.
    ref = jax.vmap(generator_reference, in_axes=(None, 0, 0))(params, noise, labels)
    max_err = float(jnp.max(jnp.abs(img - ref)))
    assert max_err < 0.15, f"bf16 drift vs f32 reference too large: {max_err}"

    print("KERNEL_OK")
</pallas_src>

<mosaic_0001>
module attributes {stable_mosaic.version = 11 : i64} {
  func.func @generator_kernel(%arg0: i32, %arg1: memref<1x16x1xi32, #tpu.memory_space<vmem>>, %arg2: memref<1x16x32xf32, #tpu.memory_space<vmem>>, %arg3: memref<8x128xbf16, #tpu.memory_space<vmem>>, %arg4: memref<32x128xbf16, #tpu.memory_space<vmem>>, %arg5: memref<1x128xf32, #tpu.memory_space<vmem>>, %arg6: memref<128x256xbf16, #tpu.memory_space<vmem>>, %arg7: memref<1x256xf32, #tpu.memory_space<vmem>>, %arg8: memref<1x256xf32, #tpu.memory_space<vmem>>, %arg9: memref<1x256xf32, #tpu.memory_space<vmem>>, %arg10: memref<256x512xbf16, #tpu.memory_space<vmem>>, %arg11: memref<1x512xf32, #tpu.memory_space<vmem>>, %arg12: memref<1x512xf32, #tpu.memory_space<vmem>>, %arg13: memref<1x512xf32, #tpu.memory_space<vmem>>, %arg14: memref<512x1024xbf16, #tpu.memory_space<vmem>>, %arg15: memref<1x1024xf32, #tpu.memory_space<vmem>>, %arg16: memref<1x1024xf32, #tpu.memory_space<vmem>>, %arg17: memref<1x1024xf32, #tpu.memory_space<vmem>>, %arg18: memref<1024x256xbf16, #tpu.memory_space<vmem>>, %arg19: memref<1x256xf32, #tpu.memory_space<vmem>>, %arg20: memref<1x16x256xf32, #tpu.memory_space<vmem>>) attributes {dimension_semantics = [#tpu.dimension_semantics<parallel>], iteration_bounds = array<i64: 4>, scalar_prefetch = 0 : i64, scratch_operands = 0 : i64, tpu.core_type = #tpu.core_type<tc>, window_params = [{transform_indices = @transform_0, window_bounds = array<i64: 1, 16, 1>}, {transform_indices = @transform_1, window_bounds = array<i64: 1, 16, 32>}, {pipeline_mode = #tpu.pipeline_mode<synchronous>, transform_indices = @transform_2, window_bounds = array<i64: 8, 128>}, {pipeline_mode = #tpu.pipeline_mode<synchronous>, transform_indices = @transform_3, window_bounds = array<i64: 32, 128>}, {pipeline_mode = #tpu.pipeline_mode<synchronous>, transform_indices = @transform_4, window_bounds = array<i64: 1, 128>}, {pipeline_mode = #tpu.pipeline_mode<synchronous>, transform_indices = @transform_5, window_bounds = array<i64: 128, 256>}, {pipeline_mode = #tpu.pipeline_mode<synchronous>, transform_indices = @transform_6, window_bounds = array<i64: 1, 256>}, {pipeline_mode = #tpu.pipeline_mode<synchronous>, transform_indices = @transform_7, window_bounds = array<i64: 1, 256>}, {pipeline_mode = #tpu.pipeline_mode<synchronous>, transform_indices = @transform_8, window_bounds = array<i64: 1, 256>}, {pipeline_mode = #tpu.pipeline_mode<synchronous>, transform_indices = @transform_9, window_bounds = array<i64: 256, 512>}, {pipeline_mode = #tpu.pipeline_mode<synchronous>, transform_indices = @transform_10, window_bounds = array<i64: 1, 512>}, {pipeline_mode = #tpu.pipeline_mode<synchronous>, transform_indices = @transform_11, window_bounds = array<i64: 1, 512>}, {pipeline_mode = #tpu.pipeline_mode<synchronous>, transform_indices = @transform_12, window_bounds = array<i64: 1, 512>}, {pipeline_mode = #tpu.pipeline_mode<synchronous>, transform_indices = @transform_13, window_bounds = array<i64: 512, 1024>}, {pipeline_mode = #tpu.pipeline_mode<synchronous>, transform_indices = @transform_14, window_bounds = array<i64: 1, 1024>}, {pipeline_mode = #tpu.pipeline_mode<synchronous>, transform_indices = @transform_15, window_bounds = array<i64: 1, 1024>}, {pipeline_mode = #tpu.pipeline_mode<synchronous>, transform_indices = @transform_16, window_bounds = array<i64: 1, 1024>}, {pipeline_mode = #tpu.pipeline_mode<synchronous>, transform_indices = @transform_17, window_bounds = array<i64: 1024, 256>}, {pipeline_mode = #tpu.pipeline_mode<synchronous>, transform_indices = @transform_18, window_bounds = array<i64: 1, 256>}, {transform_indices = @transform_19, window_bounds = array<i64: 1, 16, 256>}]} {
    %c0 = arith.constant 0 : index
    %c0_0 = arith.constant 0 : index
    %c0_1 = arith.constant 0 : index
    %0 = vector.load %arg1[%c0, %c0_0, %c0_1] : memref<1x16x1xi32, #tpu.memory_space<vmem>>, vector<1x16x1xi32>
    %1 = vector.shape_cast %0 : vector<1x16x1xi32> to vector<16x1xi32>
    %2 = tpu.iota {dimensions = array<i32: 1>} : vector<16x8xi32>
    %3 = vector.broadcast %1 : vector<16x1xi32> to vector<16x8xi32>
    %4 = arith.cmpi eq, %3, %2 : vector<16x8xi32>
    %5 = arith.extui %4 : vector<16x8xi1> to vector<16x8xi32>
    %6 = arith.sitofp %5 : vector<16x8xi32> to vector<16x8xf32>
    %7 = arith.truncf %6 : vector<16x8xf32> to vector<16x8xbf16>
    %c0_2 = arith.constant 0 : index
    %c0_3 = arith.constant 0 : index
    %c0_4 = arith.constant 0 : index
    %8 = vector.load %arg2[%c0_2, %c0_3, %c0_4] : memref<1x16x32xf32, #tpu.memory_space<vmem>>, vector<1x16x32xf32>
    %9 = vector.shape_cast %8 : vector<1x16x32xf32> to vector<16x32xf32>
    %10 = arith.truncf %9 : vector<16x32xf32> to vector<16x32xbf16>
    %c0_5 = arith.constant 0 : index
    %c0_6 = arith.constant 0 : index
    %11 = vector.load %arg3[%c0_5, %c0_6] : memref<8x128xbf16, #tpu.memory_space<vmem>>, vector<8x128xbf16>
    %cst = arith.constant dense<0.000000e+00> : vector<16x128xf32>
    %12 = tpu.matmul %7, %11, %cst {dimension_numbers = #tpu.dot_dimension_numbers<[1], [0], [0], [1], [0, 0, 1, 1], [], []>} : vector<16x8xbf16>, vector<8x128xbf16>, vector<16x128xf32> -> vector<16x128xf32>
    %c0_7 = arith.constant 0 : index
    %c0_8 = arith.constant 0 : index
    %13 = vector.load %arg4[%c0_7, %c0_8] : memref<32x128xbf16, #tpu.memory_space<vmem>>, vector<32x128xbf16>
    %cst_9 = arith.constant dense<0.000000e+00> : vector<16x128xf32>
    %14 = tpu.matmul %10, %13, %cst_9 {dimension_numbers = #tpu.dot_dimension_numbers<[1], [0], [0], [1], [0, 0, 1, 1], [], []>} : vector<16x32xbf16>, vector<32x128xbf16>, vector<16x128xf32> -> vector<16x128xf32>
    %15 = arith.addf %12, %14 : vector<16x128xf32>
    %c0_10 = arith.constant 0 : index
    %c0_11 = arith.constant 0 : index
    %16 = vector.load %arg5[%c0_10, %c0_11] : memref<1x128xf32, #tpu.memory_space<vmem>>, vector<1x128xf32>
    %17 = vector.broadcast %16 : vector<1x128xf32> to vector<16x128xf32>
    %18 = arith.addf %15, %17 : vector<16x128xf32>
    %cst_12 = arith.constant 0.000000e+00 : f32
    %19 = vector.broadcast %cst_12 : f32 to vector<16x128xf32>
    %20 = arith.cmpf ogt, %18, %19 : vector<16x128xf32>
    %cst_13 = arith.constant 2.000000e-01 : f32
    %21 = vector.broadcast %cst_13 : f32 to vector<16x128xf32>
    %22 = arith.mulf %21, %18 : vector<16x128xf32>
    %23 = arith.select %20, %18, %22 : vector<16x128xi1>, vector<16x128xf32>
    %24 = arith.truncf %23 : vector<16x128xf32> to vector<16x128xbf16>
    %c0_14 = arith.constant 0 : index
    %c0_15 = arith.constant 0 : index
    %25 = vector.load %arg6[%c0_14, %c0_15] : memref<128x256xbf16, #tpu.memory_space<vmem>>, vector<128x256xbf16>
    %cst_16 = arith.constant dense<0.000000e+00> : vector<16x256xf32>
    %26 = tpu.matmul %24, %25, %cst_16 {dimension_numbers = #tpu.dot_dimension_numbers<[1], [0], [0], [1], [0, 0, 1, 1], [], []>} : vector<16x128xbf16>, vector<128x256xbf16>, vector<16x256xf32> -> vector<16x256xf32>
    %c0_17 = arith.constant 0 : index
    %c0_18 = arith.constant 0 : index
    %27 = vector.load %arg7[%c0_17, %c0_18] : memref<1x256xf32, #tpu.memory_space<vmem>>, vector<1x256xf32>
    %28 = vector.broadcast %27 : vector<1x256xf32> to vector<16x256xf32>
    %29 = arith.addf %26, %28 : vector<16x256xf32>
    %c0_19 = arith.constant 0 : index
    %c0_20 = arith.constant 0 : index
    %30 = vector.load %arg8[%c0_19, %c0_20] : memref<1x256xf32, #tpu.memory_space<vmem>>, vector<1x256xf32>
    %c0_21 = arith.constant 0 : index
    %c0_22 = arith.constant 0 : index
    %31 = vector.load %arg9[%c0_21, %c0_22] : memref<1x256xf32, #tpu.memory_space<vmem>>, vector<1x256xf32>
    %cst_23 = arith.constant dense<0.000000e+00> : vector<256xf32>
    %32 = vector.multi_reduction <add>, %29, %cst_23 [0] : vector<16x256xf32> to vector<256xf32>
    %33 = vector.shape_cast %32 : vector<256xf32> to vector<1x256xf32>
    %cst_24 = arith.constant 1.600000e+01 : f32
    %34 = vector.broadcast %cst_24 : f32 to vector<1x256xf32>
    %35 = arith.divf %33, %34 : vector<1x256xf32>
    %36 = arith.mulf %29, %29 : vector<16x256xf32>
    %cst_25 = arith.constant dense<0.000000e+00> : vector<256xf32>
    %37 = vector.multi_reduction <add>, %36, %cst_25 [0] : vector<16x256xf32> to vector<256xf32>
    %38 = vector.shape_cast %37 : vector<256xf32> to vector<1x256xf32>
    %cst_26 = arith.constant 1.600000e+01 : f32
    %39 = vector.broadcast %cst_26 : f32 to vector<1x256xf32>
    %40 = arith.divf %38, %39 : vector<1x256xf32>
    %41 = arith.mulf %35, %35 : vector<1x256xf32>
    %42 = arith.subf %40, %41 : vector<1x256xf32>
    %cst_27 = arith.constant 8.000000e-01 : f32
    %43 = vector.broadcast %cst_27 : f32 to vector<1x256xf32>
    %44 = arith.addf %42, %43 : vector<1x256xf32>
    %45 = math.rsqrt %44 : vector<1x256xf32>
    %46 = arith.mulf %45, %30 : vector<1x256xf32>
    %47 = arith.mulf %35, %46 : vector<1x256xf32>
    %48 = arith.subf %31, %47 : vector<1x256xf32>
    %49 = vector.broadcast %46 : vector<1x256xf32> to vector<16x256xf32>
    %50 = arith.mulf %29, %49 : vector<16x256xf32>
    %51 = vector.broadcast %48 : vector<1x256xf32> to vector<16x256xf32>
    %52 = arith.addf %50, %51 : vector<16x256xf32>
    %cst_28 = arith.constant 0.000000e+00 : f32
    %53 = vector.broadcast %cst_28 : f32 to vector<16x256xf32>
    %54 = arith.cmpf ogt, %52, %53 : vector<16x256xf32>
    %cst_29 = arith.constant 2.000000e-01 : f32
    %55 = vector.broadcast %cst_29 : f32 to vector<16x256xf32>
    %56 = arith.mulf %55, %52 : vector<16x256xf32>
    %57 = arith.select %54, %52, %56 : vector<16x256xi1>, vector<16x256xf32>
    %58 = arith.truncf %57 : vector<16x256xf32> to vector<16x256xbf16>
    %c0_30 = arith.constant 0 : index
    %c0_31 = arith.constant 0 : index
    %59 = vector.load %arg10[%c0_30, %c0_31] : memref<256x512xbf16, #tpu.memory_space<vmem>>, vector<256x512xbf16>
    %cst_32 = arith.constant dense<0.000000e+00> : vector<16x512xf32>
    %60 = tpu.matmul %58, %59, %cst_32 {dimension_numbers = #tpu.dot_dimension_numbers<[1], [0], [0], [1], [0, 0, 1, 1], [], []>} : vector<16x256xbf16>, vector<256x512xbf16>, vector<16x512xf32> -> vector<16x512xf32>
    %c0_33 = arith.constant 0 : index
    %c0_34 = arith.constant 0 : index
    %61 = vector.load %arg11[%c0_33, %c0_34] : memref<1x512xf32, #tpu.memory_space<vmem>>, vector<1x512xf32>
    %62 = vector.broadcast %61 : vector<1x512xf32> to vector<16x512xf32>
    %63 = arith.addf %60, %62 : vector<16x512xf32>
    %c0_35 = arith.constant 0 : index
    %c0_36 = arith.constant 0 : index
    %64 = vector.load %arg12[%c0_35, %c0_36] : memref<1x512xf32, #tpu.memory_space<vmem>>, vector<1x512xf32>
    %c0_37 = arith.constant 0 : index
    %c0_38 = arith.constant 0 : index
    %65 = vector.load %arg13[%c0_37, %c0_38] : memref<1x512xf32, #tpu.memory_space<vmem>>, vector<1x512xf32>
    %cst_39 = arith.constant dense<0.000000e+00> : vector<512xf32>
    %66 = vector.multi_reduction <add>, %63, %cst_39 [0] : vector<16x512xf32> to vector<512xf32>
    %67 = vector.shape_cast %66 : vector<512xf32> to vector<1x512xf32>
    %cst_40 = arith.constant 1.600000e+01 : f32
    %68 = vector.broadcast %cst_40 : f32 to vector<1x512xf32>
    %69 = arith.divf %67, %68 : vector<1x512xf32>
    %70 = arith.mulf %63, %63 : vector<16x512xf32>
    %cst_41 = arith.constant dense<0.000000e+00> : vector<512xf32>
    %71 = vector.multi_reduction <add>, %70, %cst_41 [0] : vector<16x512xf32> to vector<512xf32>
    %72 = vector.shape_cast %71 : vector<512xf32> to vector<1x512xf32>
    %cst_42 = arith.constant 1.600000e+01 : f32
    %73 = vector.broadcast %cst_42 : f32 to vector<1x512xf32>
    %74 = arith.divf %72, %73 : vector<1x512xf32>
    %75 = arith.mulf %69, %69 : vector<1x512xf32>
    %76 = arith.subf %74, %75 : vector<1x512xf32>
    %cst_43 = arith.constant 8.000000e-01 : f32
    %77 = vector.broadcast %cst_43 : f32 to vector<1x512xf32>
    %78 = arith.addf %76, %77 : vector<1x512xf32>
    %79 = math.rsqrt %78 : vector<1x512xf32>
    %80 = arith.mulf %79, %64 : vector<1x512xf32>
    %81 = arith.mulf %69, %80 : vector<1x512xf32>
    %82 = arith.subf %65, %81 : vector<1x512xf32>
    %83 = vector.broadcast %80 : vector<1x512xf32> to vector<16x512xf32>
    %84 = arith.mulf %63, %83 : vector<16x512xf32>
    %85 = vector.broadcast %82 : vector<1x512xf32> to vector<16x512xf32>
    %86 = arith.addf %84, %85 : vector<16x512xf32>
    %cst_44 = arith.constant 0.000000e+00 : f32
    %87 = vector.broadcast %cst_44 : f32 to vector<16x512xf32>
    %88 = arith.cmpf ogt, %86, %87 : vector<16x512xf32>
    %cst_45 = arith.constant 2.000000e-01 : f32
    %89 = vector.broadcast %cst_45 : f32 to vector<16x512xf32>
    %90 = arith.mulf %89, %86 : vector<16x512xf32>
    %91 = arith.select %88, %86, %90 : vector<16x512xi1>, vector<16x512xf32>
    %92 = arith.truncf %91 : vector<16x512xf32> to vector<16x512xbf16>
    %c0_46 = arith.constant 0 : index
    %c0_47 = arith.constant 0 : index
    %93 = vector.load %arg14[%c0_46, %c0_47] : memref<512x1024xbf16, #tpu.memory_space<vmem>>, vector<512x1024xbf16>
    %cst_48 = arith.constant dense<0.000000e+00> : vector<16x1024xf32>
    %94 = tpu.matmul %92, %93, %cst_48 {dimension_numbers = #tpu.dot_dimension_numbers<[1], [0], [0], [1], [0, 0, 1, 1], [], []>} : vector<16x512xbf16>, vector<512x1024xbf16>, vector<16x1024xf32> -> vector<16x1024xf32>
    %c0_49 = arith.constant 0 : index
    %c0_50 = arith.constant 0 : index
    %95 = vector.load %arg15[%c0_49, %c0_50] : memref<1x1024xf32, #tpu.memory_space<vmem>>, vector<1x1024xf32>
    %96 = vector.broadcast %95 : vector<1x1024xf32> to vector<16x1024xf32>
    %97 = arith.addf %94, %96 : vector<16x1024xf32>
    %c0_51 = arith.constant 0 : index
    %c0_52 = arith.constant 0 : index
    %98 = vector.load %arg16[%c0_51, %c0_52] : memref<1x1024xf32, #tpu.memory_space<vmem>>, vector<1x1024xf32>
    %c0_53 = arith.constant 0 : index
    %c0_54 = arith.constant 0 : index
    %99 = vector.load %arg17[%c0_53, %c0_54] : memref<1x1024xf32, #tpu.memory_space<vmem>>, vector<1x1024xf32>
    %cst_55 = arith.constant dense<0.000000e+00> : vector<1024xf32>
    %100 = vector.multi_reduction <add>, %97, %cst_55 [0] : vector<16x1024xf32> to vector<1024xf32>
    %101 = vector.shape_cast %100 : vector<1024xf32> to vector<1x1024xf32>
    %cst_56 = arith.constant 1.600000e+01 : f32
    %102 = vector.broadcast %cst_56 : f32 to vector<1x1024xf32>
    %103 = arith.divf %101, %102 : vector<1x1024xf32>
    %104 = arith.mulf %97, %97 : vector<16x1024xf32>
    %cst_57 = arith.constant dense<0.000000e+00> : vector<1024xf32>
    %105 = vector.multi_reduction <add>, %104, %cst_57 [0] : vector<16x1024xf32> to vector<1024xf32>
    %106 = vector.shape_cast %105 : vector<1024xf32> to vector<1x1024xf32>
    %cst_58 = arith.constant 1.600000e+01 : f32
    %107 = vector.broadcast %cst_58 : f32 to vector<1x1024xf32>
    %108 = arith.divf %106, %107 : vector<1x1024xf32>
    %109 = arith.mulf %103, %103 : vector<1x1024xf32>
    %110 = arith.subf %108, %109 : vector<1x1024xf32>
    %cst_59 = arith.constant 8.000000e-01 : f32
    %111 = vector.broadcast %cst_59 : f32 to vector<1x1024xf32>
    %112 = arith.addf %110, %111 : vector<1x1024xf32>
    %113 = math.rsqrt %112 : vector<1x1024xf32>
    %114 = arith.mulf %113, %98 : vector<1x1024xf32>
    %115 = arith.mulf %103, %114 : vector<1x1024xf32>
    %116 = arith.subf %99, %115 : vector<1x1024xf32>
    %117 = vector.broadcast %114 : vector<1x1024xf32> to vector<16x1024xf32>
    %118 = arith.mulf %97, %117 : vector<16x1024xf32>
    %119 = vector.broadcast %116 : vector<1x1024xf32> to vector<16x1024xf32>
    %120 = arith.addf %118, %119 : vector<16x1024xf32>
    %cst_60 = arith.constant 0.000000e+00 : f32
    %121 = vector.broadcast %cst_60 : f32 to vector<16x1024xf32>
    %122 = arith.cmpf ogt, %120, %121 : vector<16x1024xf32>
    %cst_61 = arith.constant 2.000000e-01 : f32
    %123 = vector.broadcast %cst_61 : f32 to vector<16x1024xf32>
    %124 = arith.mulf %123, %120 : vector<16x1024xf32>
    %125 = arith.select %122, %120, %124 : vector<16x1024xi1>, vector<16x1024xf32>
    %126 = arith.truncf %125 : vector<16x1024xf32> to vector<16x1024xbf16>
    %c0_62 = arith.constant 0 : index
    %c0_63 = arith.constant 0 : index
    %127 = vector.load %arg18[%c0_62, %c0_63] : memref<1024x256xbf16, #tpu.memory_space<vmem>>, vector<1024x256xbf16>
    %cst_64 = arith.constant dense<0.000000e+00> : vector<16x256xf32>
    %128 = tpu.matmul %126, %127, %cst_64 {dimension_numbers = #tpu.dot_dimension_numbers<[1], [0], [0], [1], [0, 0, 1, 1], [], []>} : vector<16x1024xbf16>, vector<1024x256xbf16>, vector<16x256xf32> -> vector<16x256xf32>
    %c0_65 = arith.constant 0 : index
    %c0_66 = arith.constant 0 : index
    %129 = vector.load %arg19[%c0_65, %c0_66] : memref<1x256xf32, #tpu.memory_space<vmem>>, vector<1x256xf32>
    %130 = vector.broadcast %129 : vector<1x256xf32> to vector<16x256xf32>
    %131 = arith.addf %128, %130 : vector<16x256xf32>
    %132 = math.tanh %131 : vector<16x256xf32>
    %c0_67 = arith.constant 0 : index
    %c0_68 = arith.constant 0 : index
    %c0_69 = arith.constant 0 : index
    %133 = vector.load %arg20[%c0_67, %c0_68, %c0_69] : memref<1x16x256xf32, #tpu.memory_space<vmem>>, vector<1x16x256xf32>
    %134 = vector.shape_cast %133 : vector<1x16x256xf32> to vector<16x256xf32>
    %135 = vector.shape_cast %132 : vector<16x256xf32> to vector<1x16x256xf32>
    tpu.vector_store %arg20[%c0_67, %c0_68, %c0_69], %135 {strides = array<i32>} : memref<1x16x256xf32, #tpu.memory_space<vmem>>, vector<1x16x256xf32>,
    return
  }
  func.func @transform_0(%arg0: i32) -> (i32, i32, i32) {
    %c0_i32 = arith.constant 0 : i32
    %c0_i32_0 = arith.constant 0 : i32
    %c0_i32_1 = arith.constant 0 : i32
    return %arg0, %c0_i32, %c0_i32_0 : i32, i32, i32
  }
  func.func @transform_1(%arg0: i32) -> (i32, i32, i32) {
    %c0_i32 = arith.constant 0 : i32
    %c0_i32_0 = arith.constant 0 : i32
    %c0_i32_1 = arith.constant 0 : i32
    return %arg0, %c0_i32, %c0_i32_0 : i32, i32, i32
  }
  func.func @transform_2(%arg0: i32) -> (i32, i32) {
    %c0_i32 = arith.constant 0 : i32
    %c0_i32_0 = arith.constant 0 : i32
    %c0_i32_1 = arith.constant 0 : i32
    return %c0_i32, %c0_i32_0 : i32, i32
  }
  func.func @transform_3(%arg0: i32) -> (i32, i32) {
    %c0_i32 = arith.constant 0 : i32
    %c0_i32_0 = arith.constant 0 : i32
    %c0_i32_1 = arith.constant 0 : i32
    return %c0_i32, %c0_i32_0 : i32, i32
  }
  func.func @transform_4(%arg0: i32) -> (i32, i32) {
    %c0_i32 = arith.constant 0 : i32
    %c0_i32_0 = arith.constant 0 : i32
    %c0_i32_1 = arith.constant 0 : i32
    return %c0_i32, %c0_i32_0 : i32, i32
  }
  func.func @transform_5(%arg0: i32) -> (i32, i32) {
    %c0_i32 = arith.constant 0 : i32
    %c0_i32_0 = arith.constant 0 : i32
    %c0_i32_1 = arith.constant 0 : i32
    return %c0_i32, %c0_i32_0 : i32, i32
  }
  func.func @transform_6(%arg0: i32) -> (i32, i32) {
    %c0_i32 = arith.constant 0 : i32
    %c0_i32_0 = arith.constant 0 : i32
    %c0_i32_1 = arith.constant 0 : i32
    return %c0_i32, %c0_i32_0 : i32, i32
  }
  func.func @transform_7(%arg0: i32) -> (i32, i32) {
    %c0_i32 = arith.constant 0 : i32
    %c0_i32_0 = arith.constant 0 : i32
    %c0_i32_1 = arith.constant 0 : i32
    return %c0_i32, %c0_i32_0 : i32, i32
  }
  func.func @transform_8(%arg0: i32) -> (i32, i32) {
    %c0_i32 = arith.constant 0 : i32
    %c0_i32_0 = arith.constant 0 : i32
    %c0_i32_1 = arith.constant 0 : i32
    return %c0_i32, %c0_i32_0 : i32, i32
  }
  func.func @transform_9(%arg0: i32) -> (i32, i32) {
    %c0_i32 = arith.constant 0 : i32
    %c0_i32_0 = arith.constant 0 : i32
    %c0_i32_1 = arith.constant 0 : i32
    return %c0_i32, %c0_i32_0 : i32, i32
  }
  func.func @transform_10(%arg0: i32) -> (i32, i32) {
    %c0_i32 = arith.constant 0 : i32
    %c0_i32_0 = arith.constant 0 : i32
    %c0_i32_1 = arith.constant 0 : i32
    return %c0_i32, %c0_i32_0 : i32, i32
  }
  func.func @transform_11(%arg0: i32) -> (i32, i32) {
    %c0_i32 = arith.constant 0 : i32
    %c0_i32_0 = arith.constant 0 : i32
    %c0_i32_1 = arith.constant 0 : i32
    return %c0_i32, %c0_i32_0 : i32, i32
  }
  func.func @transform_12(%arg0: i32) -> (i32, i32) {
    %c0_i32 = arith.constant 0 : i32
    %c0_i32_0 = arith.constant 0 : i32
    %c0_i32_1 = arith.constant 0 : i32
    return %c0_i32, %c0_i32_0 : i32, i32
  }
  func.func @transform_13(%arg0: i32) -> (i32, i32) {
    %c0_i32 = arith.constant 0 : i32
    %c0_i32_0 = arith.constant 0 : i32
    %c0_i32_1 = arith.constant 0 : i32
    return %c0_i32, %c0_i32_0 : i32, i32
  }
  func.func @transform_14(%arg0: i32) -> (i32, i32) {
    %c0_i32 = arith.constant 0 : i32
    %c0_i32_0 = arith.constant 0 : i32
    %c0_i32_1 = arith.constant 0 : i32
    return %c0_i32, %c0_i32_0 : i32, i32
  }
  func.func @transform_15(%arg0: i32) -> (i32, i32) {
    %c0_i32 = arith.constant 0 : i32
    %c0_i32_0 = arith.constant 0 : i32
    %c0_i32_1 = arith.constant 0 : i32
    return %c0_i32, %c0_i32_0 : i32, i32
  }
  func.func @transform_16(%arg0: i32) -> (i32, i32) {
    %c0_i32 = arith.constant 0 : i32
    %c0_i32_0 = arith.constant 0 : i32
    %c0_i32_1 = arith.constant 0 : i32
    return %c0_i32, %c0_i32_0 : i32, i32
  }
  func.func @transform_17(%arg0: i32) -> (i32, i32) {
    %c0_i32 = arith.constant 0 : i32
    %c0_i32_0 = arith.constant 0 : i32
    %c0_i32_1 = arith.constant 0 : i32
    return %c0_i32, %c0_i32_0 : i32, i32
  }
  func.func @transform_18(%arg0: i32) -> (i32, i32) {
    %c0_i32 = arith.constant 0 : i32
    %c0_i32_0 = arith.constant 0 : i32
    %c0_i32_1 = arith.constant 0 : i32
    return %c0_i32, %c0_i32_0 : i32, i32
  }
  func.func @transform_19(%arg0: i32) -> (i32, i32, i32) {
    %c0_i32 = arith.constant 0 : i32
    %c0_i32_0 = arith.constant 0 : i32
    %c0_i32_1 = arith.constant 0 : i32
    return %arg0, %c0_i32, %c0_i32_0 : i32, i32, i32
  }
}

</mosaic_0001>

<llo_original>
// kernel: generator_forward.1
$region0: #{generator_forward.1}
  #allocation0 [shape = 'u32[]', space=smem, size = 0x4, offset = 0x4, fixed_abs, tag = 'smem constant byte address 0x4 - core index']
  #allocation1 [shape = 'u32[72,128]{1,0:T(1,128)}', space=vmem, size = 0x9000, scoped, tag = 'internal scratch']
  %s0 = inlined_call_operand.vmem [shape: s32[4,16,1], index: 0, kind: input, shape index: {}]
  %s1 = inlined_call_operand.vmem [shape: f32[4,16,32], index: 1, kind: input, shape index: {}]
  %s2 = inlined_call_operand.hbm [shape: bf16[8,128], index: 2, kind: input, shape index: {}]
  %s3 = inlined_call_operand.vmem [shape: bf16[32,128], index: 3, kind: input, shape index: {}]
  %s4 = inlined_call_operand.hbm [shape: f32[1,128], index: 4, kind: input, shape index: {}]
  %s5 = inlined_call_operand.hbm [shape: bf16[128,256], index: 5, kind: input, shape index: {}]
  %s6 = inlined_call_operand.vmem [shape: f32[1,256], index: 6, kind: input, shape index: {}]
  %s7 = inlined_call_operand.hbm [shape: f32[1,256], index: 7, kind: input, shape index: {}]
  %s8 = inlined_call_operand.hbm [shape: f32[1,256], index: 8, kind: input, shape index: {}]
  %s9 = inlined_call_operand.hbm [shape: bf16[256,512], index: 9, kind: input, shape index: {}]
  %s10 = inlined_call_operand.hbm [shape: f32[1,512], index: 10, kind: input, shape index: {}]
  %s11 = inlined_call_operand.hbm [shape: f32[1,512], index: 11, kind: input, shape index: {}]
  %s12 = inlined_call_operand.hbm [shape: f32[1,512], index: 12, kind: input, shape index: {}]
  %s13 = inlined_call_operand.hbm [shape: bf16[512,1024], index: 13, kind: input, shape index: {}]
  %s14 = inlined_call_operand.hbm [shape: f32[1,1024], index: 14, kind: input, shape index: {}]
  %s15 = inlined_call_operand.hbm [shape: f32[1,1024], index: 15, kind: input, shape index: {}]
  %s16 = inlined_call_operand.hbm [shape: f32[1,1024], index: 16, kind: input, shape index: {}]
  %s17 = inlined_call_operand.hbm [shape: bf16[1024,256], index: 17, kind: input, shape index: {}]
  %s18 = inlined_call_operand.hbm [shape: f32[1,256], index: 18, kind: input, shape index: {}]
  %s19 = inlined_call_operand.vmem [shape: f32[4,16,256], index: 19, kind: output, shape index: {}]
  %s20 = sld [smem:[#allocation0]]
  $region169: #{generator_forward.1} parent=0
    _
  %s22 = ssub.s32 1, %s20
  %s23 = scalar_select 0, %s22, %s20
  $region1: #{generator_forward.1} parent=0
    #allocation2 [shape = 'u8[2048]{0}', space=vmem, size = 0x800, scoped, tag = 'input window, operand 2, single buffered']
    #allocation3 [shape = 's32[2]{0}', space=sflag, size = 0x8, scoped, tag = 'scoped memory for generator_forward.1']
    #allocation4 [shape = 'u8[512]{0}', space=vmem, size = 0x400, scoped, tag = 'input window, operand 4, single buffered']
    #allocation5 [shape = 's32[1]{0}', space=sflag, size = 0x4, scoped, tag = 'scoped memory for generator_forward.1']
    #allocation6 [shape = 'u8[65536]{0}', space=vmem, size = 0x10000, scoped, tag = 'input window, operand 5, single buffered']
    #allocation7 [shape = 'u8[1024]{0}', space=vmem, size = 0x400, scoped, tag = 'input window, operand 7, single buffered']
    #allocation8 [shape = 's32[1]{0}', space=sflag, size = 0x4, scoped, tag = 'scoped memory for generator_forward.1']
    #allocation9 [shape = 'u8[1024]{0}', space=vmem, size = 0x400, scoped, tag = 'input window, operand 8, single buffered']
    #allocation10 [shape = 'u8[262144]{0}', space=vmem, size = 0x40000, scoped, tag = 'input window, operand 9, single buffered']
    #allocation11 [shape = 's32[1]{0}', space=sflag, size = 0x4, scoped, tag = 'scoped memory for generator_forward.1']
    #allocation12 [shape = 'u8[2048]{0}', space=vmem, size = 0x800, scoped, tag = 'input window, operand 10, single buffered']
    #allocation13 [shape = 'u8[2048]{0}', space=vmem, size = 0x800, scoped, tag = 'input window, operand 11, single buffered']
    #allocation14 [shape = 's32[1]{0}', space=sflag, size = 0x4, scoped, tag = 'scoped memory for generator_forward.1']
    #allocation15 [shape = 'u8[2048]{0}', space=vmem, size = 0x800, scoped, tag = 'input window, operand 12, single buffered']
    #allocation16 [shape = 'u8[1048576]{0}', space=vmem, size = 0x100000, scoped, tag = 'input window, operand 13, single buffered']
    #allocation17 [shape = 's32[1]{0}', space=sflag, size = 0x4, scoped, tag = 'scoped memory for generator_forward.1']
    #allocation18 [shape = 'u8[4096]{0}', space=vmem, size = 0x1000, scoped, tag = 'input window, operand 14, single buffered']
    #allocation19 [shape = 'u8[4096]{0}', space=vmem, size = 0x1000, scoped, tag = 'input window, operand 15, single buffered']
    #allocation20 [shape = 's32[1]{0}', space=sflag, size = 0x4, scoped, tag = 'scoped memory for generator_forward.1']
    #allocation21 [shape = 'u8[4096]{0}', space=vmem, size = 0x1000, scoped, tag = 'input window, operand 16, single buffered']
    #allocation22 [shape = 'u8[524288]{0}', space=vmem, size = 0x80000, scoped, tag = 'input window, operand 17, single buffered']
    #allocation23 [shape = 's32[1]{0}', space=sflag, size = 0x4, scoped, tag = 'scoped memory for generator_forward.1']
    #allocation24 [shape = 'u8[1024]{0}', space=vmem, size = 0x400, scoped, tag = 'input window, operand 18, single buffered']
    %24 = vsyncpa [#allocation3], 0
    %25 = vsyncpa [#allocation5], 0
    %26 = vsyncpa [#allocation8], 0
    %27 = vsyncpa [#allocation11], 0
    %28 = vsyncpa [#allocation14], 0
    %29 = vsyncpa [#allocation17], 0
    %30 = vsyncpa [#allocation20], 0
    %31 = vsyncpa [#allocation23], 0
    loop: start=0, step=1, limit=6
    $region2: #{generator_forward.1} parent=1 // loop_pre_header
      _
    $region3: #{generator_forward.1} parent=1 // loop_header
      %s33 = sphi 0, %s37
      %p34 = scmp.ge.s32.totalorder %s33, 6
      %s43 = sphi 0, %s45
      %s46 = sphi 0, %s43
      %s47 = sphi 0, %s46
      %s63 = sphi 0, %s47
      %s69 = sphi 0, %s71
      %s72 = sphi 0, %s69
      %s73 = sphi 0, %s72
      %s89 = sphi 0, %s73
      %s93 = sphi 0, %s93
      %s95 = sphi 0, %s93
      %s96 = sphi 0, %s95
      %s110 = sphi 0, %s96
      %s114 = sphi 0, %s114
      %s116 = sphi 0, %s114
      %s117 = sphi 0, %s116
      %s131 = sphi 0, %s117
      %s135 = sphi 0, %s135
      %s137 = sphi 0, %s135
      %s138 = sphi 0, %s137
      %s152 = sphi 0, %s138
      %s156 = sphi 0, %s156
      %s158 = sphi 0, %s156
      %s159 = sphi 0, %s158
      %s173 = sphi 0, %s159
      %s177 = sphi 0, %s177
      %s179 = sphi 0, %s177
      %s180 = sphi 0, %s179
      %s194 = sphi 0, %s180
      %s198 = sphi 0, %s198
      %s200 = sphi 0, %s198
      %s201 = sphi 0, %s200
      %s215 = sphi 0, %s201
      %s219 = sphi 0, %s219
      %s221 = sphi 0, %s219
      %s222 = sphi 0, %s221
      %s236 = sphi 0, %s222
      %s240 = sphi 0, %s240
      %s242 = sphi 0, %s240
      %s243 = sphi 0, %s242
      %s257 = sphi 0, %s243
      %s261 = sphi 0, %s261
      %s263 = sphi 0, %s261
      %s264 = sphi 0, %s263
      %s278 = sphi 0, %s264
      %s282 = sphi 0, %s282
      %s284 = sphi 0, %s282
      %s285 = sphi 0, %s284
      %s299 = sphi 0, %s285
      %s303 = sphi 0, %s303
      %s305 = sphi 0, %s303
      %s306 = sphi 0, %s305
      %s320 = sphi 0, %s306
      %s324 = sphi 0, %s324
      %s326 = sphi 0, %s324
      %s327 = sphi 0, %s326
      %s341 = sphi 0, %s327
      %s345 = sphi 0, %s345
      %s347 = sphi 0, %s345
      %s348 = sphi 0, %s347
      %s362 = sphi 0, %s348
      %s366 = sphi 0, %s366
      %s368 = sphi 0, %s366
      %s369 = sphi 0, %s368
      %s383 = sphi 0, %s369
      %s387 = sphi 0, %s387
      %s389 = sphi 0, %s387
      %s390 = sphi 0, %s389
      %s404 = sphi 0, %s390
      %s408 = sphi 0, %s408
      %s410 = sphi 0, %s408
      %s411 = sphi 0, %s410
      %s425 = sphi 0, %s411
      %s429 = sphi 0, %s429
      %s431 = sphi 0, %s429
      %s432 = sphi 0, %s431
      %s446 = sphi 0, %s432
      %s452 = sphi 0, %s454
      %s455 = sphi 0, %s452
      %s456 = sphi 0, %s455
      %s472 = sphi 0, %s456
    $region4: #{generator_forward.1} parent=1 // loop_header_branch
      %36 = sbr.rel (%p34) target = $region8
    $region5: #{generator_forward.1} parent=1 // loop_body
      %s38 = ssub.s32 %s33, 1
      %s39 = ssub.s32 %s33, 2
      %s40 = sadd.s32 %s33, 1
      %s41 = ssub.s32 %s33, %s40
      %p42 = scmp.eq.s32.totalorder %s41, 0
      %s44 = sadd.s32 %s43, 1
      %s45 = scalar_select %p42, %s43, %s44
      %p48 = pneg %p42
      %p49 = scmp.eq.s32.totalorder %s33, 3
      %p50 = por %p48, %p49
      %p51 = scmp.ne.s32.totalorder %s43, %s46
      %p52 = scmp.eq.s32.totalorder %s33, 0
      %p53 = por %p51, %p52
      %p54 = scmp.ne.s32.totalorder %s43, %s46
      %p55 = scmp.eq.s32.totalorder %s38, 3
      %p56 = por %p54, %p55
      %p57 = scmp.ne.s32.totalorder %s46, %s47
      %p58 = scmp.eq.s32.totalorder %s38, 0
      %p59 = por %p57, %p58
      %p60 = scmp.ne.s32.totalorder %s46, %s47
      %p61 = scmp.eq.s32.totalorder %s39, 3
      %p62 = por %p60, %p61
      %p64 = scmp.ne.s32.totalorder %s47, %s63
      %p65 = scmp.eq.s32.totalorder %s39, 0
      %p66 = por %p64, %p65
      %s67 = ssub.s32 %s33, %s40
      %p68 = scmp.eq.s32.totalorder %s67, 0
      %s70 = sadd.s32 %s69, 1
      %s71 = scalar_select %p68, %s69, %s70
      %p74 = pneg %p68
      %p75 = scmp.eq.s32.totalorder %s33, 3
      %p76 = por %p74, %p75
      %p77 = scmp.ne.s32.totalorder %s69, %s72
      %p78 = scmp.eq.s32.totalorder %s33, 0
      %p79 = por %p77, %p78
      %p80 = scmp.ne.s32.totalorder %s69, %s72
      %p81 = scmp.eq.s32.totalorder %s38, 3
      %p82 = por %p80, %p81
      %p83 = scmp.ne.s32.totalorder %s72, %s73
      %p84 = scmp.eq.s32.totalorder %s38, 0
      %p85 = por %p83, %p84
      %p86 = scmp.ne.s32.totalorder %s72, %s73
      %p87 = scmp.eq.s32.totalorder %s39, 3
      %p88 = por %p86, %p87
      %p90 = scmp.ne.s32.totalorder %s73, %s89
      %p91 = scmp.eq.s32.totalorder %s39, 0
      %p92 = por %p90, %p91
      %s94 = sadd.s32 %s93, 1
      %p97 = scmp.eq.s32.totalorder %s33, 3
      %p98 = scmp.ne.s32.totalorder %s93, %s95
      %p99 = scmp.eq.s32.totalorder %s33, 0
      %p100 = por %p98, %p99
      %p101 = scmp.ne.s32.totalorder %s93, %s95
      %p102 = scmp.eq.s32.totalorder %s38, 3
      %p103 = por %p101, %p102
      %p104 = scmp.ne.s32.totalorder %s95, %s96
      %p105 = scmp.eq.s32.totalorder %s38, 0
      %p106 = por %p104, %p105
      %p107 = scmp.ne.s32.totalorder %s95, %s96
      %p108 = scmp.eq.s32.totalorder %s39, 3
      %p109 = por %p107, %p108
      %p111 = scmp.ne.s32.totalorder %s96, %s110
      %p112 = scmp.eq.s32.totalorder %s39, 0
      %p113 = por %p111, %p112
      %s115 = sadd.s32 %s114, 1
      %p118 = scmp.eq.s32.totalorder %s33, 3
      %p119 = scmp.ne.s32.totalorder %s114, %s116
      %p120 = scmp.eq.s32.totalorder %s33, 0
      %p121 = por %p119, %p120
      %p122 = scmp.ne.s32.totalorder %s114, %s116
      %p123 = scmp.eq.s32.totalorder %s38, 3
      %p124 = por %p122, %p123
      %p125 = scmp.ne.s32.totalorder %s116, %s117
      %p126 = scmp.eq.s32.totalorder %s38, 0
      %p127 = por %p125, %p126
      %p128 = scmp.ne.s32.totalorder %s116, %s117
      %p129 = scmp.eq.s32.totalorder %s39, 3
      %p130 = por %p128, %p129
      %p132 = scmp.ne.s32.totalorder %s117, %s131
      %p133 = scmp.eq.s32.totalorder %s39, 0
      %p134 = por %p132, %p133
      %s136 = sadd.s32 %s135, 1
      %p139 = scmp.eq.s32.totalorder %s33, 3
      %p140 = scmp.ne.s32.totalorder %s135, %s137
      %p141 = scmp.eq.s32.totalorder %s33, 0
      %p142 = por %p140, %p141
      %p143 = scmp.ne.s32.totalorder %s135, %s137
      %p144 = scmp.eq.s32.totalorder %s38, 3
      %p145 = por %p143, %p144
      %p146 = scmp.ne.s32.totalorder %s137, %s138
      %p147 = scmp.eq.s32.totalorder %s38, 0
      %p148 = por %p146, %p147
      %p149 = scmp.ne.s32.totalorder %s137, %s138
      %p150 = scmp.eq.s32.totalorder %s39, 3
      %p151 = por %p149, %p150
      %p153 = scmp.ne.s32.totalorder %s138, %s152
      %p154 = scmp.eq.s32.totalorder %s39, 0
      %p155 = por %p153, %p154
      %s157 = sadd.s32 %s156, 1
      %p160 = scmp.eq.s32.totalorder %s33, 3
      %p161 = scmp.ne.s32.totalorder %s156, %s158
      %p162 = scmp.eq.s32.totalorder %s33, 0
      %p163 = por %p161, %p162
      %p164 = scmp.ne.s32.totalorder %s156, %s158
      %p165 = scmp.eq.s32.totalorder %s38, 3
      %p166 = por %p164, %p165
      %p167 = scmp.ne.s32.totalorder %s158, %s159
      %p168 = scmp.eq.s32.totalorder %s38, 0
      %p169 = por %p167, %p168
      %p170 = scmp.ne.s32.totalorder %s158, %s159
      %p171 = scmp.eq.s32.totalorder %s39, 3
      %p172 = por %p170, %p171
      %p174 = scmp.ne.s32.totalorder %s159, %s173
      %p175 = scmp.eq.s32.totalorder %s39, 0
      %p176 = por %p174, %p175
      %s178 = sadd.s32 %s177, 1
      %p181 = scmp.eq.s32.totalorder %s33, 3
      %p182 = scmp.ne.s32.totalorder %s177, %s179
      %p183 = scmp.eq.s32.totalorder %s33, 0
      %p184 = por %p182, %p183
      %p185 = scmp.ne.s32.totalorder %s177, %s179
      %p186 = scmp.eq.s32.totalorder %s38, 3
      %p187 = por %p185, %p186
      %p188 = scmp.ne.s32.totalorder %s179, %s180
      %p189 = scmp.eq.s32.totalorder %s38, 0
      %p190 = por %p188, %p189
      %p191 = scmp.ne.s32.totalorder %s179, %s180
      %p192 = scmp.eq.s32.totalorder %s39, 3
      %p193 = por %p191, %p192
      %p195 = scmp.ne.s32.totalorder %s180, %s194
      %p196 = scmp.eq.s32.totalorder %s39, 0
      %p197 = por %p195, %p196
      %s199 = sadd.s32 %s198, 1
      %p202 = scmp.eq.s32.totalorder %s33, 3
      %p203 = scmp.ne.s32.totalorder %s198, %s200
      %p204 = scmp.eq.s32.totalorder %s33, 0
      %p205 = por %p203, %p204
      %p206 = scmp.ne.s32.totalorder %s198, %s200
      %p207 = scmp.eq.s32.totalorder %s38, 3
      %p208 = por %p206, %p207
      %p209 = scmp.ne.s32.totalorder %s200, %s201
      %p210 = scmp.eq.s32.totalorder %s38, 0
      %p211 = por %p209, %p210
      %p212 = scmp.ne.s32.totalorder %s200, %s201
      %p213 = scmp.eq.s32.totalorder %s39, 3
      %p214 = por %p212, %p213
      %p216 = scmp.ne.s32.totalorder %s201, %s215
      %p217 = scmp.eq.s32.totalorder %s39, 0
      %p218 = por %p216, %p217
      %s220 = sadd.s32 %s219, 1
      %p223 = scmp.eq.s32.totalorder %s33, 3
      %p224 = scmp.ne.s32.totalorder %s219, %s221
      %p225 = scmp.eq.s32.totalorder %s33, 0
      %p226 = por %p224, %p225
      %p227 = scmp.ne.s32.totalorder %s219, %s221
      %p228 = scmp.eq.s32.totalorder %s38, 3
      %p229 = por %p227, %p228
      %p230 = scmp.ne.s32.totalorder %s221, %s222
      %p231 = scmp.eq.s32.totalorder %s38, 0
      %p232 = por %p230, %p231
      %p233 = scmp.ne.s32.totalorder %s221, %s222
      %p234 = scmp.eq.s32.totalorder %s39, 3
      %p235 = por %p233, %p234
      %p237 = scmp.ne.s32.totalorder %s222, %s236
      %p238 = scmp.eq.s32.totalorder %s39, 0
      %p239 = por %p237, %p238
      %s241 = sadd.s32 %s240, 1
      %p244 = scmp.eq.s32.totalorder %s33, 3
      %p245 = scmp.ne.s32.totalorder %s240, %s242
      %p246 = scmp.eq.s32.totalorder %s33, 0
      %p247 = por %p245, %p246
      %p248 = scmp.ne.s32.totalorder %s240, %s242
      %p249 = scmp.eq.s32.totalorder %s38, 3
      %p250 = por %p248, %p249
      %p251 = scmp.ne.s32.totalorder %s242, %s243
      %p252 = scmp.eq.s32.totalorder %s38, 0
      %p253 = por %p251, %p252
      %p254 = scmp.ne.s32.totalorder %s242, %s243
      %p255 = scmp.eq.s32.totalorder %s39, 3
      %p256 = por %p254, %p255
      %p258 = scmp.ne.s32.totalorder %s243, %s257
      %p259 = scmp.eq.s32.totalorder %s39, 0
      %p260 = por %p258, %p259
      %s262 = sadd.s32 %s261, 1
      %p265 = scmp.eq.s32.totalorder %s33, 3
      %p266 = scmp.ne.s32.totalorder %s261, %s263
      %p267 = scmp.eq.s32.totalorder %s33, 0
      %p268 = por %p266, %p267
      %p269 = scmp.ne.s32.totalorder %s261, %s263
      %p270 = scmp.eq.s32.totalorder %s38, 3
      %p271 = por %p269, %p270
      %p272 = scmp.ne.s32.totalorder %s263, %s264
      %p273 = scmp.eq.s32.totalorder %s38, 0
      %p274 = por %p272, %p273
      %p275 = scmp.ne.s32.totalorder %s263, %s264
      %p276 = scmp.eq.s32.totalorder %s39, 3
      %p277 = por %p275, %p276
      %p279 = scmp.ne.s32.totalorder %s264, %s278
      %p280 = scmp.eq.s32.totalorder %s39, 0
      %p281 = por %p279, %p280
      %s283 = sadd.s32 %s282, 1
      %p286 = scmp.eq.s32.totalorder %s33, 3
      %p287 = scmp.ne.s32.totalorder %s282, %s284
      %p288 = scmp.eq.s32.totalorder %s33, 0
      %p289 = por %p287, %p288
      %p290 = scmp.ne.s32.totalorder %s282, %s284
      %p291 = scmp.eq.s32.totalorder %s38, 3
      %p292 = por %p290, %p291
      %p293 = scmp.ne.s32.totalorder %s284, %s285
      %p294 = scmp.eq.s32.totalorder %s38, 0
      %p295 = por %p293, %p294
      %p296 = scmp.ne.s32.totalorder %s284, %s285
      %p297 = scmp.eq.s32.totalorder %s39, 3
      %p298 = por %p296, %p297
      %p300 = scmp.ne.s32.totalorder %s285, %s299
      %p301 = scmp.eq.s32.totalorder %s39, 0
      %p302 = por %p300, %p301
      %s304 = sadd.s32 %s303, 1
      %p307 = scmp.eq.s32.totalorder %s33, 3
      %p308 = scmp.ne.s32.totalorder %s303, %s305
      %p309 = scmp.eq.s32.totalorder %s33, 0
      %p310 = por %p308, %p309
      %p311 = scmp.ne.s32.totalorder %s303, %s305
      %p312 = scmp.eq.s32.totalorder %s38, 3
      %p313 = por %p311, %p312
      %p314 = scmp.ne.s32.totalorder %s305, %s306
      %p315 = scmp.eq.s32.totalorder %s38, 0
      %p316 = por %p314, %p315
      %p317 = scmp.ne.s32.totalorder %s305, %s306
      %p318 = scmp.eq.s32.totalorder %s39, 3
      %p319 = por %p317, %p318
      %p321 = scmp.ne.s32.totalorder %s306, %s320
      %p322 = scmp.eq.s32.totalorder %s39, 0
      %p323 = por %p321, %p322
      %s325 = sadd.s32 %s324, 1
      %p328 = scmp.eq.s32.totalorder %s33, 3
      %p329 = scmp.ne.s32.totalorder %s324, %s326
      %p330 = scmp.eq.s32.totalorder %s33, 0
      %p331 = por %p329, %p330
      %p332 = scmp.ne.s32.totalorder %s324, %s326
      %p333 = scmp.eq.s32.totalorder %s38, 3
      %p334 = por %p332, %p333
      %p335 = scmp.ne.s32.totalorder %s326, %s327
      %p336 = scmp.eq.s32.totalorder %s38, 0
      %p337 = por %p335, %p336
      %p338 = scmp.ne.s32.totalorder %s326, %s327
      %p339 = scmp.eq.s32.totalorder %s39, 3
      %p340 = por %p338, %p339
      %p342 = scmp.ne.s32.totalorder %s327, %s341
      %p343 = scmp.eq.s32.totalorder %s39, 0
      %p344 = por %p342, %p343
      %s346 = sadd.s32 %s345, 1
      %p349 = scmp.eq.s32.totalorder %s33, 3
      %p350 = scmp.ne.s32.totalorder %s345, %s347
      %p351 = scmp.eq.s32.totalorder %s33, 0
      %p352 = por %p350, %p351
      %p353 = scmp.ne.s32.totalorder %s345, %s347
      %p354 = scmp.eq.s32.totalorder %s38, 3
      %p355 = por %p353, %p354
      %p356 = scmp.ne.s32.totalorder %s347, %s348
      %p357 = scmp.eq.s32.totalorder %s38, 0
      %p358 = por %p356, %p357
      %p359 = scmp.ne.s32.totalorder %s347, %s348
      %p360 = scmp.eq.s32.totalorder %s39, 3
      %p361 = por %p359, %p360
      %p363 = scmp.ne.s32.totalorder %s348, %s362
      %p364 = scmp.eq.s32.totalorder %s39, 0
      %p365 = por %p363, %p364
      %s367 = sadd.s32 %s366, 1
      %p370 = scmp.eq.s32.totalorder %s33, 3
      %p371 = scmp.ne.s32.totalorder %s366, %s368
      %p372 = scmp.eq.s32.totalorder %s33, 0
      %p373 = por %p371, %p372
      %p374 = scmp.ne.s32.totalorder %s366, %s368
      %p375 = scmp.eq.s32.totalorder %s38, 3
      %p376 = por %p374, %p375
      %p377 = scmp.ne.s32.totalorder %s368, %s369
      %p378 = scmp.eq.s32.totalorder %s38, 0
      %p379 = por %p377, %p378
      %p380 = scmp.ne.s32.totalorder %s368, %s369
      %p381 = scmp.eq.s32.totalorder %s39, 3
      %p382 = por %p380, %p381
      %p384 = scmp.ne.s32.totalorder %s369, %s383
      %p385 = scmp.eq.s32.totalorder %s39, 0
      %p386 = por %p384, %p385
      %s388 = sadd.s32 %s387, 1
      %p391 = scmp.eq.s32.totalorder %s33, 3
      %p392 = scmp.ne.s32.totalorder %s387, %s389
      %p393 = scmp.eq.s32.totalorder %s33, 0
      %p394 = por %p392, %p393
      %p395 = scmp.ne.s32.totalorder %s387, %s389
      %p396 = scmp.eq.s32.totalorder %s38, 3
      %p397 = por %p395, %p396
      %p398 = scmp.ne.s32.totalorder %s389, %s390
      %p399 = scmp.eq.s32.totalorder %s38, 0
      %p400 = por %p398, %p399
      %p401 = scmp.ne.s32.totalorder %s389, %s390
      %p402 = scmp.eq.s32.totalorder %s39, 3
      %p403 = por %p401, %p402
      %p405 = scmp.ne.s32.totalorder %s390, %s404
      %p406 = scmp.eq.s32.totalorder %s39, 0
      %p407 = por %p405, %p406
      %s409 = sadd.s32 %s408, 1
      %p412 = scmp.eq.s32.totalorder %s33, 3
      %p413 = scmp.ne.s32.totalorder %s408, %s410
      %p414 = scmp.eq.s32.totalorder %s33, 0
      %p415 = por %p413, %p414
      %p416 = scmp.ne.s32.totalorder %s408, %s410
      %p417 = scmp.eq.s32.totalorder %s38, 3
      %p418 = por %p416, %p417
      %p419 = scmp.ne.s32.totalorder %s410, %s411
      %p420 = scmp.eq.s32.totalorder %s38, 0
      %p421 = por %p419, %p420
      %p422 = scmp.ne.s32.totalorder %s410, %s411
      %p423 = scmp.eq.s32.totalorder %s39, 3
      %p424 = por %p422, %p423
      %p426 = scmp.ne.s32.totalorder %s411, %s425
      %p427 = scmp.eq.s32.totalorder %s39, 0
      %p428 = por %p426, %p427
      %s430 = sadd.s32 %s429, 1
      %p433 = scmp.eq.s32.totalorder %s33, 3
      %p434 = scmp.ne.s32.totalorder %s429, %s431
      %p435 = scmp.eq.s32.totalorder %s33, 0
      %p436 = por %p434, %p435
      %p437 = scmp.ne.s32.totalorder %s429, %s431
      %p438 = scmp.eq.s32.totalorder %s38, 3
      %p439 = por %p437, %p438
      %p440 = scmp.ne.s32.totalorder %s431, %s432
      %p441 = scmp.eq.s32.totalorder %s38, 0
      %p442 = por %p440, %p441
      %p443 = scmp.ne.s32.totalorder %s431, %s432
      %p444 = scmp.eq.s32.totalorder %s39, 3
      %p445 = por %p443, %p444
      %p447 = scmp.ne.s32.totalorder %s432, %s446
      %p448 = scmp.eq.s32.totalorder %s39, 0
      %p449 = por %p447, %p448
      %s450 = ssub.s32 %s33, %s40
      %p451 = scmp.eq.s32.totalorder %s450, 0
      %s453 = sadd.s32 %s452, 1
      %s454 = scalar_select %p451, %s452, %s453
      %p457 = pneg %p451
      %p458 = scmp.eq.s32.totalorder %s33, 3
      %p459 = por %p457, %p458
      %p460 = scmp.ne.s32.totalorder %s452, %s455
      %p461 = scmp.eq.s32.totalorder %s33, 0
      %p462 = por %p460, %p461
      %p463 = scmp.ne.s32.totalorder %s452, %s455
      %p464 = scmp.eq.s32.totalorder %s38, 3
      %p465 = por %p463, %p464
      %p466 = scmp.ne.s32.totalorder %s455, %s456
      %p467 = scmp.eq.s32.totalorder %s38, 0
      %p468 = por %p466, %p467
      %p469 = scmp.ne.s32.totalorder %s455, %s456
      %p470 = scmp.eq.s32.totalorder %s39, 3
      %p471 = por %p469, %p470
      %p473 = scmp.ne.s32.totalorder %s456, %s472
      %p474 = scmp.eq.s32.totalorder %s39, 0
      %p475 = por %p473, %p474
      %p476 = scmp.le.s32.totalorder 1, %s33
      %p477 = scmp.lt.s32.totalorder %s33, 5
      %p478 = pnand %p476, %p477
      %p479 = pneg %p478
      // Predicated region
      $region9: #{generator_forward.1} parent=5 // pred_check
        _
      $region10: #{generator_forward.1} parent=5 // pred_check_branch
        %481 = sbr.rel (%p478) target = $region12
      $region11: #{generator_forward.1} parent=5 // pred_region
        %s482 = ssub.s32 %s33, 1
        // Predicated region
        $region13: #{generator_forward.1} parent=11 // pred_check
          %p483 = pneg %p106
        $region14: #{generator_forward.1} parent=11 // pred_check_branch
          %485 = sbr.rel (%p483) target = $region16
        $region15: #{generator_forward.1} parent=11 // pred_region
          %487 = vsyncadd [#allocation3], 0
          %s489 = sshll.u32 %s2, 4
          %s490 = int_to_ptr.hbm [resolvable:$true] %s489
          %s491 = sshll.u32 [#allocation2], 4
          %s492 = int_to_ptr.vmem [resolvable:$true] %s491
          %494 = dma.hbm_to_vmem [thread:$0]  %s490, 64, %s492, [#allocation3]
        $region16: #{generator_forward.1} parent=11 // pred_fallthru
          _
        // Predicated region
        $region17: #{generator_forward.1} parent=11 // pred_check
          %p495 = pneg %p127
        $region18: #{generator_forward.1} parent=11 // pred_check_branch
          %497 = sbr.rel (%p495) target = $region20
        $region19: #{generator_forward.1} parent=11 // pred_region
          _
        $region20: #{generator_forward.1} parent=11 // pred_fallthru
          _
        // Predicated region
        $region21: #{generator_forward.1} parent=11 // pred_check
          %p498 = pneg %p148
        $region22: #{generator_forward.1} parent=11 // pred_check_branch
          %500 = sbr.rel (%p498) target = $region24
        $region23: #{generator_forward.1} parent=11 // pred_region
          %502 = vsyncadd [#allocation5], 0
          %s504 = sshll.u32 %s4, 4
          %s505 = int_to_ptr.hbm [resolvable:$true] %s504
          %s506 = sshll.u32 [#allocation4], 4
          %s507 = int_to_ptr.vmem [resolvable:$true] %s506
          %509 = dma.hbm_to_vmem [thread:$0]  %s505, 16, %s507, [#allocation5]
        $region24: #{generator_forward.1} parent=11 // pred_fallthru
          _
        // Predicated region
        $region25: #{generator_forward.1} parent=11 // pred_check
          %p510 = pneg %p169
        $region26: #{generator_forward.1} parent=11 // pred_check_branch
          %512 = sbr.rel (%p510) target = $region28
        $region27: #{generator_forward.1} parent=11 // pred_region
          %514 = vsyncadd [#allocation5], 0
          %s515 = sshll.u32 %s5, 4
          %s516 = int_to_ptr.hbm [resolvable:$true] %s515
          %s517 = sshll.u32 [#allocation6], 4
          %s518 = int_to_ptr.vmem [resolvable:$true] %s517
          %523 = dma.hbm_to_vmem [thread:$0]  %s516, 2048, %s518, [#allocation5], 128, 128, 8
        $region28: #{generator_forward.1} parent=11 // pred_fallthru
          _
        // Predicated region
        $region29: #{generator_forward.1} parent=11 // pred_check
          %p524 = pneg %p190
        $region30: #{generator_forward.1} parent=11 // pred_check_branch
          %526 = sbr.rel (%p524) target = $region32
        $region31: #{generator_forward.1} parent=11 // pred_region
          _
        $region32: #{generator_forward.1} parent=11 // pred_fallthru
          _
        // Predicated region
        $region33: #{generator_forward.1} parent=11 // pred_check
          %p527 = pneg %p211
        $region34: #{generator_forward.1} parent=11 // pred_check_branch
          %529 = sbr.rel (%p527) target = $region36
        $region35: #{generator_forward.1} parent=11 // pred_region
          %531 = vsyncadd [#allocation8], 0
          %s533 = sshll.u32 %s7, 4
          %s534 = int_to_ptr.hbm [resolvable:$true] %s533
          %s535 = sshll.u32 [#allocation7], 4
          %s536 = int_to_ptr.vmem [resolvable:$true] %s535
          %538 = dma.hbm_to_vmem [thread:$0]  %s534, 32, %s536, [#allocation8]
        $region36: #{generator_forward.1} parent=11 // pred_fallthru
          _
        // Predicated region
        $region37: #{generator_forward.1} parent=11 // pred_check
          %p539 = pneg %p232
        $region38: #{generator_forward.1} parent=11 // pred_check_branch
          %541 = sbr.rel (%p539) target = $region40
        $region39: #{generator_forward.1} parent=11 // pred_region
          %543 = vsyncadd [#allocation8], 0
          %s545 = sshll.u32 %s8, 4
          %s546 = int_to_ptr.hbm [resolvable:$true] %s545
          %s547 = sshll.u32 [#allocation9], 4
          %s548 = int_to_ptr.vmem [resolvable:$true] %s547
          %550 = dma.hbm_to_vmem [thread:$0]  %s546, 32, %s548, [#allocation8]
        $region40: #{generator_forward.1} parent=11 // pred_fallthru
          _
        // Predicated region
        $region41: #{generator_forward.1} parent=11 // pred_check
          %p551 = pneg %p253
        $region42: #{generator_forward.1} parent=11 // pred_check_branch
          %553 = sbr.rel (%p551) target = $region44
        $region43: #{generator_forward.1} parent=11 // pred_region
          %555 = vsyncadd [#allocation11], 0
          %s556 = sshll.u32 %s9, 4
          %s557 = int_to_ptr.hbm [resolvable:$true] %s556
          %s558 = sshll.u32 [#allocation10], 4
          %s559 = int_to_ptr.vmem [resolvable:$true] %s558
          %564 = dma.hbm_to_vmem [thread:$0]  %s557, 8192, %s559, [#allocation11], 256, 256, 16
        $region44: #{generator_forward.1} parent=11 // pred_fallthru
          _
        // Predicated region
        $region45: #{generator_forward.1} parent=11 // pred_check
          %p565 = pneg %p274
        $region46: #{generator_forward.1} parent=11 // pred_check_branch
          %567 = sbr.rel (%p565) target = $region48
        $region47: #{generator_forward.1} parent=11 // pred_region
          %569 = vsyncadd [#allocation11], 0
          %s571 = sshll.u32 %s10, 4
          %s572 = int_to_ptr.hbm [resolvable:$true] %s571
          %s573 = sshll.u32 [#allocation12], 4
          %s574 = int_to_ptr.vmem [resolvable:$true] %s573
          %576 = dma.hbm_to_vmem [thread:$0]  %s572, 64, %s574, [#allocation11]
        $region48: #{generator_forward.1} parent=11 // pred_fallthru
          _
        // Predicated region
        $region49: #{generator_forward.1} parent=11 // pred_check
          %p577 = pneg %p295
        $region50: #{generator_forward.1} parent=11 // pred_check_branch
          %579 = sbr.rel (%p577) target = $region52
        $region51: #{generator_forward.1} parent=11 // pred_region
          %581 = vsyncadd [#allocation14], 0
          %s583 = sshll.u32 %s11, 4
          %s584 = int_to_ptr.hbm [resolvable:$true] %s583
          %s585 = sshll.u32 [#allocation13], 4
          %s586 = int_to_ptr.vmem [resolvable:$true] %s585
          %588 = dma.hbm_to_vmem [thread:$0]  %s584, 64, %s586, [#allocation14]
        $region52: #{generator_forward.1} parent=11 // pred_fallthru
          _
        // Predicated region
        $region53: #{generator_forward.1} parent=11 // pred_check
          %p589 = pneg %p316
        $region54: #{generator_forward.1} parent=11 // pred_check_branch
          %591 = sbr.rel (%p589) target = $region56
        $region55: #{generator_forward.1} parent=11 // pred_region
          %593 = vsyncadd [#allocation14], 0
          %s595 = sshll.u32 %s12, 4
          %s596 = int_to_ptr.hbm [resolvable:$true] %s595
          %s597 = sshll.u32 [#allocation15], 4
          %s598 = int_to_ptr.vmem [resolvable:$true] %s597
          %600 = dma.hbm_to_vmem [thread:$0]  %s596, 64, %s598, [#allocation14]
        $region56: #{generator_forward.1} parent=11 // pred_fallthru
          _
        // Predicated region
        $region57: #{generator_forward.1} parent=11 // pred_check
          %p601 = pneg %p337
        $region58: #{generator_forward.1} parent=11 // pred_check_branch
          %603 = sbr.rel (%p601) target = $region60
        $region59: #{generator_forward.1} parent=11 // pred_region
          %605 = vsyncadd [#allocation17], 0
          %s606 = sshll.u32 %s13, 4
          %s607 = int_to_ptr.hbm [resolvable:$true] %s606
          %s608 = sshll.u32 [#allocation16], 4
          %s609 = int_to_ptr.vmem [resolvable:$true] %s608
          %614 = dma.hbm_to_vmem [thread:$0]  %s607, 32768, %s609, [#allocation17], 512, 512, 32
        $region60: #{generator_forward.1} parent=11 // pred_fallthru
          _
        // Predicated region
        $region61: #{generator_forward.1} parent=11 // pred_check
          %p615 = pneg %p358
        $region62: #{generator_forward.1} parent=11 // pred_check_branch
          %617 = sbr.rel (%p615) target = $region64
        $region63: #{generator_forward.1} parent=11 // pred_region
          %619 = vsyncadd [#allocation17], 0
          %s621 = sshll.u32 %s14, 4
          %s622 = int_to_ptr.hbm [resolvable:$true] %s621
          %s623 = sshll.u32 [#allocation18], 4
          %s624 = int_to_ptr.vmem [resolvable:$true] %s623
          %626 = dma.hbm_to_vmem [thread:$0]  %s622, 128, %s624, [#allocation17]
        $region64: #{generator_forward.1} parent=11 // pred_fallthru
          _
        // Predicated region
        $region65: #{generator_forward.1} parent=11 // pred_check
          %p627 = pneg %p379
        $region66: #{generator_forward.1} parent=11 // pred_check_branch
          %629 = sbr.rel (%p627) target = $region68
        $region67: #{generator_forward.1} parent=11 // pred_region
          %631 = vsyncadd [#allocation20], 0
          %s633 = sshll.u32 %s15, 4
          %s634 = int_to_ptr.hbm [resolvable:$true] %s633
          %s635 = sshll.u32 [#allocation19], 4
          %s636 = int_to_ptr.vmem [resolvable:$true] %s635
          %638 = dma.hbm_to_vmem [thread:$0]  %s634, 128, %s636, [#allocation20]
        $region68: #{generator_forward.1} parent=11 // pred_fallthru
          _
        // Predicated region
        $region69: #{generator_forward.1} parent=11 // pred_check
          %p639 = pneg %p400
        $region70: #{generator_forward.1} parent=11 // pred_check_branch
          %641 = sbr.rel (%p639) target = $region72
        $region71: #{generator_forward.1} parent=11 // pred_region
          %643 = vsyncadd [#allocation20], 0
          %s645 = sshll.u32 %s16, 4
          %s646 = int_to_ptr.hbm [resolvable:$true] %s645
          %s647 = sshll.u32 [#allocation21], 4
          %s648 = int_to_ptr.vmem [resolvable:$true] %s647
          %650 = dma.hbm_to_vmem [thread:$0]  %s646, 128, %s648, [#allocation20]
        $region72: #{generator_forward.1} parent=11 // pred_fallthru
          _
        // Predicated region
        $region73: #{generator_forward.1} parent=11 // pred_check
          %p651 = pneg %p421
        $region74: #{generator_forward.1} parent=11 // pred_check_branch
          %653 = sbr.rel (%p651) target = $region76
        $region75: #{generator_forward.1} parent=11 // pred_region
          %655 = vsyncadd [#allocation23], 0
          %s656 = sshll.u32 %s17, 4
          %s657 = int_to_ptr.hbm [resolvable:$true] %s656
          %s658 = sshll.u32 [#allocation22], 4
          %s659 = int_to_ptr.vmem [resolvable:$true] %s658
          %664 = dma.hbm_to_vmem [thread:$0]  %s657, 16384, %s659, [#allocation23], 128, 128, 8
        $region76: #{generator_forward.1} parent=11 // pred_fallthru
          _
        // Predicated region
        $region77: #{generator_forward.1} parent=11 // pred_check
          %p665 = pneg %p442
        $region78: #{generator_forward.1} parent=11 // pred_check_branch
          %667 = sbr.rel (%p665) target = $region80
        $region79: #{generator_forward.1} parent=11 // pred_region
          %669 = vsyncadd [#allocation23], 0
          %s671 = sshll.u32 %s18, 4
          %s672 = int_to_ptr.hbm [resolvable:$true] %s671
          %s673 = sshll.u32 [#allocation24], 4
          %s674 = int_to_ptr.vmem [resolvable:$true] %s673
          %676 = dma.hbm_to_vmem [thread:$0]  %s672, 32, %s674, [#allocation23]
        $region80: #{generator_forward.1} parent=11 // pred_fallthru
          _
      $region12: #{generator_forward.1} parent=5 // pred_fallthru
        _
      %p677 = scmp.lt.s32.totalorder %s33, 4
      // Predicated region
      $region81: #{generator_forward.1} parent=5 // pred_check
        %p678 = pneg %p677
      $region82: #{generator_forward.1} parent=5 // pred_check_branch
        %680 = sbr.rel (%p678) target = $region84
      $region83: #{generator_forward.1} parent=5 // pred_region
        // Predicated region
        $region85: #{generator_forward.1} parent=83 // pred_check
          %p681 = pneg %p53
        $region86: #{generator_forward.1} parent=83 // pred_check_branch
          %683 = sbr.rel (%p681) target = $region88
        $region87: #{generator_forward.1} parent=83 // pred_region
          %p684 = scmp.lt.s32.totalorder %s33, 3
          %s685 = scalar_select %p684, %s33, 3
          %s686 = smul.addr %s685, 2
          %s687 = smul.addr %s686, 8
          %s688 = scalar_lea.vmem %s0, %s687
        $region88: #{generator_forward.1} parent=83 // pred_fallthru
          _
        // Predicated region
        $region89: #{generator_forward.1} parent=83 // pred_check
          %p689 = pneg %p79
        $region90: #{generator_forward.1} parent=83 // pred_check_branch
          %691 = sbr.rel (%p689) target = $region92
        $region91: #{generator_forward.1} parent=83 // pred_region
          %p692 = scmp.lt.s32.totalorder %s33, 3
          %s693 = scalar_select %p692, %s33, 3
          %s694 = smul.addr %s693, 2
          %s695 = smul.addr %s694, 8
          %s696 = scalar_lea.vmem %s1, %s695
        $region92: #{generator_forward.1} parent=83 // pred_fallthru
          _
      $region84: #{generator_forward.1} parent=5 // pred_fallthru
        _
      %p697 = scmp.le.s32.totalorder 1, %s33
      %p698 = scmp.lt.s32.totalorder %s33, 5
      %p699 = pnand %p697, %p698
      %p700 = pneg %p699
      // Predicated region
      $region93: #{generator_forward.1} parent=5 // pred_check
        _
      $region94: #{generator_forward.1} parent=5 // pred_check_branch
        %702 = sbr.rel (%p699) target = $region96
      $region95: #{generator_forward.1} parent=5 // pred_region
        %s703 = ssub.s32 %s33, 1
        // Predicated region
        $region97: #{generator_forward.1} parent=95 // pred_check
          %p704 = pneg %p106
        $region98: #{generator_forward.1} parent=95 // pred_check_branch
          %706 = sbr.rel (%p704) target = $region100
        $region99: #{generator_forward.1} parent=95 // pred_region
          %708 = dma.done [#allocation3], 64
        $region100: #{generator_forward.1} parent=95 // pred_fallthru
          _
        // Predicated region
        $region101: #{generator_forward.1} parent=95 // pred_check
          %p709 = pneg %p148
        $region102: #{generator_forward.1} parent=95 // pred_check_branch
          %711 = sbr.rel (%p709) target = $region104
        $region103: #{generator_forward.1} parent=95 // pred_region
          %713 = dma.done [#allocation5], 16
        $region104: #{generator_forward.1} parent=95 // pred_fallthru
          _
        // Predicated region
        $region105: #{generator_forward.1} parent=95 // pred_check
          %p714 = pneg %p169
        $region106: #{generator_forward.1} parent=95 // pred_check_branch
          %716 = sbr.rel (%p714) target = $region108
        $region107: #{generator_forward.1} parent=95 // pred_region
          %718 = dma.done [#allocation5], 2048
        $region108: #{generator_forward.1} parent=95 // pred_fallthru
          _
        // Predicated region
        $region109: #{generator_forward.1} parent=95 // pred_check
          %p719 = pneg %p211
        $region110: #{generator_forward.1} parent=95 // pred_check_branch
          %721 = sbr.rel (%p719) target = $region112
        $region111: #{generator_forward.1} parent=95 // pred_region
          %723 = dma.done [#allocation8], 32
        $region112: #{generator_forward.1} parent=95 // pred_fallthru
          _
        // Predicated region
        $region113: #{generator_forward.1} parent=95 // pred_check
          %p724 = pneg %p232
        $region114: #{generator_forward.1} parent=95 // pred_check_branch
          %726 = sbr.rel (%p724) target = $region116
        $region115: #{generator_forward.1} parent=95 // pred_region
          %728 = dma.done [#allocation8], 32
        $region116: #{generator_forward.1} parent=95 // pred_fallthru
          _
        // Predicated region
        $region117: #{generator_forward.1} parent=95 // pred_check
          %p729 = pneg %p253
        $region118: #{generator_forward.1} parent=95 // pred_check_branch
          %731 = sbr.rel (%p729) target = $region120
        $region119: #{generator_forward.1} parent=95 // pred_region
          %733 = dma.done [#allocation11], 8192
        $region120: #{generator_forward.1} parent=95 // pred_fallthru
          _
        // Predicated region
        $region121: #{generator_forward.1} parent=95 // pred_check
          %p734 = pneg %p274
        $region122: #{generator_forward.1} parent=95 // pred_check_branch
          %736 = sbr.rel (%p734) target = $region124
        $region123: #{generator_forward.1} parent=95 // pred_region
          %738 = dma.done [#allocation11], 64
        $region124: #{generator_forward.1} parent=95 // pred_fallthru
          _
        // Predicated region
        $region125: #{generator_forward.1} parent=95 // pred_check
          %p739 = pneg %p295
        $region126: #{generator_forward.1} parent=95 // pred_check_branch
          %741 = sbr.rel (%p739) target = $region128
        $region127: #{generator_forward.1} parent=95 // pred_region
          %743 = dma.done [#allocation14], 64
        $region128: #{generator_forward.1} parent=95 // pred_fallthru
          _
        // Predicated region
        $region129: #{generator_forward.1} parent=95 // pred_check
          %p744 = pneg %p316
        $region130: #{generator_forward.1} parent=95 // pred_check_branch
          %746 = sbr.rel (%p744) target = $region132
        $region131: #{generator_forward.1} parent=95 // pred_region
          %748 = dma.done [#allocation14], 64
        $region132: #{generator_forward.1} parent=95 // pred_fallthru
          _
        // Predicated region
        $region133: #{generator_forward.1} parent=95 // pred_check
          %p749 = pneg %p337
        $region134: #{generator_forward.1} parent=95 // pred_check_branch
          %751 = sbr.rel (%p749) target = $region136
        $region135: #{generator_forward.1} parent=95 // pred_region
          %753 = dma.done [#allocation17], 32768
        $region136: #{generator_forward.1} parent=95 // pred_fallthru
          _
        // Predicated region
        $region137: #{generator_forward.1} parent=95 // pred_check
          %p754 = pneg %p358
        $region138: #{generator_forward.1} parent=95 // pred_check_branch
          %756 = sbr.rel (%p754) target = $region140
        $region139: #{generator_forward.1} parent=95 // pred_region
          %758 = dma.done [#allocation17], 128
        $region140: #{generator_forward.1} parent=95 // pred_fallthru
          _
        // Predicated region
        $region141: #{generator_forward.1} parent=95 // pred_check
          %p759 = pneg %p379
        $region142: #{generator_forward.1} parent=95 // pred_check_branch
          %761 = sbr.rel (%p759) target = $region144
        $region143: #{generator_forward.1} parent=95 // pred_region
          %763 = dma.done [#allocation20], 128
        $region144: #{generator_forward.1} parent=95 // pred_fallthru
          _
        // Predicated region
        $region145: #{generator_forward.1} parent=95 // pred_check
          %p764 = pneg %p400
        $region146: #{generator_forward.1} parent=95 // pred_check_branch
          %766 = sbr.rel (%p764) target = $region148
        $region147: #{generator_forward.1} parent=95 // pred_region
          %768 = dma.done [#allocation20], 128
        $region148: #{generator_forward.1} parent=95 // pred_fallthru
          _
        // Predicated region
        $region149: #{generator_forward.1} parent=95 // pred_check
          %p769 = pneg %p421
        $region150: #{generator_forward.1} parent=95 // pred_check_branch
          %771 = sbr.rel (%p769) target = $region152
        $region151: #{generator_forward.1} parent=95 // pred_region
          %773 = dma.done [#allocation23], 16384
        $region152: #{generator_forward.1} parent=95 // pred_fallthru
          _
        // Predicated region
        $region153: #{generator_forward.1} parent=95 // pred_check
          %p774 = pneg %p442
        $region154: #{generator_forward.1} parent=95 // pred_check_branch
          %776 = sbr.rel (%p774) target = $region156
        $region155: #{generator_forward.1} parent=95 // pred_region
          %778 = dma.done [#allocation23], 32
        $region156: #{generator_forward.1} parent=95 // pred_fallthru
          _
        %p779 = scmp.lt.s32.totalorder %s38, 3
        %s780 = scalar_select %p779, %s38, 3
        %s781 = smul.addr %s780, 2
        %s782 = smul.addr %s781, 8
        %s783 = scalar_lea.vmem %s0, %s782
        %p784 = pneg %p59
        %p785 = pneg %p56
        %p786 = scmp.lt.s32.totalorder %s38, 3
        %s787 = scalar_select %p786, %s38, 3
        %s788 = smul.addr %s787, 2
        %s789 = smul.addr %s788, 8
        %s790 = scalar_lea.vmem %s1, %s789
        %p791 = pneg %p85
        %p792 = pneg %p82
        %p793 = pneg %p106
        %p794 = pneg %p103
        %p795 = pneg %p127
        %p796 = pneg %p124
        %p797 = pneg %p148
        %p798 = pneg %p145
        %p799 = pneg %p169
        %p800 = pneg %p166
        %p801 = pneg %p190
        %p802 = pneg %p187
        %p803 = pneg %p211
        %p804 = pneg %p208
        %p805 = pneg %p232
        %p806 = pneg %p229
        %p807 = pneg %p253
        %p808 = pneg %p250
        %p809 = pneg %p274
        %p810 = pneg %p271
        %p811 = pneg %p295
        %p812 = pneg %p292
        %p813 = pneg %p316
        %p814 = pneg %p313
        %p815 = pneg %p337
        %p816 = pneg %p334
        %p817 = pneg %p358
        %p818 = pneg %p355
        %p819 = pneg %p379
        %p820 = pneg %p376
        %p821 = pneg %p400
        %p822 = pneg %p397
        %p823 = pneg %p421
        %p824 = pneg %p418
        %p825 = pneg %p442
        %p826 = pneg %p439
        %p827 = pneg %p468
        %p828 = pneg %p465
        %p829 = scmp.lt.s32.totalorder %s38, 3
        %s830 = scalar_select %p829, %s38, 3
        %s831 = smul.addr %s830, 4
        %s832 = smul.addr %s831, 8
        %s833 = scalar_lea.vmem %s19, %s832
        %p834 = scmp.lt.s32.totalorder %s38, 3
        %s835 = scalar_select %p834, %s38, 3
        %s836 = smul.addr %s835, 2
        %s837 = smul.addr %s836, 8
        %s838 = scalar_lea.vmem %s0, %s837
        %p839 = scmp.lt.s32.totalorder %s38, 3
        %s840 = scalar_select %p839, %s38, 3
        %s841 = smul.addr %s840, 2
        %s842 = smul.addr %s841, 8
        %s843 = scalar_lea.vmem %s1, %s842
        %p844 = scmp.lt.s32.totalorder %s38, 3
        %s845 = scalar_select %p844, %s38, 3
        %s846 = smul.addr %s845, 4
        %s847 = smul.addr %s846, 8
        %s848 = scalar_lea.vmem %s19, %s847
        %v850 = vld [vmem:[%s838] sm:$0xff]
        %v851 = vld [vmem:[%s838 + $0x8] sm:$0xff]
        %v852 = vlaneseq
        %v853 = vand.u32 %v852, 127
        %854 = vset.pattern.permute.xlu0 0
        %855 = vperm.xlu0 %854, %v850
        %v856 = vpop.permute.xlu0 %855
        %857 = vset.pattern.permute.xlu0 0
        %858 = vperm.xlu0 %857, %v851
        %v859 = vpop.permute.xlu0 %858
        %vm860 = vcmp.eq.s32.totalorder %v856, %v853
        %vm861 = vcmp.eq.s32.totalorder %v859, %v853
        %v862 = vsel %vm860, 1, 0
        %v863 = vsel %vm861, 1, 0
        %v864 = vcvt.s32.f32 %v862
        %v865 = vcvt.s32.f32 %v863
        %v866 = vpack.c.bf16 %v865, %v864
        %v867 = vld [vmem:[%s843] sm:$0xff]
        %v868 = vld [vmem:[%s843 + $0x8] sm:$0xff]
        %v869 = vpack.c.bf16 %v868, %v867
        %v870 = vld [vmem:[#allocation2] sm:$0xf]
        %v871 = vld [vmem:[%s3] sm:$0xf]
        %v872 = vld [vmem:[%s3 + $0x4] sm:$0xf]
        %v873 = vld [vmem:[%s3 + $0x8] sm:$0xf]
        %v874 = vld [vmem:[%s3 + $0xc] sm:$0xf]
        %v879 = vunpack.c.l.b16 %v871
        %v880 = vunpack.c.l.b16 %v872
        %v881 = vunpack.c.l.b16 %v873
        %v882 = vunpack.c.l.b16 %v874
        %v883 = vpack.c.b16 %v880, %v879
        %v884 = vpack.c.b16 %v882, %v881
        %vm887 = vcmask 261120
        %v889 = vsel %vm887, %v869, 0
        %891 = vmatpush.bf16.msra.mxu0 0
        %892 = vmatpush.bf16.msra.mxu0 0
        %893 = vmatpush.bf16.msra.mxu0 0
        %894 = vmatpush.bf16.msra.mxu0 0
        %895 = vmatpush.bf16.msra.mxu0 0
        %896 = vmatpush.bf16.msra.mxu0 0
        %897 = vmatpush.bf16.msra.mxu0 %v884
        %898 = vmatpush.bf16.msra.mxu0 %v883
        %899 = vmatmul.bf16.gmra.mxu0 %v889
        %v900 = vpop.f32.mrf.mxu0
        %v901 = vadd.f32 0.0, %v900
        %v902 = vpop.f32.mrf.mxu0
        %v903 = vadd.f32 0.0, %v902
        %904 = vdwg.mxu0
        %vm905 = vcmask 64512
        %v907 = vsel %vm905, %v866, 0
        %vm909 = vcmask 1043456
        %v911 = vsel %vm909, %v870, 0
        %913 = vmatpush.bf16.msra.mxu0 0
        %914 = vmatpush.bf16.msra.mxu0 0
        %915 = vmatpush.bf16.msra.mxu0 0
        %916 = vmatpush.bf16.msra.mxu0 0
        %917 = vmatpush.bf16.msra.mxu0 0
        %918 = vmatpush.bf16.msra.mxu0 0
        %919 = vmatpush.bf16.msra.mxu0 0
        %920 = vmatpush.bf16.msra.mxu0 %v911
        %921 = vmatmul.bf16.gmra.mxu0 %v907
        %v922 = vpop.f32.mrf.mxu0
        %v923 = vadd.f32 %v901, %v922
        %v924 = vpop.f32.mrf.mxu0
        %v925 = vadd.f32 %v903, %v924
        %926 = vdwg.mxu0
        %v927 = vld [vmem:[#allocation4] sm:$0x1]
        %v929 = vperm.slane %v927, 0
        %v931 = vadd.f32 %v923, %v929
        %v932 = vadd.f32 %v925, %v929
        %vm933 = vcmp.gt.f32.partialorder %v931, 0.0
        %vm934 = vcmp.gt.f32.partialorder %v932, 0.0
        %v935 = vmul.f32 %v931, 0.2
        %v936 = vmul.f32 %v932, 0.2
        %v937 = vsel %vm933, %v931, %v935
        %v938 = vsel %vm934, %v932, %v936
        %v939 = vpack.c.bf16 %v938, %v937
        %v940 = vld [vmem:[#allocation6] sm:$0xff]
        %v941 = vld [vmem:[#allocation6 + $0x8] sm:$0xff]
        %v942 = vld [vmem:[#allocation6 + $0x10] sm:$0xff]
        %v943 = vld [vmem:[#allocation6 + $0x18] sm:$0xff]
        %v944 = vld [vmem:[#allocation6 + $0x20] sm:$0xff]
        %v945 = vld [vmem:[#allocation6 + $0x28] sm:$0xff]
        %v946 = vld [vmem:[#allocation6 + $0x30] sm:$0xff]
        %v947 = vld [vmem:[#allocation6 + $0x38] sm:$0xff]
        %v948 = vld [vmem:[#allocation6 + $0x40] sm:$0xff]
        %v949 = vld [vmem:[#allocation6 + $0x48] sm:$0xff]
        %v950 = vld [vmem:[#allocation6 + $0x50] sm:$0xff]
        %v951 = vld [vmem:[#allocation6 + $0x58] sm:$0xff]
        %v952 = vld [vmem:[#allocation6 + $0x60] sm:$0xff]
        %v953 = vld [vmem:[#allocation6 + $0x68] sm:$0xff]
        %v954 = vld [vmem:[#allocation6 + $0x70] sm:$0xff]
        %v955 = vld [vmem:[#allocation6 + $0x78] sm:$0xff]
        %v956 = vld [vmem:[%s6] sm:$0x3]
        %v958 = vperm.slane %v956, 0
        %v959 = vperm.slane %v956, 1
        %v978 = vunpack.c.l.b16 %v940
        %v979 = vunpack.c.h.b16 %v940
        %v980 = vunpack.c.l.b16 %v941
        %v981 = vunpack.c.h.b16 %v941
        %v982 = vunpack.c.l.b16 %v942
        %v983 = vunpack.c.h.b16 %v942
        %v984 = vunpack.c.l.b16 %v943
        %v985 = vunpack.c.h.b16 %v943
        %v986 = vunpack.c.l.b16 %v944
        %v987 = vunpack.c.h.b16 %v944
        %v988 = vunpack.c.l.b16 %v945
        %v989 = vunpack.c.h.b16 %v945
        %v990 = vunpack.c.l.b16 %v946
        %v991 = vunpack.c.h.b16 %v946
        %v992 = vunpack.c.l.b16 %v947
        %v993 = vunpack.c.h.b16 %v947
        %v994 = vunpack.c.l.b16 %v948
        %v995 = vunpack.c.h.b16 %v948
        %v996 = vunpack.c.l.b16 %v949
        %v997 = vunpack.c.h.b16 %v949
        %v998 = vunpack.c.l.b16 %v950
        %v999 = vunpack.c.h.b16 %v950
        %v1000 = vunpack.c.l.b16 %v951
        %v1001 = vunpack.c.h.b16 %v951
        %v1002 = vunpack.c.l.b16 %v952
        %v1003 = vunpack.c.h.b16 %v952
        %v1004 = vunpack.c.l.b16 %v953
        %v1005 = vunpack.c.h.b16 %v953
        %v1006 = vunpack.c.l.b16 %v954
        %v1007 = vunpack.c.h.b16 %v954
        %v1008 = vunpack.c.l.b16 %v955
        %v1009 = vunpack.c.h.b16 %v955
        %v1010 = vpack.c.b16 %v980, %v978
        %v1011 = vpack.c.b16 %v981, %v979
        %v1012 = vpack.c.b16 %v984, %v982
        %v1013 = vpack.c.b16 %v985, %v983
        %v1014 = vpack.c.b16 %v988, %v986
        %v1015 = vpack.c.b16 %v989, %v987
        %v1016 = vpack.c.b16 %v992, %v990
        %v1017 = vpack.c.b16 %v993, %v991
        %v1018 = vpack.c.b16 %v996, %v994
        %v1019 = vpack.c.b16 %v997, %v995
        %v1020 = vpack.c.b16 %v1000, %v998
        %v1021 = vpack.c.b16 %v1001, %v999
        %v1022 = vpack.c.b16 %v1004, %v1002
        %v1023 = vpack.c.b16 %v1005, %v1003
        %v1024 = vpack.c.b16 %v1008, %v1006
        %v1025 = vpack.c.b16 %v1009, %v1007
        %1042 = vmatpush.bf16.msra.mxu0 %v1024
        %1043 = vmatpush.bf16.msra.mxu0 %v1022
        %1044 = vmatpush.bf16.msra.mxu0 %v1020
        %1045 = vmatpush.bf16.msra.mxu0 %v1018
        %1046 = vmatpush.bf16.msra.mxu0 %v1016
        %1047 = vmatpush.bf16.msra.mxu0 %v1014
        %1048 = vmatpush.bf16.msra.mxu0 %v1012
        %1049 = vmatpush.bf16.msra.mxu0 %v1010
        %1050 = vmatmul.bf16.gmra.mxu0 %v939
        %v1051 = vpop.f32.mrf.mxu0
        %v1052 = vadd.f32 %v958, %v1051
        %v1053 = vpop.f32.mrf.mxu0
        %v1054 = vadd.f32 %v958, %v1053
        %1055 = vdwg.mxu0
        %1056 = vmatpush.bf16.msra.mxu0 %v1025
        %1057 = vmatpush.bf16.msra.mxu0 %v1023
        %1058 = vmatpush.bf16.msra.mxu0 %v1021
        %1059 = vmatpush.bf16.msra.mxu0 %v1019
        %1060 = vmatpush.bf16.msra.mxu0 %v1017
        %1061 = vmatpush.bf16.msra.mxu0 %v1015
        %1062 = vmatpush.bf16.msra.mxu0 %v1013
        %1063 = vmatpush.bf16.msra.mxu0 %v1011
        %1064 = vmatmul.bf16.gmra.mxu0 %v939
        %v1065 = vpop.f32.mrf.mxu0
        %v1066 = vadd.f32 %v959, %v1065
        %v1067 = vpop.f32.mrf.mxu0
        %v1068 = vadd.f32 %v959, %v1067
        %1069 = vdwg.mxu0
        %v1070 = vld [vmem:[#allocation7] sm:$0x3]
        %v1071 = vld [vmem:[#allocation9] sm:$0x3]
        %v1072 = vadd.f32 %v1052, %v1054
        %v1073 = vrot.slane %v1072, 4
        %v1074 = vadd.f32 %v1072, %v1073
        %v1075 = vrot.slane %v1074, 2
        %v1076 = vadd.f32 %v1074, %v1075
        %v1077 = vrot.slane %v1076, 1
        %v1078 = vadd.f32 %v1076, %v1077
        %v1079 = vadd.f32 %v1066, %v1068
        %v1080 = vrot.slane %v1079, 4
        %v1081 = vadd.f32 %v1079, %v1080
        %v1082 = vrot.slane %v1081, 2
        %v1083 = vadd.f32 %v1081, %v1082
        %v1084 = vrot.slane %v1083, 1
        %v1085 = vadd.f32 %v1083, %v1084
        %v1086 = vrcp.pop 16.0
        %v1087 = vmul.f32 16.0, %v1086
        %v1088 = vsub.f32 1.0, %v1087
        %v1089 = vmul.f32 %v1086, %v1088
        %v1090 = vadd.f32 %v1086, %v1089
        %vm1091 = vweird.f32 %v1086
        %v1092 = vsel %vm1091, %v1086, %v1090
        %v1093 = vmul.f32 %v1078, %v1092
        %v1094 = vmul.f32 %v1085, %v1092
        %v1095 = vmul.f32 %v1052, %v1052
        %v1096 = vmul.f32 %v1066, %v1066
        %v1097 = vmul.f32 %v1054, %v1054
        %v1098 = vmul.f32 %v1068, %v1068
        %v1099 = vadd.f32 %v1095, %v1097
        %v1100 = vrot.slane %v1099, 4
        %v1101 = vadd.f32 %v1099, %v1100
        %v1102 = vrot.slane %v1101, 2
        %v1103 = vadd.f32 %v1101, %v1102
        %v1104 = vrot.slane %v1103, 1
        %v1105 = vadd.f32 %v1103, %v1104
        %v1106 = vadd.f32 %v1096, %v1098
        %v1107 = vrot.slane %v1106, 4
        %v1108 = vadd.f32 %v1106, %v1107
        %v1109 = vrot.slane %v1108, 2
        %v1110 = vadd.f32 %v1108, %v1109
        %v1111 = vrot.slane %v1110, 1
        %v1112 = vadd.f32 %v1110, %v1111
        %v1113 = vmul.f32 %v1105, %v1092
        %v1114 = vmul.f32 %v1112, %v1092
        %v1115 = vmul.f32 %v1093, %v1093
        %v1116 = vmul.f32 %v1094, %v1094
        %v1117 = vsub.f32 %v1113, %v1115
        %v1118 = vsub.f32 %v1114, %v1116
        %v1119 = vadd.f32 %v1117, 0.8
        %v1120 = vadd.f32 %v1118, 0.8
        %v1121 = vrsqrt.pop %v1119
        %v1122 = vmul.f32 %v1121, %v1119
        %v1123 = vmul.f32 %v1122, %v1121
        %v1124 = vmul.f32 0.5, %v1123
        %v1125 = vsub.f32 1.5, %v1124
        %v1126 = vmul.f32 %v1121, %v1125
        %vm1127 = vweird.f32 %v1119
        %vm1128 = vweird.f32 %v1121
        %vm1129 = vmor %vm1127, %vm1128
        %v1130 = vsel %vm1129, %v1121, %v1126
        %v1131 = vrsqrt.pop %v1120
        %v1132 = vmul.f32 %v1131, %v1120
        %v1133 = vmul.f32 %v1132, %v1131
        %v1134 = vmul.f32 0.5, %v1133
        %v1135 = vsub.f32 1.5, %v1134
        %v1136 = vmul.f32 %v1131, %v1135
        %vm1137 = vweird.f32 %v1120
        %vm1138 = vweird.f32 %v1131
        %vm1139 = vmor %vm1137, %vm1138
        %v1140 = vsel %vm1139, %v1131, %v1136
        %v1142 = vperm.slane %v1070, 0
        %v1143 = vperm.slane %v1070, 1
        %v1146 = vmul.f32 %v1130, %v1142
        %v1147 = vmul.f32 %v1140, %v1143
        %v1148 = vmul.f32 %v1093, %v1146
        %v1149 = vmul.f32 %v1094, %v1147
        %v1152 = vrot.slane %v1149, 7
        %vm1153 = vcmask 1040384
        %v1154 = vsel %vm1153, %v1148, %v1152
        %v1156 = vsub.f32 %v1071, %v1154
        %v1157 = vperm.slane %v1146, 0
        %v1158 = vperm.slane %v1147, 0
        %v1159 = vmul.f32 %v1052, %v1157
        %v1160 = vmul.f32 %v1066, %v1158
        %v1161 = vmul.f32 %v1054, %v1157
        %v1162 = vmul.f32 %v1068, %v1158
        %v1164 = vperm.slane %v1156, 0
        %v1165 = vperm.slane %v1156, 1
        %v1168 = vadd.f32 %v1159, %v1164
        %v1169 = vadd.f32 %v1160, %v1165
        %v1170 = vadd.f32 %v1161, %v1164
        %v1171 = vadd.f32 %v1162, %v1165
        %vm1172 = vcmp.gt.f32.partialorder %v1168, 0.0
        %vm1173 = vcmp.gt.f32.partialorder %v1169, 0.0
        %vm1174 = vcmp.gt.f32.partialorder %v1170, 0.0
        %vm1175 = vcmp.gt.f32.partialorder %v1171, 0.0
        %v1176 = vmul.f32 %v1168, 0.2
        %v1177 = vmul.f32 %v1169, 0.2
        %v1178 = vmul.f32 %v1170, 0.2
        %v1179 = vmul.f32 %v1171, 0.2
        %v1180 = vsel %vm1172, %v1168, %v1176
        %v1181 = vsel %vm1173, %v1169, %v1177
        %v1182 = vsel %vm1174, %v1170, %v1178
        %v1183 = vsel %vm1175, %v1171, %v1179
        %v1184 = vpack.c.bf16 %v1182, %v1180
        %v1185 = vpack.c.bf16 %v1183, %v1181
        %v1186 = vld [vmem:[#allocation10] sm:$0xff]
        %v1187 = vld [vmem:[#allocation10 + $0x8] sm:$0xff]
        %v1188 = vld [vmem:[#allocation10 + $0x10] sm:$0xff]
        %v1189 = vld [vmem:[#allocation10 + $0x18] sm:$0xff]
        %v1190 = vld [vmem:[#allocation10 + $0x20] sm:$0xff]
        %v1191 = vld [vmem:[#allocation10 + $0x28] sm:$0xff]
        %v1192 = vld [vmem:[#allocation10 + $0x30] sm:$0xff]
        %v1193 = vld [vmem:[#allocation10 + $0x38] sm:$0xff]
        %v1194 = vld [vmem:[#allocation10 + $0x40] sm:$0xff]
        %v1195 = vld [vmem:[#allocation10 + $0x48] sm:$0xff]
        %v1196 = vld [vmem:[#allocation10 + $0x50] sm:$0xff]
        %v1197 = vld [vmem:[#allocation10 + $0x58] sm:$0xff]
        %v1198 = vld [vmem:[#allocation10 + $0x60] sm:$0xff]
        %v1199 = vld [vmem:[#allocation10 + $0x68] sm:$0xff]
        %v1200 = vld [vmem:[#allocation10 + $0x70] sm:$0xff]
        %v1201 = vld [vmem:[#allocation10 + $0x78] sm:$0xff]
        %v1202 = vld [vmem:[#allocation10 + $0x80] sm:$0xff]
        %v1203 = vld [vmem:[#allocation10 + $0x88] sm:$0xff]
        %v1204 = vld [vmem:[#allocation10 + $0x90] sm:$0xff]
        %v1205 = vld [vmem:[#allocation10 + $0x98] sm:$0xff]
        %v1206 = vld [vmem:[#allocation10 + $0xa0] sm:$0xff]
        %v1207 = vld [vmem:[#allocation10 + $0xa8] sm:$0xff]
        %v1208 = vld [vmem:[#allocation10 + $0xb0] sm:$0xff]
        %v1209 = vld [vmem:[#allocation10 + $0xb8] sm:$0xff]
        %v1210 = vld [vmem:[#allocation10 + $0xc0] sm:$0xff]
        %v1211 = vld [vmem:[#allocation10 + $0xc8] sm:$0xff]
        %v1212 = vld [vmem:[#allocation10 + $0xd0] sm:$0xff]
        %v1213 = vld [vmem:[#allocation10 + $0xd8] sm:$0xff]
        %v1214 = vld [vmem:[#allocation10 + $0xe0] sm:$0xff]
        %v1215 = vld [vmem:[#allocation10 + $0xe8] sm:$0xff]
        %v1216 = vld [vmem:[#allocation10 + $0xf0] sm:$0xff]
        %v1217 = vld [vmem:[#allocation10 + $0xf8] sm:$0xff]
        %v1218 = vld [vmem:[#allocation10 + $0x100] sm:$0xff]
        %v1219 = vld [vmem:[#allocation10 + $0x108] sm:$0xff]
        %v1220 = vld [vmem:[#allocation10 + $0x110] sm:$0xff]
        %v1221 = vld [vmem:[#allocation10 + $0x118] sm:$0xff]
        %v1222 = vld [vmem:[#allocation10 + $0x120] sm:$0xff]
        %v1223 = vld [vmem:[#allocation10 + $0x128] sm:$0xff]
        %v1224 = vld [vmem:[#allocation10 + $0x130] sm:$0xff]
        %v1225 = vld [vmem:[#allocation10 + $0x138] sm:$0xff]
        %v1226 = vld [vmem:[#allocation10 + $0x140] sm:$0xff]
        %v1227 = vld [vmem:[#allocation10 + $0x148] sm:$0xff]
        %v1228 = vld [vmem:[#allocation10 + $0x150] sm:$0xff]
        %v1229 = vld [vmem:[#allocation10 + $0x158] sm:$0xff]
        %v1230 = vld [vmem:[#allocation10 + $0x160] sm:$0xff]
        %v1231 = vld [vmem:[#allocation10 + $0x168] sm:$0xff]
        %v1232 = vld [vmem:[#allocation10 + $0x170] sm:$0xff]
        %v1233 = vld [vmem:[#allocation10 + $0x178] sm:$0xff]
        %v1234 = vld [vmem:[#allocation10 + $0x180] sm:$0xff]
        %v1235 = vld [vmem:[#allocation10 + $0x188] sm:$0xff]
        %v1236 = vld [vmem:[#allocation10 + $0x190] sm:$0xff]
        %v1237 = vld [vmem:[#allocation10 + $0x198] sm:$0xff]
        %v1238 = vld [vmem:[#allocation10 + $0x1a0] sm:$0xff]
        %v1239 = vld [vmem:[#allocation10 + $0x1a8] sm:$0xff]
        %v1240 = vld [vmem:[#allocation10 + $0x1b0] sm:$0xff]
        %v1241 = vld [vmem:[#allocation10 + $0x1b8] sm:$0xff]
        %v1242 = vld [vmem:[#allocation10 + $0x1c0] sm:$0xff]
        %v1243 = vld [vmem:[#allocation10 + $0x1c8] sm:$0xff]
        %v1244 = vld [vmem:[#allocation10 + $0x1d0] sm:$0xff]
        %v1245 = vld [vmem:[#allocation10 + $0x1d8] sm:$0xff]
        %v1246 = vld [vmem:[#allocation10 + $0x1e0] sm:$0xff]
        %v1247 = vld [vmem:[#allocation10 + $0x1e8] sm:$0xff]
        %v1248 = vld [vmem:[#allocation10 + $0x1f0] sm:$0xff]
        %v1249 = vld [vmem:[#allocation10 + $0x1f8] sm:$0xff]
        %v1250 = vld [vmem:[#allocation12] sm:$0xf]
        %v1252 = vperm.slane %v1250, 0
        %v1253 = vperm.slane %v1250, 1
        %v1254 = vperm.slane %v1250, 2
        %v1255 = vperm.slane %v1250, 3
        %v1324 = vunpack.c.l.b16 %v1186
        %v1325 = vunpack.c.h.b16 %v1186
        %v1326 = vunpack.c.l.b16 %v1187
        %v1327 = vunpack.c.h.b16 %v1187
        %v1328 = vunpack.c.l.b16 %v1188
        %v1329 = vunpack.c.h.b16 %v1188
        %v1330 = vunpack.c.l.b16 %v1189
        %v1331 = vunpack.c.h.b16 %v1189
        %v1332 = vunpack.c.l.b16 %v1190
        %v1333 = vunpack.c.h.b16 %v1190
        %v1334 = vunpack.c.l.b16 %v1191
        %v1335 = vunpack.c.h.b16 %v1191
        %v1336 = vunpack.c.l.b16 %v1192
        %v1337 = vunpack.c.h.b16 %v1192
        %v1338 = vunpack.c.l.b16 %v1193
        %v1339 = vunpack.c.h.b16 %v1193
        %v1340 = vunpack.c.l.b16 %v1194
        %v1341 = vunpack.c.h.b16 %v1194
        %v1342 = vunpack.c.l.b16 %v1195
        %v1343 = vunpack.c.h.b16 %v1195
        %v1344 = vunpack.c.l.b16 %v1196
        %v1345 = vunpack.c.h.b16 %v1196
        %v1346 = vunpack.c.l.b16 %v1197
        %v1347 = vunpack.c.h.b16 %v1197
        %v1348 = vunpack.c.l.b16 %v1198
        %v1349 = vunpack.c.h.b16 %v1198
        %v1350 = vunpack.c.l.b16 %v1199
        %v1351 = vunpack.c.h.b16 %v1199
        %v1352 = vunpack.c.l.b16 %v1200
        %v1353 = vunpack.c.h.b16 %v1200
        %v1354 = vunpack.c.l.b16 %v1201
        %v1355 = vunpack.c.h.b16 %v1201
        %v1356 = vunpack.c.l.b16 %v1202
        %v1357 = vunpack.c.h.b16 %v1202
        %v1358 = vunpack.c.l.b16 %v1203
        %v1359 = vunpack.c.h.b16 %v1203
        %v1360 = vunpack.c.l.b16 %v1204
        %v1361 = vunpack.c.h.b16 %v1204
        %v1362 = vunpack.c.l.b16 %v1205
        %v1363 = vunpack.c.h.b16 %v1205
        %v1364 = vunpack.c.l.b16 %v1206
        %v1365 = vunpack.c.h.b16 %v1206
        %v1366 = vunpack.c.l.b16 %v1207
        %v1367 = vunpack.c.h.b16 %v1207
        %v1368 = vunpack.c.l.b16 %v1208
        %v1369 = vunpack.c.h.b16 %v1208
        %v1370 = vunpack.c.l.b16 %v1209
        %v1371 = vunpack.c.h.b16 %v1209
        %v1372 = vunpack.c.l.b16 %v1210
        %v1373 = vunpack.c.h.b16 %v1210
        %v1374 = vunpack.c.l.b16 %v1211
        %v1375 = vunpack.c.h.b16 %v1211
        %v1376 = vunpack.c.l.b16 %v1212
        %v1377 = vunpack.c.h.b16 %v1212
        %v1378 = vunpack.c.l.b16 %v1213
        %v1379 = vunpack.c.h.b16 %v1213
        %v1380 = vunpack.c.l.b16 %v1214
        %v1381 = vunpack.c.h.b16 %v1214
        %v1382 = vunpack.c.l.b16 %v1215
        %v1383 = vunpack.c.h.b16 %v1215
        %v1384 = vunpack.c.l.b16 %v1216
        %v1385 = vunpack.c.h.b16 %v1216
        %v1386 = vunpack.c.l.b16 %v1217
        %v1387 = vunpack.c.h.b16 %v1217
        %v1388 = vunpack.c.l.b16 %v1218
        %v1389 = vunpack.c.h.b16 %v1218
        %v1390 = vunpack.c.l.b16 %v1219
        %v1391 = vunpack.c.h.b16 %v1219
        %v1392 = vunpack.c.l.b16 %v1220
        %v1393 = vunpack.c.h.b16 %v1220
        %v1394 = vunpack.c.l.b16 %v1221
        %v1395 = vunpack.c.h.b16 %v1221
        %v1396 = vunpack.c.l.b16 %v1222
        %v1397 = vunpack.c.h.b16 %v1222
        %v1398 = vunpack.c.l.b16 %v1223
        %v1399 = vunpack.c.h.b16 %v1223
        %v1400 = vunpack.c.l.b16 %v1224
        %v1401 = vunpack.c.h.b16 %v1224
        %v1402 = vunpack.c.l.b16 %v1225
        %v1403 = vunpack.c.h.b16 %v1225
        %v1404 = vunpack.c.l.b16 %v1226
        %v1405 = vunpack.c.h.b16 %v1226
        %v1406 = vunpack.c.l.b16 %v1227
        %v1407 = vunpack.c.h.b16 %v1227
        %v1408 = vunpack.c.l.b16 %v1228
        %v1409 = vunpack.c.h.b16 %v1228
        %v1410 = vunpack.c.l.b16 %v1229
        %v1411 = vunpack.c.h.b16 %v1229
        %v1412 = vunpack.c.l.b16 %v1230
        %v1413 = vunpack.c.h.b16 %v1230
        %v1414 = vunpack.c.l.b16 %v1231
        %v1415 = vunpack.c.h.b16 %v1231
        %v1416 = vunpack.c.l.b16 %v1232
        %v1417 = vunpack.c.h.b16 %v1232
        %v1418 = vunpack.c.l.b16 %v1233
        %v1419 = vunpack.c.h.b16 %v1233
        %v1420 = vunpack.c.l.b16 %v1234
        %v1421 = vunpack.c.h.b16 %v1234
        %v1422 = vunpack.c.l.b16 %v1235
        %v1423 = vunpack.c.h.b16 %v1235
        %v1424 = vunpack.c.l.b16 %v1236
        %v1425 = vunpack.c.h.b16 %v1236
        %v1426 = vunpack.c.l.b16 %v1237
        %v1427 = vunpack.c.h.b16 %v1237
        %v1428 = vunpack.c.l.b16 %v1238
        %v1429 = vunpack.c.h.b16 %v1238
        %v1430 = vunpack.c.l.b16 %v1239
        %v1431 = vunpack.c.h.b16 %v1239
        %v1432 = vunpack.c.l.b16 %v1240
        %v1433 = vunpack.c.h.b16 %v1240
        %v1434 = vunpack.c.l.b16 %v1241
        %v1435 = vunpack.c.h.b16 %v1241
        %v1436 = vunpack.c.l.b16 %v1242
        %v1437 = vunpack.c.h.b16 %v1242
        %v1438 = vunpack.c.l.b16 %v1243
        %v1439 = vunpack.c.h.b16 %v1243
        %v1440 = vunpack.c.l.b16 %v1244
        %v1441 = vunpack.c.h.b16 %v1244
        %v1442 = vunpack.c.l.b16 %v1245
        %v1443 = vunpack.c.h.b16 %v1245
        %v1444 = vunpack.c.l.b16 %v1246
        %v1445 = vunpack.c.h.b16 %v1246
        %v1446 = vunpack.c.l.b16 %v1247
        %v1447 = vunpack.c.h.b16 %v1247
        %v1448 = vunpack.c.l.b16 %v1248
        %v1449 = vunpack.c.h.b16 %v1248
        %v1450 = vunpack.c.l.b16 %v1249
        %v1451 = vunpack.c.h.b16 %v1249
        %v1452 = vpack.c.b16 %v1328, %v1324
        %v1453 = vpack.c.b16 %v1329, %v1325
        %v1454 = vpack.c.b16 %v1330, %v1326
        %v1455 = vpack.c.b16 %v1331, %v1327
        %v1456 = vpack.c.b16 %v1336, %v1332
        %v1457 = vpack.c.b16 %v1337, %v1333
        %v1458 = vpack.c.b16 %v1338, %v1334
        %v1459 = vpack.c.b16 %v1339, %v1335
        %v1460 = vpack.c.b16 %v1344, %v1340
        %v1461 = vpack.c.b16 %v1345, %v1341
        %v1462 = vpack.c.b16 %v1346, %v1342
        %v1463 = vpack.c.b16 %v1347, %v1343
        %v1464 = vpack.c.b16 %v1352, %v1348
        %v1465 = vpack.c.b16 %v1353, %v1349
        %v1466 = vpack.c.b16 %v1354, %v1350
        %v1467 = vpack.c.b16 %v1355, %v1351
        %v1468 = vpack.c.b16 %v1360, %v1356
        %v1469 = vpack.c.b16 %v1361, %v1357
        %v1470 = vpack.c.b16 %v1362, %v1358
        %v1471 = vpack.c.b16 %v1363, %v1359
        %v1472 = vpack.c.b16 %v1368, %v1364
        %v1473 = vpack.c.b16 %v1369, %v1365
        %v1474 = vpack.c.b16 %v1370, %v1366
        %v1475 = vpack.c.b16 %v1371, %v1367
        %v1476 = vpack.c.b16 %v1376, %v1372
        %v1477 = vpack.c.b16 %v1377, %v1373
        %v1478 = vpack.c.b16 %v1378, %v1374
        %v1479 = vpack.c.b16 %v1379, %v1375
        %v1480 = vpack.c.b16 %v1384, %v1380
        %v1481 = vpack.c.b16 %v1385, %v1381
        %v1482 = vpack.c.b16 %v1386, %v1382
        %v1483 = vpack.c.b16 %v1387, %v1383
        %v1484 = vpack.c.b16 %v1392, %v1388
        %v1485 = vpack.c.b16 %v1393, %v1389
        %v1486 = vpack.c.b16 %v1394, %v1390
        %v1487 = vpack.c.b16 %v1395, %v1391
        %v1488 = vpack.c.b16 %v1400, %v1396
        %v1489 = vpack.c.b16 %v1401, %v1397
        %v1490 = vpack.c.b16 %v1402, %v1398
        %v1491 = vpack.c.b16 %v1403, %v1399
        %v1492 = vpack.c.b16 %v1408, %v1404
        %v1493 = vpack.c.b16 %v1409, %v1405
        %v1494 = vpack.c.b16 %v1410, %v1406
        %v1495 = vpack.c.b16 %v1411, %v1407
        %v1496 = vpack.c.b16 %v1416, %v1412
        %v1497 = vpack.c.b16 %v1417, %v1413
        %v1498 = vpack.c.b16 %v1418, %v1414
        %v1499 = vpack.c.b16 %v1419, %v1415
        %v1500 = vpack.c.b16 %v1424, %v1420
        %v1501 = vpack.c.b16 %v1425, %v1421
        %v1502 = vpack.c.b16 %v1426, %v1422
        %v1503 = vpack.c.b16 %v1427, %v1423
        %v1504 = vpack.c.b16 %v1432, %v1428
        %v1505 = vpack.c.b16 %v1433, %v1429
        %v1506 = vpack.c.b16 %v1434, %v1430
        %v1507 = vpack.c.b16 %v1435, %v1431
        %v1508 = vpack.c.b16 %v1440, %v1436
        %v1509 = vpack.c.b16 %v1441, %v1437
        %v1510 = vpack.c.b16 %v1442, %v1438
        %v1511 = vpack.c.b16 %v1443, %v1439
        %v1512 = vpack.c.b16 %v1448, %v1444
        %v1513 = vpack.c.b16 %v1449, %v1445
        %v1514 = vpack.c.b16 %v1450, %v1446
        %v1515 = vpack.c.b16 %v1451, %v1447
        %1580 = vmatpush.bf16.msra.mxu0 %v1480
        %1581 = vmatpush.bf16.msra.mxu0 %v1476
        %1582 = vmatpush.bf16.msra.mxu0 %v1472
        %1583 = vmatpush.bf16.msra.mxu0 %v1468
        %1584 = vmatpush.bf16.msra.mxu0 %v1464
        %1585 = vmatpush.bf16.msra.mxu0 %v1460
        %1586 = vmatpush.bf16.msra.mxu0 %v1456
        %1587 = vmatpush.bf16.msra.mxu0 %v1452
        %1588 = vmatmul.bf16.gmra.mxu0 %v1184
        %v1589 = vpop.f32.mrf.mxu0
        %v1590 = vadd.f32 %v1252, %v1589
        %v1591 = vpop.f32.mrf.mxu0
        %v1592 = vadd.f32 %v1252, %v1591
        %1593 = vdwg.mxu0
        %1594 = vmatpush.bf16.msra.mxu0 %v1512
        %1595 = vmatpush.bf16.msra.mxu0 %v1508
        %1596 = vmatpush.bf16.msra.mxu0 %v1504
        %1597 = vmatpush.bf16.msra.mxu0 %v1500
        %1598 = vmatpush.bf16.msra.mxu0 %v1496
        %1599 = vmatpush.bf16.msra.mxu0 %v1492
        %1600 = vmatpush.bf16.msra.mxu0 %v1488
        %1601 = vmatpush.bf16.msra.mxu0 %v1484
        %1602 = vmatmul.bf16.gmra.mxu0 %v1185
        %v1603 = vpop.f32.mrf.mxu0
        %v1604 = vadd.f32 %v1590, %v1603
        %v1605 = vpop.f32.mrf.mxu0
        %v1606 = vadd.f32 %v1592, %v1605
        %1607 = vdwg.mxu0
        %1608 = vmatpush.bf16.msra.mxu0 %v1481
        %1609 = vmatpush.bf16.msra.mxu0 %v1477
        %1610 = vmatpush.bf16.msra.mxu0 %v1473
        %1611 = vmatpush.bf16.msra.mxu0 %v1469
        %1612 = vmatpush.bf16.msra.mxu0 %v1465
        %1613 = vmatpush.bf16.msra.mxu0 %v1461
        %1614 = vmatpush.bf16.msra.mxu0 %v1457
        %1615 = vmatpush.bf16.msra.mxu0 %v1453
        %1616 = vmatmul.bf16.gmra.mxu0 %v1184
        %v1617 = vpop.f32.mrf.mxu0
        %v1618 = vadd.f32 %v1253, %v1617
        %v1619 = vpop.f32.mrf.mxu0
        %v1620 = vadd.f32 %v1253, %v1619
        %1621 = vdwg.mxu0
        %1622 = vmatpush.bf16.msra.mxu0 %v1513
        %1623 = vmatpush.bf16.msra.mxu0 %v1509
        %1624 = vmatpush.bf16.msra.mxu0 %v1505
        %1625 = vmatpush.bf16.msra.mxu0 %v1501
        %1626 = vmatpush.bf16.msra.mxu0 %v1497
        %1627 = vmatpush.bf16.msra.mxu0 %v1493
        %1628 = vmatpush.bf16.msra.mxu0 %v1489
        %1629 = vmatpush.bf16.msra.mxu0 %v1485
        %1630 = vmatmul.bf16.gmra.mxu0 %v1185
        %v1631 = vpop.f32.mrf.mxu0
        %v1632 = vadd.f32 %v1618, %v1631
        %v1633 = vpop.f32.mrf.mxu0
        %v1634 = vadd.f32 %v1620, %v1633
        %1635 = vdwg.mxu0
        %1636 = vmatpush.bf16.msra.mxu0 %v1482
        %1637 = vmatpush.bf16.msra.mxu0 %v1478
        %1638 = vmatpush.bf16.msra.mxu0 %v1474
        %1639 = vmatpush.bf16.msra.mxu0 %v1470
        %1640 = vmatpush.bf16.msra.mxu0 %v1466
        %1641 = vmatpush.bf16.msra.mxu0 %v1462
        %1642 = vmatpush.bf16.msra.mxu0 %v1458
        %1643 = vmatpush.bf16.msra.mxu0 %v1454
        %1644 = vmatmul.bf16.gmra.mxu0 %v1184
        %v1645 = vpop.f32.mrf.mxu0
        %v1646 = vadd.f32 %v1254, %v1645
        %v1647 = vpop.f32.mrf.mxu0
        %v1648 = vadd.f32 %v1254, %v1647
        %1649 = vdwg.mxu0
        %1650 = vmatpush.bf16.msra.mxu0 %v1514
        %1651 = vmatpush.bf16.msra.mxu0 %v1510
        %1652 = vmatpush.bf16.msra.mxu0 %v1506
        %1653 = vmatpush.bf16.msra.mxu0 %v1502
        %1654 = vmatpush.bf16.msra.mxu0 %v1498
        %1655 = vmatpush.bf16.msra.mxu0 %v1494
        %1656 = vmatpush.bf16.msra.mxu0 %v1490
        %1657 = vmatpush.bf16.msra.mxu0 %v1486
        %1658 = vmatmul.bf16.gmra.mxu0 %v1185
        %v1659 = vpop.f32.mrf.mxu0
        %v1660 = vadd.f32 %v1646, %v1659
        %v1661 = vpop.f32.mrf.mxu0
        %v1662 = vadd.f32 %v1648, %v1661
        %1663 = vdwg.mxu0
        %1664 = vmatpush.bf16.msra.mxu0 %v1483
        %1665 = vmatpush.bf16.msra.mxu0 %v1479
        %1666 = vmatpush.bf16.msra.mxu0 %v1475
        %1667 = vmatpush.bf16.msra.mxu0 %v1471
        %1668 = vmatpush.bf16.msra.mxu0 %v1467
        %1669 = vmatpush.bf16.msra.mxu0 %v1463
        %1670 = vmatpush.bf16.msra.mxu0 %v1459
        %1671 = vmatpush.bf16.msra.mxu0 %v1455
        %1672 = vmatmul.bf16.gmra.mxu0 %v1184
        %v1673 = vpop.f32.mrf.mxu0
        %v1674 = vadd.f32 %v1255, %v1673
        %v1675 = vpop.f32.mrf.mxu0
        %v1676 = vadd.f32 %v1255, %v1675
        %1677 = vdwg.mxu0
        %1678 = vmatpush.bf16.msra.mxu0 %v1515
        %1679 = vmatpush.bf16.msra.mxu0 %v1511
        %1680 = vmatpush.bf16.msra.mxu0 %v1507
        %1681 = vmatpush.bf16.msra.mxu0 %v1503
        %1682 = vmatpush.bf16.msra.mxu0 %v1499
        %1683 = vmatpush.bf16.msra.mxu0 %v1495
        %1684 = vmatpush.bf16.msra.mxu0 %v1491
        %1685 = vmatpush.bf16.msra.mxu0 %v1487
        %1686 = vmatmul.bf16.gmra.mxu0 %v1185
        %v1687 = vpop.f32.mrf.mxu0
        %v1688 = vadd.f32 %v1674, %v1687
        %v1689 = vpop.f32.mrf.mxu0
        %v1690 = vadd.f32 %v1676, %v1689
        %1691 = vdwg.mxu0
        %v1692 = vld [vmem:[#allocation13] sm:$0xf]
        %v1693 = vld [vmem:[#allocation15] sm:$0xf]
        %v1694 = vadd.f32 %v1604, %v1606
        %v1695 = vrot.slane %v1694, 4
        %v1696 = vadd.f32 %v1694, %v1695
        %v1697 = vrot.slane %v1696, 2
        %v1698 = vadd.f32 %v1696, %v1697
        %v1699 = vrot.slane %v1698, 1
        %v1700 = vadd.f32 %v1698, %v1699
        %v1701 = vadd.f32 %v1632, %v1634
        %v1702 = vrot.slane %v1701, 4
        %v1703 = vadd.f32 %v1701, %v1702
        %v1704 = vrot.slane %v1703, 2
        %v1705 = vadd.f32 %v1703, %v1704
        %v1706 = vrot.slane %v1705, 1
        %v1707 = vadd.f32 %v1705, %v1706
        %v1708 = vadd.f32 %v1660, %v1662
        %v1709 = vrot.slane %v1708, 4
        %v1710 = vadd.f32 %v1708, %v1709
        %v1711 = vrot.slane %v1710, 2
        %v1712 = vadd.f32 %v1710, %v1711
        %v1713 = vrot.slane %v1712, 1
        %v1714 = vadd.f32 %v1712, %v1713
        %v1715 = vadd.f32 %v1688, %v1690
        %v1716 = vrot.slane %v1715, 4
        %v1717 = vadd.f32 %v1715, %v1716
        %v1718 = vrot.slane %v1717, 2
        %v1719 = vadd.f32 %v1717, %v1718
        %v1720 = vrot.slane %v1719, 1
        %v1721 = vadd.f32 %v1719, %v1720
        %v1722 = vmul.f32 %v1700, %v1092
        %v1723 = vmul.f32 %v1707, %v1092
        %v1724 = vmul.f32 %v1714, %v1092
        %v1725 = vmul.f32 %v1721, %v1092
        %v1726 = vmul.f32 %v1604, %v1604
        %v1727 = vmul.f32 %v1632, %v1632
        %v1728 = vmul.f32 %v1660, %v1660
        %v1729 = vmul.f32 %v1688, %v1688
        %v1730 = vmul.f32 %v1606, %v1606
        %v1731 = vmul.f32 %v1634, %v1634
        %v1732 = vmul.f32 %v1662, %v1662
        %v1733 = vmul.f32 %v1690, %v1690
        %v1734 = vadd.f32 %v1726, %v1730
        %v1735 = vrot.slane %v1734, 4
        %v1736 = vadd.f32 %v1734, %v1735
        %v1737 = vrot.slane %v1736, 2
        %v1738 = vadd.f32 %v1736, %v1737
        %v1739 = vrot.slane %v1738, 1
        %v1740 = vadd.f32 %v1738, %v1739
        %v1741 = vadd.f32 %v1727, %v1731
        %v1742 = vrot.slane %v1741, 4
        %v1743 = vadd.f32 %v1741, %v1742
        %v1744 = vrot.slane %v1743, 2
        %v1745 = vadd.f32 %v1743, %v1744
        %v1746 = vrot.slane %v1745, 1
        %v1747 = vadd.f32 %v1745, %v1746
        %v1748 = vadd.f32 %v1728, %v1732
        %v1749 = vrot.slane %v1748, 4
        %v1750 = vadd.f32 %v1748, %v1749
        %v1751 = vrot.slane %v1750, 2
        %v1752 = vadd.f32 %v1750, %v1751
        %v1753 = vrot.slane %v1752, 1
        %v1754 = vadd.f32 %v1752, %v1753
        %v1755 = vadd.f32 %v1729, %v1733
        %v1756 = vrot.slane %v1755, 4
        %v1757 = vadd.f32 %v1755, %v1756
        %v1758 = vrot.slane %v1757, 2
        %v1759 = vadd.f32 %v1757, %v1758
        %v1760 = vrot.slane %v1759, 1
        %v1761 = vadd.f32 %v1759, %v1760
        %v1762 = vmul.f32 %v1740, %v1092
        %v1763 = vmul.f32 %v1747, %v1092
        %v1764 = vmul.f32 %v1754, %v1092
        %v1765 = vmul.f32 %v1761, %v1092
        %v1766 = vmul.f32 %v1722, %v1722
        %v1767 = vmul.f32 %v1723, %v1723
        %v1768 = vmul.f32 %v1724, %v1724
        %v1769 = vmul.f32 %v1725, %v1725
        %v1770 = vsub.f32 %v1762, %v1766
        %v1771 = vsub.f32 %v1763, %v1767
        %v1772 = vsub.f32 %v1764, %v1768
        %v1773 = vsub.f32 %v1765, %v1769
        %v1774 = vadd.f32 %v1770, 0.8
        %v1775 = vadd.f32 %v1771, 0.8
        %v1776 = vadd.f32 %v1772, 0.8
        %v1777 = vadd.f32 %v1773, 0.8
        %v1778 = vrsqrt.pop %v1774
        %v1779 = vmul.f32 %v1778, %v1774
        %v1780 = vmul.f32 %v1779, %v1778
        %v1781 = vmul.f32 0.5, %v1780
        %v1782 = vsub.f32 1.5, %v1781
        %v1783 = vmul.f32 %v1778, %v1782
        %vm1784 = vweird.f32 %v1774
        %vm1785 = vweird.f32 %v1778
        %vm1786 = vmor %vm1784, %vm1785
        %v1787 = vsel %vm1786, %v1778, %v1783
        %v1788 = vrsqrt.pop %v1775
        %v1789 = vmul.f32 %v1788, %v1775
        %v1790 = vmul.f32 %v1789, %v1788
        %v1791 = vmul.f32 0.5, %v1790
        %v1792 = vsub.f32 1.5, %v1791
        %v1793 = vmul.f32 %v1788, %v1792
        %vm1794 = vweird.f32 %v1775
        %vm1795 = vweird.f32 %v1788
        %vm1796 = vmor %vm1794, %vm1795
        %v1797 = vsel %vm1796, %v1788, %v1793
        %v1798 = vrsqrt.pop %v1776
        %v1799 = vmul.f32 %v1798, %v1776
        %v1800 = vmul.f32 %v1799, %v1798
        %v1801 = vmul.f32 0.5, %v1800
        %v1802 = vsub.f32 1.5, %v1801
        %v1803 = vmul.f32 %v1798, %v1802
        %vm1804 = vweird.f32 %v1776
        %vm1805 = vweird.f32 %v1798
        %vm1806 = vmor %vm1804, %vm1805
        %v1807 = vsel %vm1806, %v1798, %v1803
        %v1808 = vrsqrt.pop %v1777
        %v1809 = vmul.f32 %v1808, %v1777
        %v1810 = vmul.f32 %v1809, %v1808
        %v1811 = vmul.f32 0.5, %v1810
        %v1812 = vsub.f32 1.5, %v1811
        %v1813 = vmul.f32 %v1808, %v1812
        %vm1814 = vweird.f32 %v1777
        %vm1815 = vweird.f32 %v1808
        %vm1816 = vmor %vm1814, %vm1815
        %v1817 = vsel %vm1816, %v1808, %v1813
        %v1819 = vperm.slane %v1692, 0
        %v1820 = vperm.slane %v1692, 1
        %v1821 = vperm.slane %v1692, 2
        %v1822 = vperm.slane %v1692, 3
        %v1827 = vmul.f32 %v1787, %v1819
        %v1828 = vmul.f32 %v1797, %v1820
        %v1829 = vmul.f32 %v1807, %v1821
        %v1830 = vmul.f32 %v1817, %v1822
        %v1831 = vmul.f32 %v1722, %v1827
        %v1832 = vmul.f32 %v1723, %v1828
        %v1833 = vmul.f32 %v1724, %v1829
        %v1834 = vmul.f32 %v1725, %v1830
        %v1839 = vrot.slane %v1832, 7
        %v1840 = vrot.slane %v1833, 6
        %v1841 = vrot.slane %v1834, 5
        %v1842 = vsel %vm1153, %v1831, %v1839
        %vm1843 = vcmask 1042434
        %v1844 = vsel %vm1843, %v1840, %v1841
        %vm1845 = vcmask 1041408
        %v1846 = vsel %vm1845, %v1842, %v1844
        %v1848 = vsub.f32 %v1693, %v1846
        %v1849 = vperm.slane %v1827, 0
        %v1850 = vperm.slane %v1828, 0
        %v1851 = vperm.slane %v1829, 0
        %v1852 = vperm.slane %v1830, 0
        %v1853 = vmul.f32 %v1604, %v1849
        %v1854 = vmul.f32 %v1632, %v1850
        %v1855 = vmul.f32 %v1660, %v1851
        %v1856 = vmul.f32 %v1688, %v1852
        %v1857 = vmul.f32 %v1606, %v1849
        %v1858 = vmul.f32 %v1634, %v1850
        %v1859 = vmul.f32 %v1662, %v1851
        %v1860 = vmul.f32 %v1690, %v1852
        %v1862 = vperm.slane %v1848, 0
        %v1863 = vperm.slane %v1848, 1
        %v1864 = vperm.slane %v1848, 2
        %v1865 = vperm.slane %v1848, 3
        %v1870 = vadd.f32 %v1853, %v1862
        %v1871 = vadd.f32 %v1854, %v1863
        %v1872 = vadd.f32 %v1855, %v1864
        %v1873 = vadd.f32 %v1856, %v1865
        %v1874 = vadd.f32 %v1857, %v1862
        %v1875 = vadd.f32 %v1858, %v1863
        %v1876 = vadd.f32 %v1859, %v1864
        %v1877 = vadd.f32 %v1860, %v1865
        %vm1878 = vcmp.gt.f32.partialorder %v1870, 0.0
        %vm1879 = vcmp.gt.f32.partialorder %v1871, 0.0
        %vm1880 = vcmp.gt.f32.partialorder %v1872, 0.0
        %vm1881 = vcmp.gt.f32.partialorder %v1873, 0.0
        %vm1882 = vcmp.gt.f32.partialorder %v1874, 0.0
        %vm1883 = vcmp.gt.f32.partialorder %v1875, 0.0
        %vm1884 = vcmp.gt.f32.partialorder %v1876, 0.0
        %vm1885 = vcmp.gt.f32.partialorder %v1877, 0.0
        %v1886 = vmul.f32 %v1870, 0.2
        %v1887 = vmul.f32 %v1871, 0.2
        %v1888 = vmul.f32 %v1872, 0.2
        %v1889 = vmul.f32 %v1873, 0.2
        %v1890 = vmul.f32 %v1874, 0.2
        %v1891 = vmul.f32 %v1875, 0.2
        %v1892 = vmul.f32 %v1876, 0.2
        %v1893 = vmul.f32 %v1877, 0.2
        %v1894 = vsel %vm1878, %v1870, %v1886
        %v1895 = vsel %vm1879, %v1871, %v1887
        %v1896 = vsel %vm1880, %v1872, %v1888
        %v1897 = vsel %vm1881, %v1873, %v1889
        %v1898 = vsel %vm1882, %v1874, %v1890
        %v1899 = vsel %vm1883, %v1875, %v1891
        %v1900 = vsel %vm1884, %v1876, %v1892
        %v1901 = vsel %vm1885, %v1877, %v1893
        %v1902 = vpack.c.bf16 %v1898, %v1894
        %v1903 = vpack.c.bf16 %v1899, %v1895
        %v1904 = vpack.c.bf16 %v1900, %v1896
        %v1905 = vpack.c.bf16 %v1901, %v1897
        %v1906 = vld [vmem:[#allocation16] sm:$0xff]
        %v1907 = vld [vmem:[#allocation16 + $0x8] sm:$0xff]
        %v1908 = vld [vmem:[#allocation16 + $0x10] sm:$0xff]
        %v1909 = vld [vmem:[#allocation16 + $0x18] sm:$0xff]
        %v1910 = vld [vmem:[#allocation16 + $0x20] sm:$0xff]
        %v1911 = vld [vmem:[#allocation16 + $0x28] sm:$0xff]
        %v1912 = vld [vmem:[#allocation16 + $0x30] sm:$0xff]
        %v1913 = vld [vmem:[#allocation16 + $0x38] sm:$0xff]
        %v1914 = vld [vmem:[#allocation16 + $0x40] sm:$0xff]
        %v1915 = vld [vmem:[#allocation16 + $0x48] sm:$0xff]
        %v1916 = vld [vmem:[#allocation16 + $0x50] sm:$0xff]
        %v1917 = vld [vmem:[#allocation16 + $0x58] sm:$0xff]
        %v1918 = vld [vmem:[#allocation16 + $0x60] sm:$0xff]
        %v1919 = vld [vmem:[#allocation16 + $0x68] sm:$0xff]
        %v1920 = vld [vmem:[#allocation16 + $0x70] sm:$0xff]
        %v1921 = vld [vmem:[#allocation16 + $0x78] sm:$0xff]
        %v1922 = vld [vmem:[#allocation16 + $0x80] sm:$0xff]
        %v1923 = vld [vmem:[#allocation16 + $0x88] sm:$0xff]
        %v1924 = vld [vmem:[#allocation16 + $0x90] sm:$0xff]
        %v1925 = vld [vmem:[#allocation16 + $0x98] sm:$0xff]
        %v1926 = vld [vmem:[#allocation16 + $0xa0] sm:$0xff]
        %v1927 = vld [vmem:[#allocation16 + $0xa8] sm:$0xff]
        %v1928 = vld [vmem:[#allocation16 + $0xb0] sm:$0xff]
        %v1929 = vld [vmem:[#allocation16 + $0xb8] sm:$0xff]
        %v1930 = vld [vmem:[#allocation16 + $0xc0] sm:$0xff]
        %v1931 = vld [vmem:[#allocation16 + $0xc8] sm:$0xff]
        %v1932 = vld [vmem:[#allocation16 + $0xd0] sm:$0xff]
        %v1933 = vld [vmem:[#allocation16 + $0xd8] sm:$0xff]
        %v1934 = vld [vmem:[#allocation16 + $0xe0] sm:$0xff]
        %v1935 = vld [vmem:[#allocation16 + $0xe8] sm:$0xff]
        %v1936 = vld [vmem:[#allocation16 + $0xf0] sm:$0xff]
        %v1937 = vld [vmem:[#allocation16 + $0xf8] sm:$0xff]
        %v1938 = vld [vmem:[#allocation16 + $0x100] sm:$0xff]
        %v1939 = vld [vmem:[#allocation16 + $0x108] sm:$0xff]
        %v1940 = vld [vmem:[#allocation16 + $0x110] sm:$0xff]
        %v1941 = vld [vmem:[#allocation16 + $0x118] sm:$0xff]
        %v1942 = vld [vmem:[#allocation16 + $0x120] sm:$0xff]
        %v1943 = vld [vmem:[#allocation16 + $0x128] sm:$0xff]
        %v1944 = vld [vmem:[#allocation16 + $0x130] sm:$0xff]
        %v1945 = vld [vmem:[#allocation16 + $0x138] sm:$0xff]
        %v1946 = vld [vmem:[#allocation16 + $0x140] sm:$0xff]
        %v1947 = vld [vmem:[#allocation16 + $0x148] sm:$0xff]
        %v1948 = vld [vmem:[#allocation16 + $0x150] sm:$0xff]
        %v1949 = vld [vmem:[#allocation16 + $0x158] sm:$0xff]
        %v1950 = vld [vmem:[#allocation16 + $0x160] sm:$0xff]
        %v1951 = vld [vmem:[#allocation16 + $0x168] sm:$0xff]
        %v1952 = vld [vmem:[#allocation16 + $0x170] sm:$0xff]
        %v1953 = vld [vmem:[#allocation16 + $0x178] sm:$0xff]
        %v1954 = vld [vmem:[#allocation16 + $0x180] sm:$0xff]
        %v1955 = vld [vmem:[#allocation16 + $0x188] sm:$0xff]
        %v1956 = vld [vmem:[#allocation16 + $0x190] sm:$0xff]
        %v1957 = vld [vmem:[#allocation16 + $0x198] sm:$0xff]
        %v1958 = vld [vmem:[#allocation16 + $0x1a0] sm:$0xff]
        %v1959 = vld [vmem:[#allocation16 + $0x1a8] sm:$0xff]
        %v1960 = vld [vmem:[#allocation16 + $0x1b0] sm:$0xff]
        %v1961 = vld [vmem:[#allocation16 + $0x1b8] sm:$0xff]
        %v1962 = vld [vmem:[#allocation16 + $0x1c0] sm:$0xff]
        %v1963 = vld [vmem:[#allocation16 + $0x1c8] sm:$0xff]
        %v1964 = vld [vmem:[#allocation16 + $0x1d0] sm:$0xff]
        %v1965 = vld [vmem:[#allocation16 + $0x1d8] sm:$0xff]
        %v1966 = vld [vmem:[#allocation16 + $0x1e0] sm:$0xff]
        %v1967 = vld [vmem:[#allocation16 + $0x1e8] sm:$0xff]
        %v1968 = vld [vmem:[#allocation16 + $0x1f0] sm:$0xff]
        %v1969 = vld [vmem:[#allocation16 + $0x1f8] sm:$0xff]
        %v1970 = vld [vmem:[#allocation16 + $0x200] sm:$0xff]
        %v1971 = vld [vmem:[#allocation16 + $0x208] sm:$0xff]
        %v1972 = vld [vmem:[#allocation16 + $0x210] sm:$0xff]
        %v1973 = vld [vmem:[#allocation16 + $0x218] sm:$0xff]
        %v1974 = vld [vmem:[#allocation16 + $0x220] sm:$0xff]
        %v1975 = vld [vmem:[#allocation16 + $0x228] sm:$0xff]
        %v1976 = vld [vmem:[#allocation16 + $0x230] sm:$0xff]
        %v1977 = vld [vmem:[#allocation16 + $0x238] sm:$0xff]
        %v1978 = vld [vmem:[#allocation16 + $0x240] sm:$0xff]
        %v1979 = vld [vmem:[#allocation16 + $0x248] sm:$0xff]
        %v1980 = vld [vmem:[#allocation16 + $0x250] sm:$0xff]
        %v1981 = vld [vmem:[#allocation16 + $0x258] sm:$0xff]
        %v1982 = vld [vmem:[#allocation16 + $0x260] sm:$0xff]
        %v1983 = vld [vmem:[#allocation16 + $0x268] sm:$0xff]
        %v1984 = vld [vmem:[#allocation16 + $0x270] sm:$0xff]
        %v1985 = vld [vmem:[#allocation16 + $0x278] sm:$0xff]
        %v1986 = vld [vmem:[#allocation16 + $0x280] sm:$0xff]
        %v1987 = vld [vmem:[#allocation16 + $0x288] sm:$0xff]
        %v1988 = vld [vmem:[#allocation16 + $0x290] sm:$0xff]
        %v1989 = vld [vmem:[#allocation16 + $0x298] sm:$0xff]
        %v1990 = vld [vmem:[#allocation16 + $0x2a0] sm:$0xff]
        %v1991 = vld [vmem:[#allocation16 + $0x2a8] sm:$0xff]
        %v1992 = vld [vmem:[#allocation16 + $0x2b0] sm:$0xff]
        %v1993 = vld [vmem:[#allocation16 + $0x2b8] sm:$0xff]
        %v1994 = vld [vmem:[#allocation16 + $0x2c0] sm:$0xff]
        %v1995 = vld [vmem:[#allocation16 + $0x2c8] sm:$0xff]
        %v1996 = vld [vmem:[#allocation16 + $0x2d0] sm:$0xff]
        %v1997 = vld [vmem:[#allocation16 + $0x2d8] sm:$0xff]
        %v1998 = vld [vmem:[#allocation16 + $0x2e0] sm:$0xff]
        %v1999 = vld [vmem:[#allocation16 + $0x2e8] sm:$0xff]
        %v2000 = vld [vmem:[#allocation16 + $0x2f0] sm:$0xff]
        %v2001 = vld [vmem:[#allocation16 + $0x2f8] sm:$0xff]
        %v2002 = vld [vmem:[#allocation16 + $0x300] sm:$0xff]
        %v2003 = vld [vmem:[#allocation16 + $0x308] sm:$0xff]
        %v2004 = vld [vmem:[#allocation16 + $0x310] sm:$0xff]
        %v2005 = vld [vmem:[#allocation16 + $0x318] sm:$0xff]
        %v2006 = vld [vmem:[#allocation16 + $0x320] sm:$0xff]
        %v2007 = vld [vmem:[#allocation16 + $0x328] sm:$0xff]
        %v2008 = vld [vmem:[#allocation16 + $0x330] sm:$0xff]
        %v2009 = vld [vmem:[#allocation16 + $0x338] sm:$0xff]
        %v2010 = vld [vmem:[#allocation16 + $0x340] sm:$0xff]
        %v2011 = vld [vmem:[#allocation16 + $0x348] sm:$0xff]
        %v2012 = vld [vmem:[#allocation16 + $0x350] sm:$0xff]
        %v2013 = vld [vmem:[#allocation16 + $0x358] sm:$0xff]
        %v2014 = vld [vmem:[#allocation16 + $0x360] sm:$0xff]
        %v2015 = vld [vmem:[#allocation16 + $0x368] sm:$0xff]
        %v2016 = vld [vmem:[#allocation16 + $0x370] sm:$0xff]
        %v2017 = vld [vmem:[#allocation16 + $0x378] sm:$0xff]
        %v2018 = vld [vmem:[#allocation16 + $0x380] sm:$0xff]
        %v2019 = vld [vmem:[#allocation16 + $0x388] sm:$0xff]
        %v2020 = vld [vmem:[#allocation16 + $0x390] sm:$0xff]
        %v2021 = vld [vmem:[#allocation16 + $0x398] sm:$0xff]
        %v2022 = vld [vmem:[#allocation16 + $0x3a0] sm:$0xff]
        %v2023 = vld [vmem:[#allocation16 + $0x3a8] sm:$0xff]
        %v2024 = vld [vmem:[#allocation16 + $0x3b0] sm:$0xff]
        %v2025 = vld [vmem:[#allocation16 + $0x3b8] sm:$0xff]
        %v2026 = vld [vmem:[#allocation16 + $0x3c0] sm:$0xff]
        %v2027 = vld [vmem:[#allocation16 + $0x3c8] sm:$0xff]
        %v2028 = vld [vmem:[#allocation16 + $0x3d0] sm:$0xff]
        %v2029 = vld [vmem:[#allocation16 + $0x3d8] sm:$0xff]
        %v2030 = vld [vmem:[#allocation16 + $0x3e0] sm:$0xff]
        %v2031 = vld [vmem:[#allocation16 + $0x3e8] sm:$0xff]
        %v2032 = vld [vmem:[#allocation16 + $0x3f0] sm:$0xff]
        %v2033 = vld [vmem:[#allocation16 + $0x3f8] sm:$0xff]
        %v2034 = vld [vmem:[#allocation16 + $0x400] sm:$0xff]
        %v2035 = vld [vmem:[#allocation16 + $0x408] sm:$0xff]
        %v2036 = vld [vmem:[#allocation16 + $0x410] sm:$0xff]
        %v2037 = vld [vmem:[#allocation16 + $0x418] sm:$0xff]
        %v2038 = vld [vmem:[#allocation16 + $0x420] sm:$0xff]
        %v2039 = vld [vmem:[#allocation16 + $0x428] sm:$0xff]
        %v2040 = vld [vmem:[#allocation16 + $0x430] sm:$0xff]
        %v2041 = vld [vmem:[#allocation16 + $0x438] sm:$0xff]
        %v2042 = vld [vmem:[#allocation16 + $0x440] sm:$0xff]
        %v2043 = vld [vmem:[#allocation16 + $0x448] sm:$0xff]
        %v2044 = vld [vmem:[#allocation16 + $0x450] sm:$0xff]
        %v2045 = vld [vmem:[#allocation16 + $0x458] sm:$0xff]
        %v2046 = vld [vmem:[#allocation16 + $0x460] sm:$0xff]
        %v2047 = vld [vmem:[#allocation16 + $0x468] sm:$0xff]
        %v2048 = vld [vmem:[#allocation16 + $0x470] sm:$0xff]
        %v2049 = vld [vmem:[#allocation16 + $0x478] sm:$0xff]
        %v2050 = vld [vmem:[#allocation16 + $0x480] sm:$0xff]
        %v2051 = vld [vmem:[#allocation16 + $0x488] sm:$0xff]
        %v2052 = vld [vmem:[#allocation16 + $0x490] sm:$0xff]
        %v2053 = vld [vmem:[#allocation16 + $0x498] sm:$0xff]
        %v2054 = vld [vmem:[#allocation16 + $0x4a0] sm:$0xff]
        %v2055 = vld [vmem:[#allocation16 + $0x4a8] sm:$0xff]
        %v2056 = vld [vmem:[#allocation16 + $0x4b0] sm:$0xff]
        %v2057 = vld [vmem:[#allocation16 + $0x4b8] sm:$0xff]
        %v2058 = vld [vmem:[#allocation16 + $0x4c0] sm:$0xff]
        %v2059 = vld [vmem:[#allocation16 + $0x4c8] sm:$0xff]
        %v2060 = vld [vmem:[#allocation16 + $0x4d0] sm:$0xff]
        %v2061 = vld [vmem:[#allocation16 + $0x4d8] sm:$0xff]
        %v2062 = vld [vmem:[#allocation16 + $0x4e0] sm:$0xff]
        %v2063 = vld [vmem:[#allocation16 + $0x4e8] sm:$0xff]
        %v2064 = vld [vmem:[#allocation16 + $0x4f0] sm:$0xff]
        %v2065 = vld [vmem:[#allocation16 + $0x4f8] sm:$0xff]
        %v2066 = vld [vmem:[#allocation16 + $0x500] sm:$0xff]
        %v2067 = vld [vmem:[#allocation16 + $0x508] sm:$0xff]
        %v2068 = vld [vmem:[#allocation16 + $0x510] sm:$0xff]
        %v2069 = vld [vmem:[#allocation16 + $0x518] sm:$0xff]
        %v2070 = vld [vmem:[#allocation16 + $0x520] sm:$0xff]
        %v2071 = vld [vmem:[#allocation16 + $0x528] sm:$0xff]
        %v2072 = vld [vmem:[#allocation16 + $0x530] sm:$0xff]
        %v2073 = vld [vmem:[#allocation16 + $0x538] sm:$0xff]
        %v2074 = vld [vmem:[#allocation16 + $0x540] sm:$0xff]
        %v2075 = vld [vmem:[#allocation16 + $0x548] sm:$0xff]
        %v2076 = vld [vmem:[#allocation16 + $0x550] sm:$0xff]
        %v2077 = vld [vmem:[#allocation16 + $0x558] sm:$0xff]
        %v2078 = vld [vmem:[#allocation16 + $0x560] sm:$0xff]
        %v2079 = vld [vmem:[#allocation16 + $0x568] sm:$0xff]
        %v2080 = vld [vmem:[#allocation16 + $0x570] sm:$0xff]
        %v2081 = vld [vmem:[#allocation16 + $0x578] sm:$0xff]
        %v2082 = vld [vmem:[#allocation16 + $0x580] sm:$0xff]
        %v2083 = vld [vmem:[#allocation16 + $0x588] sm:$0xff]
        %v2084 = vld [vmem:[#allocation16 + $0x590] sm:$0xff]
        %v2085 = vld [vmem:[#allocation16 + $0x598] sm:$0xff]
        %v2086 = vld [vmem:[#allocation16 + $0x5a0] sm:$0xff]
        %v2087 = vld [vmem:[#allocation16 + $0x5a8] sm:$0xff]
        %v2088 = vld [vmem:[#allocation16 + $0x5b0] sm:$0xff]
        %v2089 = vld [vmem:[#allocation16 + $0x5b8] sm:$0xff]
        %v2090 = vld [vmem:[#allocation16 + $0x5c0] sm:$0xff]
        %v2091 = vld [vmem:[#allocation16 + $0x5c8] sm:$0xff]
        %v2092 = vld [vmem:[#allocation16 + $0x5d0] sm:$0xff]
        %v2093 = vld [vmem:[#allocation16 + $0x5d8] sm:$0xff]
        %v2094 = vld [vmem:[#allocation16 + $0x5e0] sm:$0xff]
        %v2095 = vld [vmem:[#allocation16 + $0x5e8] sm:$0xff]
        %v2096 = vld [vmem:[#allocation16 + $0x5f0] sm:$0xff]
        %v2097 = vld [vmem:[#allocation16 + $0x5f8] sm:$0xff]
        %v2098 = vld [vmem:[#allocation16 + $0x600] sm:$0xff]
        %v2099 = vld [vmem:[#allocation16 + $0x608] sm:$0xff]
        %v2100 = vld [vmem:[#allocation16 + $0x610] sm:$0xff]
        %v2101 = vld [vmem:[#allocation16 + $0x618] sm:$0xff]
        %v2102 = vld [vmem:[#allocation16 + $0x620] sm:$0xff]
        %v2103 = vld [vmem:[#allocation16 + $0x628] sm:$0xff]
        %v2104 = vld [vmem:[#allocation16 + $0x630] sm:$0xff]
        %v2105 = vld [vmem:[#allocation16 + $0x638] sm:$0xff]
        %v2106 = vld [vmem:[#allocation16 + $0x640] sm:$0xff]
        %v2107 = vld [vmem:[#allocation16 + $0x648] sm:$0xff]
        %v2108 = vld [vmem:[#allocation16 + $0x650] sm:$0xff]
        %v2109 = vld [vmem:[#allocation16 + $0x658] sm:$0xff]
        %v2110 = vld [vmem:[#allocation16 + $0x660] sm:$0xff]
        %v2111 = vld [vmem:[#allocation16 + $0x668] sm:$0xff]
        %v2112 = vld [vmem:[#allocation16 + $0x670] sm:$0xff]
        %v2113 = vld [vmem:[#allocation16 + $0x678] sm:$0xff]
        %v2114 = vld [vmem:[#allocation16 + $0x680] sm:$0xff]
        %v2115 = vld [vmem:[#allocation16 + $0x688] sm:$0xff]
        %v2116 = vld [vmem:[#allocation16 + $0x690] sm:$0xff]
        %v2117 = vld [vmem:[#allocation16 + $0x698] sm:$0xff]
        %v2118 = vld [vmem:[#allocation16 + $0x6a0] sm:$0xff]
        %v2119 = vld [vmem:[#allocation16 + $0x6a8] sm:$0xff]
        %v2120 = vld [vmem:[#allocation16 + $0x6b0] sm:$0xff]
        %v2121 = vld [vmem:[#allocation16 + $0x6b8] sm:$0xff]
        %v2122 = vld [vmem:[#allocation16 + $0x6c0] sm:$0xff]
        %v2123 = vld [vmem:[#allocation16 + $0x6c8] sm:$0xff]
        %v2124 = vld [vmem:[#allocation16 + $0x6d0] sm:$0xff]
        %v2125 = vld [vmem:[#allocation16 + $0x6d8] sm:$0xff]
        %v2126 = vld [vmem:[#allocation16 + $0x6e0] sm:$0xff]
        %v2127 = vld [vmem:[#allocation16 + $0x6e8] sm:$0xff]
        %v2128 = vld [vmem:[#allocation16 + $0x6f0] sm:$0xff]
        %v2129 = vld [vmem:[#allocation16 + $0x6f8] sm:$0xff]
        %v2130 = vld [vmem:[#allocation16 + $0x700] sm:$0xff]
        %v2131 = vld [vmem:[#allocation16 + $0x708] sm:$0xff]
        %v2132 = vld [vmem:[#allocation16 + $0x710] sm:$0xff]
        %v2133 = vld [vmem:[#allocation16 + $0x718] sm:$0xff]
        %v2134 = vld [vmem:[#allocation16 + $0x720] sm:$0xff]
        %v2135 = vld [vmem:[#allocation16 + $0x728] sm:$0xff]
        %v2136 = vld [vmem:[#allocation16 + $0x730] sm:$0xff]
        %v2137 = vld [vmem:[#allocation16 + $0x738] sm:$0xff]
        %v2138 = vld [vmem:[#allocation16 + $0x740] sm:$0xff]
        %v2139 = vld [vmem:[#allocation16 + $0x748] sm:$0xff]
        %v2140 = vld [vmem:[#allocation16 + $0x750] sm:$0xff]
        %v2141 = vld [vmem:[#allocation16 + $0x758] sm:$0xff]
        %v2142 = vld [vmem:[#allocation16 + $0x760] sm:$0xff]
        %v2143 = vld [vmem:[#allocation16 + $0x768] sm:$0xff]
        %v2144 = vld [vmem:[#allocation16 + $0x770] sm:$0xff]
        %v2145 = vld [vmem:[#allocation16 + $0x778] sm:$0xff]
        %v2146 = vld [vmem:[#allocation16 + $0x780] sm:$0xff]
        %v2147 = vld [vmem:[#allocation16 + $0x788] sm:$0xff]
        %v2148 = vld [vmem:[#allocation16 + $0x790] sm:$0xff]
        %v2149 = vld [vmem:[#allocation16 + $0x798] sm:$0xff]
        %v2150 = vld [vmem:[#allocation16 + $0x7a0] sm:$0xff]
        %v2151 = vld [vmem:[#allocation16 + $0x7a8] sm:$0xff]
        %v2152 = vld [vmem:[#allocation16 + $0x7b0] sm:$0xff]
        %v2153 = vld [vmem:[#allocation16 + $0x7b8] sm:$0xff]
        %v2154 = vld [vmem:[#allocation16 + $0x7c0] sm:$0xff]
        %v2155 = vld [vmem:[#allocation16 + $0x7c8] sm:$0xff]
        %v2156 = vld [vmem:[#allocation16 + $0x7d0] sm:$0xff]
        %v2157 = vld [vmem:[#allocation16 + $0x7d8] sm:$0xff]
        %v2158 = vld [vmem:[#allocation16 + $0x7e0] sm:$0xff]
        %v2159 = vld [vmem:[#allocation16 + $0x7e8] sm:$0xff]
        %v2160 = vld [vmem:[#allocation16 + $0x7f0] sm:$0xff]
        %v2161 = vld [vmem:[#allocation16 + $0x7f8] sm:$0xff]
        %v2162 = vld [vmem:[#allocation18] sm:$0xff]
        %v2164 = vperm.slane %v2162, 0
        %v2165 = vperm.slane %v2162, 1
        %v2166 = vperm.slane %v2162, 2
        %v2167 = vperm.slane %v2162, 3
        %v2168 = vperm.slane %v2162, 4
        %v2169 = vperm.slane %v2162, 5
        %v2170 = vperm.slane %v2162, 6
        %v2171 = vperm.slane %v2162, 7
        %v2436 = vunpack.c.l.b16 %v1906
        %v2437 = vunpack.c.h.b16 %v1906
        %v2438 = vunpack.c.l.b16 %v1907
        %v2439 = vunpack.c.h.b16 %v1907
        %v2440 = vunpack.c.l.b16 %v1908
        %v2441 = vunpack.c.h.b16 %v1908
        %v2442 = vunpack.c.l.b16 %v1909
        %v2443 = vunpack.c.h.b16 %v1909
        %v2444 = vunpack.c.l.b16 %v1910
        %v2445 = vunpack.c.h.b16 %v1910
        %v2446 = vunpack.c.l.b16 %v1911
        %v2447 = vunpack.c.h.b16 %v1911
        %v2448 = vunpack.c.l.b16 %v1912
        %v2449 = vunpack.c.h.b16 %v1912
        %v2450 = vunpack.c.l.b16 %v1913
        %v2451 = vunpack.c.h.b16 %v1913
        %v2452 = vunpack.c.l.b16 %v1914
        %v2453 = vunpack.c.h.b16 %v1914
        %v2454 = vunpack.c.l.b16 %v1915
        %v2455 = vunpack.c.h.b16 %v1915
        %v2456 = vunpack.c.l.b16 %v1916
        %v2457 = vunpack.c.h.b16 %v1916
        %v2458 = vunpack.c.l.b16 %v1917
        %v2459 = vunpack.c.h.b16 %v1917
        %v2460 = vunpack.c.l.b16 %v1918
        %v2461 = vunpack.c.h.b16 %v1918
        %v2462 = vunpack.c.l.b16 %v1919
        %v2463 = vunpack.c.h.b16 %v1919
        %v2464 = vunpack.c.l.b16 %v1920
        %v2465 = vunpack.c.h.b16 %v1920
        %v2466 = vunpack.c.l.b16 %v1921
        %v2467 = vunpack.c.h.b16 %v1921
        %v2468 = vunpack.c.l.b16 %v1922
        %v2469 = vunpack.c.h.b16 %v1922
        %v2470 = vunpack.c.l.b16 %v1923
        %v2471 = vunpack.c.h.b16 %v1923
        %v2472 = vunpack.c.l.b16 %v1924
        %v2473 = vunpack.c.h.b16 %v1924
        %v2474 = vunpack.c.l.b16 %v1925
        %v2475 = vunpack.c.h.b16 %v1925
        %v2476 = vunpack.c.l.b16 %v1926
        %v2477 = vunpack.c.h.b16 %v1926
        %v2478 = vunpack.c.l.b16 %v1927
        %v2479 = vunpack.c.h.b16 %v1927
        %v2480 = vunpack.c.l.b16 %v1928
        %v2481 = vunpack.c.h.b16 %v1928
        %v2482 = vunpack.c.l.b16 %v1929
        %v2483 = vunpack.c.h.b16 %v1929
        %v2484 = vunpack.c.l.b16 %v1930
        %v2485 = vunpack.c.h.b16 %v1930
        %v2486 = vunpack.c.l.b16 %v1931
        %v2487 = vunpack.c.h.b16 %v1931
        %v2488 = vunpack.c.l.b16 %v1932
        %v2489 = vunpack.c.h.b16 %v1932
        %v2490 = vunpack.c.l.b16 %v1933
        %v2491 = vunpack.c.h.b16 %v1933
        %v2492 = vunpack.c.l.b16 %v1934
        %v2493 = vunpack.c.h.b16 %v1934
        %v2494 = vunpack.c.l.b16 %v1935
        %v2495 = vunpack.c.h.b16 %v1935
        %v2496 = vunpack.c.l.b16 %v1936
        %v2497 = vunpack.c.h.b16 %v1936
        %v2498 = vunpack.c.l.b16 %v1937
        %v2499 = vunpack.c.h.b16 %v1937
        %v2500 = vunpack.c.l.b16 %v1938
        %v2501 = vunpack.c.h.b16 %v1938
        %v2502 = vunpack.c.l.b16 %v1939
        %v2503 = vunpack.c.h.b16 %v1939
        %v2504 = vunpack.c.l.b16 %v1940
        %v2505 = vunpack.c.h.b16 %v1940
        %v2506 = vunpack.c.l.b16 %v1941
        %v2507 = vunpack.c.h.b16 %v1941
        %v2508 = vunpack.c.l.b16 %v1942
        %v2509 = vunpack.c.h.b16 %v1942
        %v2510 = vunpack.c.l.b16 %v1943
        %v2511 = vunpack.c.h.b16 %v1943
        %v2512 = vunpack.c.l.b16 %v1944
        %v2513 = vunpack.c.h.b16 %v1944
        %v2514 = vunpack.c.l.b16 %v1945
        %v2515 = vunpack.c.h.b16 %v1945
        %v2516 = vunpack.c.l.b16 %v1946
        %v2517 = vunpack.c.h.b16 %v1946
        %v2518 = vunpack.c.l.b16 %v1947
        %v2519 = vunpack.c.h.b16 %v1947
        %v2520 = vunpack.c.l.b16 %v1948
        %v2521 = vunpack.c.h.b16 %v1948
        %v2522 = vunpack.c.l.b16 %v1949
        %v2523 = vunpack.c.h.b16 %v1949
        %v2524 = vunpack.c.l.b16 %v1950
        %v2525 = vunpack.c.h.b16 %v1950
        %v2526 = vunpack.c.l.b16 %v1951
        %v2527 = vunpack.c.h.b16 %v1951
        %v2528 = vunpack.c.l.b16 %v1952
        %v2529 = vunpack.c.h.b16 %v1952
        %v2530 = vunpack.c.l.b16 %v1953
        %v2531 = vunpack.c.h.b16 %v1953
        %v2532 = vunpack.c.l.b16 %v1954
        %v2533 = vunpack.c.h.b16 %v1954
        %v2534 = vunpack.c.l.b16 %v1955
        %v2535 = vunpack.c.h.b16 %v1955
        %v2536 = vunpack.c.l.b16 %v1956
        %v2537 = vunpack.c.h.b16 %v1956
        %v2538 = vunpack.c.l.b16 %v1957
        %v2539 = vunpack.c.h.b16 %v1957
        %v2540 = vunpack.c.l.b16 %v1958
        %v2541 = vunpack.c.h.b16 %v1958
        %v2542 = vunpack.c.l.b16 %v1959
        %v2543 = vunpack.c.h.b16 %v1959
        %v2544 = vunpack.c.l.b16 %v1960
        %v2545 = vunpack.c.h.b16 %v1960
        %v2546 = vunpack.c.l.b16 %v1961
        %v2547 = vunpack.c.h.b16 %v1961
        %v2548 = vunpack.c.l.b16 %v1962
        %v2549 = vunpack.c.h.b16 %v1962
        %v2550 = vunpack.c.l.b16 %v1963
        %v2551 = vunpack.c.h.b16 %v1963
        %v2552 = vunpack.c.l.b16 %v1964
        %v2553 = vunpack.c.h.b16 %v1964
        %v2554 = vunpack.c.l.b16 %v1965
        %v2555 = vunpack.c.h.b16 %v1965
        %v2556 = vunpack.c.l.b16 %v1966
        %v2557 = vunpack.c.h.b16 %v1966
        %v2558 = vunpack.c.l.b16 %v1967
        %v2559 = vunpack.c.h.b16 %v1967
        %v2560 = vunpack.c.l.b16 %v1968
        %v2561 = vunpack.c.h.b16 %v1968
        %v2562 = vunpack.c.l.b16 %v1969
        %v2563 = vunpack.c.h.b16 %v1969
        %v2564 = vunpack.c.l.b16 %v1970
        %v2565 = vunpack.c.h.b16 %v1970
        %v2566 = vunpack.c.l.b16 %v1971
        %v2567 = vunpack.c.h.b16 %v1971
        %v2568 = vunpack.c.l.b16 %v1972
        %v2569 = vunpack.c.h.b16 %v1972
        %v2570 = vunpack.c.l.b16 %v1973
        %v2571 = vunpack.c.h.b16 %v1973
        %v2572 = vunpack.c.l.b16 %v1974
        %v2573 = vunpack.c.h.b16 %v1974
        %v2574 = vunpack.c.l.b16 %v1975
        %v2575 = vunpack.c.h.b16 %v1975
        %v2576 = vunpack.c.l.b16 %v1976
        %v2577 = vunpack.c.h.b16 %v1976
        %v2578 = vunpack.c.l.b16 %v1977
        %v2579 = vunpack.c.h.b16 %v1977
        %v2580 = vunpack.c.l.b16 %v1978
        %v2581 = vunpack.c.h.b16 %v1978
        %v2582 = vunpack.c.l.b16 %v1979
        %v2583 = vunpack.c.h.b16 %v1979
        %v2584 = vunpack.c.l.b16 %v1980
        %v2585 = vunpack.c.h.b16 %v1980
        %v2586 = vunpack.c.l.b16 %v1981
        %v2587 = vunpack.c.h.b16 %v1981
        %v2588 = vunpack.c.l.b16 %v1982
        %v2589 = vunpack.c.h.b16 %v1982
        %v2590 = vunpack.c.l.b16 %v1983
        %v2591 = vunpack.c.h.b16 %v1983
        %v2592 = vunpack.c.l.b16 %v1984
        %v2593 = vunpack.c.h.b16 %v1984
        %v2594 = vunpack.c.l.b16 %v1985
        %v2595 = vunpack.c.h.b16 %v1985
        %v2596 = vunpack.c.l.b16 %v1986
        %v2597 = vunpack.c.h.b16 %v1986
        %v2598 = vunpack.c.l.b16 %v1987
        %v2599 = vunpack.c.h.b16 %v1987
        %v2600 = vunpack.c.l.b16 %v1988
        %v2601 = vunpack.c.h.b16 %v1988
        %v2602 = vunpack.c.l.b16 %v1989
        %v2603 = vunpack.c.h.b16 %v1989
        %v2604 = vunpack.c.l.b16 %v1990
        %v2605 = vunpack.c.h.b16 %v1990
        %v2606 = vunpack.c.l.b16 %v1991
        %v2607 = vunpack.c.h.b16 %v1991
        %v2608 = vunpack.c.l.b16 %v1992
        %v2609 = vunpack.c.h.b16 %v1992
        %v2610 = vunpack.c.l.b16 %v1993
        %v2611 = vunpack.c.h.b16 %v1993
        %v2612 = vunpack.c.l.b16 %v1994
        %v2613 = vunpack.c.h.b16 %v1994
        %v2614 = vunpack.c.l.b16 %v1995
        %v2615 = vunpack.c.h.b16 %v1995
        %v2616 = vunpack.c.l.b16 %v1996
        %v2617 = vunpack.c.h.b16 %v1996
        %v2618 = vunpack.c.l.b16 %v1997
        %v2619 = vunpack.c.h.b16 %v1997
        %v2620 = vunpack.c.l.b16 %v1998
        %v2621 = vunpack.c.h.b16 %v1998
        %v2622 = vunpack.c.l.b16 %v1999
        %v2623 = vunpack.c.h.b16 %v1999
        %v2624 = vunpack.c.l.b16 %v2000
        %v2625 = vunpack.c.h.b16 %v2000
        %v2626 = vunpack.c.l.b16 %v2001
        %v2627 = vunpack.c.h.b16 %v2001
        %v2628 = vunpack.c.l.b16 %v2002
        %v2629 = vunpack.c.h.b16 %v2002
        %v2630 = vunpack.c.l.b16 %v2003
        %v2631 = vunpack.c.h.b16 %v2003
        %v2632 = vunpack.c.l.b16 %v2004
        %v2633 = vunpack.c.h.b16 %v2004
        %v2634 = vunpack.c.l.b16 %v2005
        %v2635 = vunpack.c.h.b16 %v2005
        %v2636 = vunpack.c.l.b16 %v2006
        %v2637 = vunpack.c.h.b16 %v2006
        %v2638 = vunpack.c.l.b16 %v2007
        %v2639 = vunpack.c.h.b16 %v2007
        %v2640 = vunpack.c.l.b16 %v2008
        %v2641 = vunpack.c.h.b16 %v2008
        %v2642 = vunpack.c.l.b16 %v2009
        %v2643 = vunpack.c.h.b16 %v2009
        %v2644 = vunpack.c.l.b16 %v2010
        %v2645 = vunpack.c.h.b16 %v2010
        %v2646 = vunpack.c.l.b16 %v2011
        %v2647 = vunpack.c.h.b16 %v2011
        %v2648 = vunpack.c.l.b16 %v2012
        %v2649 = vunpack.c.h.b16 %v2012
        %v2650 = vunpack.c.l.b16 %v2013
        %v2651 = vunpack.c.h.b16 %v2013
        %v2652 = vunpack.c.l.b16 %v2014
        %v2653 = vunpack.c.h.b16 %v2014
        %v2654 = vunpack.c.l.b16 %v2015
        %v2655 = vunpack.c.h.b16 %v2015
        %v2656 = vunpack.c.l.b16 %v2016
        %v2657 = vunpack.c.h.b16 %v2016
        %v2658 = vunpack.c.l.b16 %v2017
        %v2659 = vunpack.c.h.b16 %v2017
        %v2660 = vunpack.c.l.b16 %v2018
        %v2661 = vunpack.c.h.b16 %v2018
        %v2662 = vunpack.c.l.b16 %v2019
        %v2663 = vunpack.c.h.b16 %v2019
        %v2664 = vunpack.c.l.b16 %v2020
        %v2665 = vunpack.c.h.b16 %v2020
        %v2666 = vunpack.c.l.b16 %v2021
        %v2667 = vunpack.c.h.b16 %v2021
        %v2668 = vunpack.c.l.b16 %v2022
        %v2669 = vunpack.c.h.b16 %v2022
        %v2670 = vunpack.c.l.b16 %v2023
        %v2671 = vunpack.c.h.b16 %v2023
        %v2672 = vunpack.c.l.b16 %v2024
        %v2673 = vunpack.c.h.b16 %v2024
        %v2674 = vunpack.c.l.b16 %v2025
        %v2675 = vunpack.c.h.b16 %v2025
        %v2676 = vunpack.c.l.b16 %v2026
        %v2677 = vunpack.c.h.b16 %v2026
        %v2678 = vunpack.c.l.b16 %v2027
        %v2679 = vunpack.c.h.b16 %v2027
        %v2680 = vunpack.c.l.b16 %v2028
        %v2681 = vunpack.c.h.b16 %v2028
        %v2682 = vunpack.c.l.b16 %v2029
        %v2683 = vunpack.c.h.b16 %v2029
        %v2684 = vunpack.c.l.b16 %v2030
        %v2685 = vunpack.c.h.b16 %v2030
        %v2686 = vunpack.c.l.b16 %v2031
        %v2687 = vunpack.c.h.b16 %v2031
        %v2688 = vunpack.c.l.b16 %v2032
        %v2689 = vunpack.c.h.b16 %v2032
        %v2690 = vunpack.c.l.b16 %v2033
        %v2691 = vunpack.c.h.b16 %v2033
        %v2692 = vunpack.c.l.b16 %v2034
        %v2693 = vunpack.c.h.b16 %v2034
        %v2694 = vunpack.c.l.b16 %v2035
        %v2695 = vunpack.c.h.b16 %v2035
        %v2696 = vunpack.c.l.b16 %v2036
        %v2697 = vunpack.c.h.b16 %v2036
        %v2698 = vunpack.c.l.b16 %v2037
        %v2699 = vunpack.c.h.b16 %v2037
        %v2700 = vunpack.c.l.b16 %v2038
        %v2701 = vunpack.c.h.b16 %v2038
        %v2702 = vunpack.c.l.b16 %v2039
        %v2703 = vunpack.c.h.b16 %v2039
        %v2704 = vunpack.c.l.b16 %v2040
        %v2705 = vunpack.c.h.b16 %v2040
        %v2706 = vunpack.c.l.b16 %v2041
        %v2707 = vunpack.c.h.b16 %v2041
        %v2708 = vunpack.c.l.b16 %v2042
        %v2709 = vunpack.c.h.b16 %v2042
        %v2710 = vunpack.c.l.b16 %v2043
        %v2711 = vunpack.c.h.b16 %v2043
        %v2712 = vunpack.c.l.b16 %v2044
        %v2713 = vunpack.c.h.b16 %v2044
        %v2714 = vunpack.c.l.b16 %v2045
        %v2715 = vunpack.c.h.b16 %v2045
        %v2716 = vunpack.c.l.b16 %v2046
        %v2717 = vunpack.c.h.b16 %v2046
        %v2718 = vunpack.c.l.b16 %v2047
        %v2719 = vunpack.c.h.b16 %v2047
        %v2720 = vunpack.c.l.b16 %v2048
        %v2721 = vunpack.c.h.b16 %v2048
        %v2722 = vunpack.c.l.b16 %v2049
        %v2723 = vunpack.c.h.b16 %v2049
        %v2724 = vunpack.c.l.b16 %v2050
        %v2725 = vunpack.c.h.b16 %v2050
        %v2726 = vunpack.c.l.b16 %v2051
        %v2727 = vunpack.c.h.b16 %v2051
        %v2728 = vunpack.c.l.b16 %v2052
        %v2729 = vunpack.c.h.b16 %v2052
        %v2730 = vunpack.c.l.b16 %v2053
        %v2731 = vunpack.c.h.b16 %v2053
        %v2732 = vunpack.c.l.b16 %v2054
        %v2733 = vunpack.c.h.b16 %v2054
        %v2734 = vunpack.c.l.b16 %v2055
        %v2735 = vunpack.c.h.b16 %v2055
        %v2736 = vunpack.c.l.b16 %v2056
        %v2737 = vunpack.c.h.b16 %v2056
        %v2738 = vunpack.c.l.b16 %v2057
        %v2739 = vunpack.c.h.b16 %v2057
        %v2740 = vunpack.c.l.b16 %v2058
        %v2741 = vunpack.c.h.b16 %v2058
        %v2742 = vunpack.c.l.b16 %v2059
        %v2743 = vunpack.c.h.b16 %v2059
        %v2744 = vunpack.c.l.b16 %v2060
        %v2745 = vunpack.c.h.b16 %v2060
        %v2746 = vunpack.c.l.b16 %v2061
        %v2747 = vunpack.c.h.b16 %v2061
        %v2748 = vunpack.c.l.b16 %v2062
        %v2749 = vunpack.c.h.b16 %v2062
        %v2750 = vunpack.c.l.b16 %v2063
        %v2751 = vunpack.c.h.b16 %v2063
        %v2752 = vunpack.c.l.b16 %v2064
        %v2753 = vunpack.c.h.b16 %v2064
        %v2754 = vunpack.c.l.b16 %v2065
        %v2755 = vunpack.c.h.b16 %v2065
        %v2756 = vunpack.c.l.b16 %v2066
        %v2757 = vunpack.c.h.b16 %v2066
        %v2758 = vunpack.c.l.b16 %v2067
        %v2759 = vunpack.c.h.b16 %v2067
        %v2760 = vunpack.c.l.b16 %v2068
        %v2761 = vunpack.c.h.b16 %v2068
        %v2762 = vunpack.c.l.b16 %v2069
        %v2763 = vunpack.c.h.b16 %v2069
        %v2764 = vunpack.c.l.b16 %v2070
        %v2765 = vunpack.c.h.b16 %v2070
        %v2766 = vunpack.c.l.b16 %v2071
        %v2767 = vunpack.c.h.b16 %v2071
        %v2768 = vunpack.c.l.b16 %v2072
        %v2769 = vunpack.c.h.b16 %v2072
        %v2770 = vunpack.c.l.b16 %v2073
        %v2771 = vunpack.c.h.b16 %v2073
        %v2772 = vunpack.c.l.b16 %v2074
        %v2773 = vunpack.c.h.b16 %v2074
        %v2774 = vunpack.c.l.b16 %v2075
        %v2775 = vunpack.c.h.b16 %v2075
        %v2776 = vunpack.c.l.b16 %v2076
        %v2777 = vunpack.c.h.b16 %v2076
        %v2778 = vunpack.c.l.b16 %v2077
        %v2779 = vunpack.c.h.b16 %v2077
        %v2780 = vunpack.c.l.b16 %v2078
        %v2781 = vunpack.c.h.b16 %v2078
        %v2782 = vunpack.c.l.b16 %v2079
        %v2783 = vunpack.c.h.b16 %v2079
        %v2784 = vunpack.c.l.b16 %v2080
        %v2785 = vunpack.c.h.b16 %v2080
        %v2786 = vunpack.c.l.b16 %v2081
        %v2787 = vunpack.c.h.b16 %v2081
        %v2788 = vunpack.c.l.b16 %v2082
        %v2789 = vunpack.c.h.b16 %v2082
        %v2790 = vunpack.c.l.b16 %v2083
        %v2791 = vunpack.c.h.b16 %v2083
        %v2792 = vunpack.c.l.b16 %v2084
        %v2793 = vunpack.c.h.b16 %v2084
        %v2794 = vunpack.c.l.b16 %v2085
        %v2795 = vunpack.c.h.b16 %v2085
        %v2796 = vunpack.c.l.b16 %v2086
        %v2797 = vunpack.c.h.b16 %v2086
        %v2798 = vunpack.c.l.b16 %v2087
        %v2799 = vunpack.c.h.b16 %v2087
        %v2800 = vunpack.c.l.b16 %v2088
        %v2801 = vunpack.c.h.b16 %v2088
        %v2802 = vunpack.c.l.b16 %v2089
        %v2803 = vunpack.c.h.b16 %v2089
        %v2804 = vunpack.c.l.b16 %v2090
        %v2805 = vunpack.c.h.b16 %v2090
        %v2806 = vunpack.c.l.b16 %v2091
        %v2807 = vunpack.c.h.b16 %v2091
        %v2808 = vunpack.c.l.b16 %v2092
        %v2809 = vunpack.c.h.b16 %v2092
        %v2810 = vunpack.c.l.b16 %v2093
        %v2811 = vunpack.c.h.b16 %v2093
        %v2812 = vunpack.c.l.b16 %v2094
        %v2813 = vunpack.c.h.b16 %v2094
        %v2814 = vunpack.c.l.b16 %v2095
        %v2815 = vunpack.c.h.b16 %v2095
        %v2816 = vunpack.c.l.b16 %v2096
        %v2817 = vunpack.c.h.b16 %v2096
        %v2818 = vunpack.c.l.b16 %v2097
        %v2819 = vunpack.c.h.b16 %v2097
        %v2820 = vunpack.c.l.b16 %v2098
        %v2821 = vunpack.c.h.b16 %v2098
        %v2822 = vunpack.c.l.b16 %v2099
        %v2823 = vunpack.c.h.b16 %v2099
        %v2824 = vunpack.c.l.b16 %v2100
        %v2825 = vunpack.c.h.b16 %v2100
        %v2826 = vunpack.c.l.b16 %v2101
        %v2827 = vunpack.c.h.b16 %v2101
        %v2828 = vunpack.c.l.b16 %v2102
        %v2829 = vunpack.c.h.b16 %v2102
        %v2830 = vunpack.c.l.b16 %v2103
        %v2831 = vunpack.c.h.b16 %v2103
        %v2832 = vunpack.c.l.b16 %v2104
        %v2833 = vunpack.c.h.b16 %v2104
        %v2834 = vunpack.c.l.b16 %v2105
        %v2835 = vunpack.c.h.b16 %v2105
        %v2836 = vunpack.c.l.b16 %v2106
        %v2837 = vunpack.c.h.b16 %v2106
        %v2838 = vunpack.c.l.b16 %v2107
        %v2839 = vunpack.c.h.b16 %v2107
        %v2840 = vunpack.c.l.b16 %v2108
        %v2841 = vunpack.c.h.b16 %v2108
        %v2842 = vunpack.c.l.b16 %v2109
        %v2843 = vunpack.c.h.b16 %v2109
        %v2844 = vunpack.c.l.b16 %v2110
        %v2845 = vunpack.c.h.b16 %v2110
        %v2846 = vunpack.c.l.b16 %v2111
        %v2847 = vunpack.c.h.b16 %v2111
        %v2848 = vunpack.c.l.b16 %v2112
        %v2849 = vunpack.c.h.b16 %v2112
        %v2850 = vunpack.c.l.b16 %v2113
        %v2851 = vunpack.c.h.b16 %v2113
        %v2852 = vunpack.c.l.b16 %v2114
        %v2853 = vunpack.c.h.b16 %v2114
        %v2854 = vunpack.c.l.b16 %v2115
        %v2855 = vunpack.c.h.b16 %v2115
        %v2856 = vunpack.c.l.b16 %v2116
        %v2857 = vunpack.c.h.b16 %v2116
        %v2858 = vunpack.c.l.b16 %v2117
        %v2859 = vunpack.c.h.b16 %v2117
        %v2860 = vunpack.c.l.b16 %v2118
        %v2861 = vunpack.c.h.b16 %v2118
        %v2862 = vunpack.c.l.b16 %v2119
        %v2863 = vunpack.c.h.b16 %v2119
        %v2864 = vunpack.c.l.b16 %v2120
        %v2865 = vunpack.c.h.b16 %v2120
        %v2866 = vunpack.c.l.b16 %v2121
        %v2867 = vunpack.c.h.b16 %v2121
        %v2868 = vunpack.c.l.b16 %v2122
        %v2869 = vunpack.c.h.b16 %v2122
        %v2870 = vunpack.c.l.b16 %v2123
        %v2871 = vunpack.c.h.b16 %v2123
        %v2872 = vunpack.c.l.b16 %v2124
        %v2873 = vunpack.c.h.b16 %v2124
        %v2874 = vunpack.c.l.b16 %v2125
        %v2875 = vunpack.c.h.b16 %v2125
        %v2876 = vunpack.c.l.b16 %v2126
        %v2877 = vunpack.c.h.b16 %v2126
        %v2878 = vunpack.c.l.b16 %v2127
        %v2879 = vunpack.c.h.b16 %v2127
        %v2880 = vunpack.c.l.b16 %v2128
        %v2881 = vunpack.c.h.b16 %v2128
        %v2882 = vunpack.c.l.b16 %v2129
        %v2883 = vunpack.c.h.b16 %v2129
        %v2884 = vunpack.c.l.b16 %v2130
        %v2885 = vunpack.c.h.b16 %v2130
        %v2886 = vunpack.c.l.b16 %v2131
        %v2887 = vunpack.c.h.b16 %v2131
        %v2888 = vunpack.c.l.b16 %v2132
        %v2889 = vunpack.c.h.b16 %v2132
        %v2890 = vunpack.c.l.b16 %v2133
        %v2891 = vunpack.c.h.b16 %v2133
        %v2892 = vunpack.c.l.b16 %v2134
        %v2893 = vunpack.c.h.b16 %v2134
        %v2894 = vunpack.c.l.b16 %v2135
        %v2895 = vunpack.c.h.b16 %v2135
        %v2896 = vunpack.c.l.b16 %v2136
        %v2897 = vunpack.c.h.b16 %v2136
        %v2898 = vunpack.c.l.b16 %v2137
        %v2899 = vunpack.c.h.b16 %v2137
        %v2900 = vunpack.c.l.b16 %v2138
        %v2901 = vunpack.c.h.b16 %v2138
        %v2902 = vunpack.c.l.b16 %v2139
        %v2903 = vunpack.c.h.b16 %v2139
        %v2904 = vunpack.c.l.b16 %v2140
        %v2905 = vunpack.c.h.b16 %v2140
        %v2906 = vunpack.c.l.b16 %v2141
        %v2907 = vunpack.c.h.b16 %v2141
        %v2908 = vunpack.c.l.b16 %v2142
        %v2909 = vunpack.c.h.b16 %v2142
        %v2910 = vunpack.c.l.b16 %v2143
        %v2911 = vunpack.c.h.b16 %v2143
        %v2912 = vunpack.c.l.b16 %v2144
        %v2913 = vunpack.c.h.b16 %v2144
        %v2914 = vunpack.c.l.b16 %v2145
        %v2915 = vunpack.c.h.b16 %v2145
        %v2916 = vunpack.c.l.b16 %v2146
        %v2917 = vunpack.c.h.b16 %v2146
        %v2918 = vunpack.c.l.b16 %v2147
        %v2919 = vunpack.c.h.b16 %v2147
        %v2920 = vunpack.c.l.b16 %v2148
        %v2921 = vunpack.c.h.b16 %v2148
        %v2922 = vunpack.c.l.b16 %v2149
        %v2923 = vunpack.c.h.b16 %v2149
        %v2924 = vunpack.c.l.b16 %v2150
        %v2925 = vunpack.c.h.b16 %v2150
        %v2926 = vunpack.c.l.b16 %v2151
        %v2927 = vunpack.c.h.b16 %v2151
        %v2928 = vunpack.c.l.b16 %v2152
        %v2929 = vunpack.c.h.b16 %v2152
        %v2930 = vunpack.c.l.b16 %v2153
        %v2931 = vunpack.c.h.b16 %v2153
        %v2932 = vunpack.c.l.b16 %v2154
        %v2933 = vunpack.c.h.b16 %v2154
        %v2934 = vunpack.c.l.b16 %v2155
        %v2935 = vunpack.c.h.b16 %v2155
        %v2936 = vunpack.c.l.b16 %v2156
        %v2937 = vunpack.c.h.b16 %v2156
        %v2938 = vunpack.c.l.b16 %v2157
        %v2939 = vunpack.c.h.b16 %v2157
        %v2940 = vunpack.c.l.b16 %v2158
        %v2941 = vunpack.c.h.b16 %v2158
        %v2942 = vunpack.c.l.b16 %v2159
        %v2943 = vunpack.c.h.b16 %v2159
        %v2944 = vunpack.c.l.b16 %v2160
        %v2945 = vunpack.c.h.b16 %v2160
        %v2946 = vunpack.c.l.b16 %v2161
        %v2947 = vunpack.c.h.b16 %v2161
        %v2948 = vpack.c.b16 %v2444, %v2436
        %v2949 = vpack.c.b16 %v2445, %v2437
        %v2950 = vpack.c.b16 %v2446, %v2438
        %v2951 = vpack.c.b16 %v2447, %v2439
        %v2952 = vpack.c.b16 %v2448, %v2440
        %v2953 = vpack.c.b16 %v2449, %v2441
        %v2954 = vpack.c.b16 %v2450, %v2442
        %v2955 = vpack.c.b16 %v2451, %v2443
        %v2956 = vpack.c.b16 %v2460, %v2452
        %v2957 = vpack.c.b16 %v2461, %v2453
        %v2958 = vpack.c.b16 %v2462, %v2454
        %v2959 = vpack.c.b16 %v2463, %v2455
        %v2960 = vpack.c.b16 %v2464, %v2456
        %v2961 = vpack.c.b16 %v2465, %v2457
        %v2962 = vpack.c.b16 %v2466, %v2458
        %v2963 = vpack.c.b16 %v2467, %v2459
        %v2964 = vpack.c.b16 %v2476, %v2468
        %v2965 = vpack.c.b16 %v2477, %v2469
        %v2966 = vpack.c.b16 %v2478, %v2470
        %v2967 = vpack.c.b16 %v2479, %v2471
        %v2968 = vpack.c.b16 %v2480, %v2472
        %v2969 = vpack.c.b16 %v2481, %v2473
        %v2970 = vpack.c.b16 %v2482, %v2474
        %v2971 = vpack.c.b16 %v2483, %v2475
        %v2972 = vpack.c.b16 %v2492, %v2484
        %v2973 = vpack.c.b16 %v2493, %v2485
        %v2974 = vpack.c.b16 %v2494, %v2486
        %v2975 = vpack.c.b16 %v2495, %v2487
        %v2976 = vpack.c.b16 %v2496, %v2488
        %v2977 = vpack.c.b16 %v2497, %v2489
        %v2978 = vpack.c.b16 %v2498, %v2490
        %v2979 = vpack.c.b16 %v2499, %v2491
        %v2980 = vpack.c.b16 %v2508, %v2500
        %v2981 = vpack.c.b16 %v2509, %v2501
        %v2982 = vpack.c.b16 %v2510, %v2502
        %v2983 = vpack.c.b16 %v2511, %v2503
        %v2984 = vpack.c.b16 %v2512, %v2504
        %v2985 = vpack.c.b16 %v2513, %v2505
        %v2986 = vpack.c.b16 %v2514, %v2506
        %v2987 = vpack.c.b16 %v2515, %v2507
        %v2988 = vpack.c.b16 %v2524, %v2516
        %v2989 = vpack.c.b16 %v2525, %v2517
        %v2990 = vpack.c.b16 %v2526, %v2518
        %v2991 = vpack.c.b16 %v2527, %v2519
        %v2992 = vpack.c.b16 %v2528, %v2520
        %v2993 = vpack.c.b16 %v2529, %v2521
        %v2994 = vpack.c.b16 %v2530, %v2522
        %v2995 = vpack.c.b16 %v2531, %v2523
        %v2996 = vpack.c.b16 %v2540, %v2532
        %v2997 = vpack.c.b16 %v2541, %v2533
        %v2998 = vpack.c.b16 %v2542, %v2534
        %v2999 = vpack.c.b16 %v2543, %v2535
        %v3000 = vpack.c.b16 %v2544, %v2536
        %v3001 = vpack.c.b16 %v2545, %v2537
        %v3002 = vpack.c.b16 %v2546, %v2538
        %v3003 = vpack.c.b16 %v2547, %v2539
        %v3004 = vpack.c.b16 %v2556, %v2548
        %v3005 = vpack.c.b16 %v2557, %v2549
        %v3006 = vpack.c.b16 %v2558, %v2550
        %v3007 = vpack.c.b16 %v2559, %v2551
        %v3008 = vpack.c.b16 %v2560, %v2552
        %v3009 = vpack.c.b16 %v2561, %v2553
        %v3010 = vpack.c.b16 %v2562, %v2554
        %v3011 = vpack.c.b16 %v2563, %v2555
        %v3012 = vpack.c.b16 %v2572, %v2564
        %v3013 = vpack.c.b16 %v2573, %v2565
        %v3014 = vpack.c.b16 %v2574, %v2566
        %v3015 = vpack.c.b16 %v2575, %v2567
        %v3016 = vpack.c.b16 %v2576, %v2568
        %v3017 = vpack.c.b16 %v2577, %v2569
        %v3018 = vpack.c.b16 %v2578, %v2570
        %v3019 = vpack.c.b16 %v2579, %v2571
        %v3020 = vpack.c.b16 %v2588, %v2580
        %v3021 = vpack.c.b16 %v2589, %v2581
        %v3022 = vpack.c.b16 %v2590, %v2582
        %v3023 = vpack.c.b16 %v2591, %v2583
        %v3024 = vpack.c.b16 %v2592, %v2584
        %v3025 = vpack.c.b16 %v2593, %v2585
        %v3026 = vpack.c.b16 %v2594, %v2586
        %v3027 = vpack.c.b16 %v2595, %v2587
        %v3028 = vpack.c.b16 %v2604, %v2596
        %v3029 = vpack.c.b16 %v2605, %v2597
        %v3030 = vpack.c.b16 %v2606, %v2598
        %v3031 = vpack.c.b16 %v2607, %v2599
        %v3032 = vpack.c.b16 %v2608, %v2600
        %v3033 = vpack.c.b16 %v2609, %v2601
        %v3034 = vpack.c.b16 %v2610, %v2602
        %v3035 = vpack.c.b16 %v2611, %v2603
        %v3036 = vpack.c.b16 %v2620, %v2612
        %v3037 = vpack.c.b16 %v2621, %v2613
        %v3038 = vpack.c.b16 %v2622, %v2614
        %v3039 = vpack.c.b16 %v2623, %v2615
        %v3040 = vpack.c.b16 %v2624, %v2616
        %v3041 = vpack.c.b16 %v2625, %v2617
        %v3042 = vpack.c.b16 %v2626, %v2618
        %v3043 = vpack.c.b16 %v2627, %v2619
        %v3044 = vpack.c.b16 %v2636, %v2628
        %v3045 = vpack.c.b16 %v2637, %v2629
        %v3046 = vpack.c.b16 %v2638, %v2630
        %v3047 = vpack.c.b16 %v2639, %v2631
        %v3048 = vpack.c.b16 %v2640, %v2632
        %v3049 = vpack.c.b16 %v2641, %v2633
        %v3050 = vpack.c.b16 %v2642, %v2634
        %v3051 = vpack.c.b16 %v2643, %v2635
        %v3052 = vpack.c.b16 %v2652, %v2644
        %v3053 = vpack.c.b16 %v2653, %v2645
        %v3054 = vpack.c.b16 %v2654, %v2646
        %v3055 = vpack.c.b16 %v2655, %v2647
        %v3056 = vpack.c.b16 %v2656, %v2648
        %v3057 = vpack.c.b16 %v2657, %v2649
        %v3058 = vpack.c.b16 %v2658, %v2650
        %v3059 = vpack.c.b16 %v2659, %v2651
        %v3060 = vpack.c.b16 %v2668, %v2660
        %v3061 = vpack.c.b16 %v2669, %v2661
        %v3062 = vpack.c.b16 %v2670, %v2662
        %v3063 = vpack.c.b16 %v2671, %v2663
        %v3064 = vpack.c.b16 %v2672, %v2664
        %v3065 = vpack.c.b16 %v2673, %v2665
        %v3066 = vpack.c.b16 %v2674, %v2666
        %v3067 = vpack.c.b16 %v2675, %v2667
        %v3068 = vpack.c.b16 %v2684, %v2676
        %v3069 = vpack.c.b16 %v2685, %v2677
        %v3070 = vpack.c.b16 %v2686, %v2678
        %v3071 = vpack.c.b16 %v2687, %v2679
        %v3072 = vpack.c.b16 %v2688, %v2680
        %v3073 = vpack.c.b16 %v2689, %v2681
        %v3074 = vpack.c.b16 %v2690, %v2682
        %v3075 = vpack.c.b16 %v2691, %v2683
        %v3076 = vpack.c.b16 %v2700, %v2692
        %v3077 = vpack.c.b16 %v2701, %v2693
        %v3078 = vpack.c.b16 %v2702, %v2694
        %v3079 = vpack.c.b16 %v2703, %v2695
        %v3080 = vpack.c.b16 %v2704, %v2696
        %v3081 = vpack.c.b16 %v2705, %v2697
        %v3082 = vpack.c.b16 %v2706, %v2698
        %v3083 = vpack.c.b16 %v2707, %v2699
        %v3084 = vpack.c.b16 %v2716, %v2708
        %v3085 = vpack.c.b16 %v2717, %v2709
        %v3086 = vpack.c.b16 %v2718, %v2710
        %v3087 = vpack.c.b16 %v2719, %v2711
        %v3088 = vpack.c.b16 %v2720, %v2712
        %v3089 = vpack.c.b16 %v2721, %v2713
        %v3090 = vpack.c.b16 %v2722, %v2714
        %v3091 = vpack.c.b16 %v2723, %v2715
        %v3092 = vpack.c.b16 %v2732, %v2724
        %v3093 = vpack.c.b16 %v2733, %v2725
        %v3094 = vpack.c.b16 %v2734, %v2726
        %v3095 = vpack.c.b16 %v2735, %v2727
        %v3096 = vpack.c.b16 %v2736, %v2728
        %v3097 = vpack.c.b16 %v2737, %v2729
        %v3098 = vpack.c.b16 %v2738, %v2730
        %v3099 = vpack.c.b16 %v2739, %v2731
        %v3100 = vpack.c.b16 %v2748, %v2740
        %v3101 = vpack.c.b16 %v2749, %v2741
        %v3102 = vpack.c.b16 %v2750, %v2742
        %v3103 = vpack.c.b16 %v2751, %v2743
        %v3104 = vpack.c.b16 %v2752, %v2744
        %v3105 = vpack.c.b16 %v2753, %v2745
        %v3106 = vpack.c.b16 %v2754, %v2746
        %v3107 = vpack.c.b16 %v2755, %v2747
        %v3108 = vpack.c.b16 %v2764, %v2756
        %v3109 = vpack.c.b16 %v2765, %v2757
        %v3110 = vpack.c.b16 %v2766, %v2758
        %v3111 = vpack.c.b16 %v2767, %v2759
        %v3112 = vpack.c.b16 %v2768, %v2760
        %v3113 = vpack.c.b16 %v2769, %v2761
        %v3114 = vpack.c.b16 %v2770, %v2762
        %v3115 = vpack.c.b16 %v2771, %v2763
        %v3116 = vpack.c.b16 %v2780, %v2772
        %v3117 = vpack.c.b16 %v2781, %v2773
        %v3118 = vpack.c.b16 %v2782, %v2774
        %v3119 = vpack.c.b16 %v2783, %v2775
        %v3120 = vpack.c.b16 %v2784, %v2776
        %v3121 = vpack.c.b16 %v2785, %v2777
        %v3122 = vpack.c.b16 %v2786, %v2778
        %v3123 = vpack.c.b16 %v2787, %v2779
        %v3124 = vpack.c.b16 %v2796, %v2788
        %v3125 = vpack.c.b16 %v2797, %v2789
        %v3126 = vpack.c.b16 %v2798, %v2790
        %v3127 = vpack.c.b16 %v2799, %v2791
        %v3128 = vpack.c.b16 %v2800, %v2792
        %v3129 = vpack.c.b16 %v2801, %v2793
        %v3130 = vpack.c.b16 %v2802, %v2794
        %v3131 = vpack.c.b16 %v2803, %v2795
        %v3132 = vpack.c.b16 %v2812, %v2804
        %v3133 = vpack.c.b16 %v2813, %v2805
        %v3134 = vpack.c.b16 %v2814, %v2806
        %v3135 = vpack.c.b16 %v2815, %v2807
        %v3136 = vpack.c.b16 %v2816, %v2808
        %v3137 = vpack.c.b16 %v2817, %v2809
        %v3138 = vpack.c.b16 %v2818, %v2810
        %v3139 = vpack.c.b16 %v2819, %v2811
        %v3140 = vpack.c.b16 %v2828, %v2820
        %v3141 = vpack.c.b16 %v2829, %v2821
        %v3142 = vpack.c.b16 %v2830, %v2822
        %v3143 = vpack.c.b16 %v2831, %v2823
        %v3144 = vpack.c.b16 %v2832, %v2824
        %v3145 = vpack.c.b16 %v2833, %v2825
        %v3146 = vpack.c.b16 %v2834, %v2826
        %v3147 = vpack.c.b16 %v2835, %v2827
        %v3148 = vpack.c.b16 %v2844, %v2836
        %v3149 = vpack.c.b16 %v2845, %v2837
        %v3150 = vpack.c.b16 %v2846, %v2838
        %v3151 = vpack.c.b16 %v2847, %v2839
        %v3152 = vpack.c.b16 %v2848, %v2840
        %v3153 = vpack.c.b16 %v2849, %v2841
        %v3154 = vpack.c.b16 %v2850, %v2842
        %v3155 = vpack.c.b16 %v2851, %v2843
        %v3156 = vpack.c.b16 %v2860, %v2852
        %v3157 = vpack.c.b16 %v2861, %v2853
        %v3158 = vpack.c.b16 %v2862, %v2854
        %v3159 = vpack.c.b16 %v2863, %v2855
        %v3160 = vpack.c.b16 %v2864, %v2856
        %v3161 = vpack.c.b16 %v2865, %v2857
        %v3162 = vpack.c.b16 %v2866, %v2858
        %v3163 = vpack.c.b16 %v2867, %v2859
        %v3164 = vpack.c.b16 %v2876, %v2868
        %v3165 = vpack.c.b16 %v2877, %v2869
        %v3166 = vpack.c.b16 %v2878, %v2870
        %v3167 = vpack.c.b16 %v2879, %v2871
        %v3168 = vpack.c.b16 %v2880, %v2872
        %v3169 = vpack.c.b16 %v2881, %v2873
        %v3170 = vpack.c.b16 %v2882, %v2874
        %v3171 = vpack.c.b16 %v2883, %v2875
        %v3172 = vpack.c.b16 %v2892, %v2884
        %v3173 = vpack.c.b16 %v2893, %v2885
        %v3174 = vpack.c.b16 %v2894, %v2886
        %v3175 = vpack.c.b16 %v2895, %v2887
        %v3176 = vpack.c.b16 %v2896, %v2888
        %v3177 = vpack.c.b16 %v2897, %v2889
        %v3178 = vpack.c.b16 %v2898, %v2890
        %v3179 = vpack.c.b16 %v2899, %v2891
        %v3180 = vpack.c.b16 %v2908, %v2900
        %v3181 = vpack.c.b16 %v2909, %v2901
        %v3182 = vpack.c.b16 %v2910, %v2902
        %v3183 = vpack.c.b16 %v2911, %v2903
        %v3184 = vpack.c.b16 %v2912, %v2904
        %v3185 = vpack.c.b16 %v2913, %v2905
        %v3186 = vpack.c.b16 %v2914, %v2906
        %v3187 = vpack.c.b16 %v2915, %v2907
        %v3188 = vpack.c.b16 %v2924, %v2916
        %v3189 = vpack.c.b16 %v2925, %v2917
        %v3190 = vpack.c.b16 %v2926, %v2918
        %v3191 = vpack.c.b16 %v2927, %v2919
        %v3192 = vpack.c.b16 %v2928, %v2920
        %v3193 = vpack.c.b16 %v2929, %v2921
        %v3194 = vpack.c.b16 %v2930, %v2922
        %v3195 = vpack.c.b16 %v2931, %v2923
        %v3196 = vpack.c.b16 %v2940, %v2932
        %v3197 = vpack.c.b16 %v2941, %v2933
        %v3198 = vpack.c.b16 %v2942, %v2934
        %v3199 = vpack.c.b16 %v2943, %v2935
        %v3200 = vpack.c.b16 %v2944, %v2936
        %v3201 = vpack.c.b16 %v2945, %v2937
        %v3202 = vpack.c.b16 %v2946, %v2938
        %v3203 = vpack.c.b16 %v2947, %v2939
        %3460 = vmatpush.bf16.msra.mxu0 %v3004
        %3461 = vmatpush.bf16.msra.mxu0 %v2996
        %3462 = vmatpush.bf16.msra.mxu0 %v2988
        %3463 = vmatpush.bf16.msra.mxu0 %v2980
        %3464 = vmatpush.bf16.msra.mxu0 %v2972
        %3465 = vmatpush.bf16.msra.mxu0 %v2964
        %3466 = vmatpush.bf16.msra.mxu0 %v2956
        %3467 = vmatpush.bf16.msra.mxu0 %v2948
        %3468 = vmatmul.bf16.gmra.mxu0 %v1902
        %v3469 = vpop.f32.mrf.mxu0
        %v3470 = vadd.f32 %v2164, %v3469
        %v3471 = vpop.f32.mrf.mxu0
        %v3472 = vadd.f32 %v2164, %v3471
        %3473 = vdwg.mxu0
        %3474 = vmatpush.bf16.msra.mxu0 %v3068
        %3475 = vmatpush.bf16.msra.mxu0 %v3060
        %3476 = vmatpush.bf16.msra.mxu0 %v3052
        %3477 = vmatpush.bf16.msra.mxu0 %v3044
        %3478 = vmatpush.bf16.msra.mxu0 %v3036
        %3479 = vmatpush.bf16.msra.mxu0 %v3028
        %3480 = vmatpush.bf16.msra.mxu0 %v3020
        %3481 = vmatpush.bf16.msra.mxu0 %v3012
        %3482 = vmatmul.bf16.gmra.mxu0 %v1903
        %v3483 = vpop.f32.mrf.mxu0
        %v3484 = vadd.f32 %v3470, %v3483
        %v3485 = vpop.f32.mrf.mxu0
        %v3486 = vadd.f32 %v3472, %v3485
        %3487 = vdwg.mxu0
        %3488 = vmatpush.bf16.msra.mxu0 %v3132
        %3489 = vmatpush.bf16.msra.mxu0 %v3124
        %3490 = vmatpush.bf16.msra.mxu0 %v3116
        %3491 = vmatpush.bf16.msra.mxu0 %v3108
        %3492 = vmatpush.bf16.msra.mxu0 %v3100
        %3493 = vmatpush.bf16.msra.mxu0 %v3092
        %3494 = vmatpush.bf16.msra.mxu0 %v3084
        %3495 = vmatpush.bf16.msra.mxu0 %v3076
        %3496 = vmatmul.bf16.gmra.mxu0 %v1904
        %v3497 = vpop.f32.mrf.mxu0
        %v3498 = vadd.f32 %v3484, %v3497
        %v3499 = vpop.f32.mrf.mxu0
        %v3500 = vadd.f32 %v3486, %v3499
        %3501 = vdwg.mxu0
        %3502 = vmatpush.bf16.msra.mxu0 %v3196
        %3503 = vmatpush.bf16.msra.mxu0 %v3188
        %3504 = vmatpush.bf16.msra.mxu0 %v3180
        %3505 = vmatpush.bf16.msra.mxu0 %v3172
        %3506 = vmatpush.bf16.msra.mxu0 %v3164
        %3507 = vmatpush.bf16.msra.mxu0 %v3156
        %3508 = vmatpush.bf16.msra.mxu0 %v3148
        %3509 = vmatpush.bf16.msra.mxu0 %v3140
        %3510 = vmatmul.bf16.gmra.mxu0 %v1905
        %v3511 = vpop.f32.mrf.mxu0
        %v3512 = vadd.f32 %v3498, %v3511
        %v3513 = vpop.f32.mrf.mxu0
        %v3514 = vadd.f32 %v3500, %v3513
        %3515 = vdwg.mxu0
        %3516 = vmatpush.bf16.msra.mxu0 %v3005
        %3517 = vmatpush.bf16.msra.mxu0 %v2997
        %3518 = vmatpush.bf16.msra.mxu0 %v2989
        %3519 = vmatpush.bf16.msra.mxu0 %v2981
        %3520 = vmatpush.bf16.msra.mxu0 %v2973
        %3521 = vmatpush.bf16.msra.mxu0 %v2965
        %3522 = vmatpush.bf16.msra.mxu0 %v2957
        %3523 = vmatpush.bf16.msra.mxu0 %v2949
        %3524 = vmatmul.bf16.gmra.mxu0 %v1902
        %v3525 = vpop.f32.mrf.mxu0
        %v3526 = vadd.f32 %v2165, %v3525
        %v3527 = vpop.f32.mrf.mxu0
        %v3528 = vadd.f32 %v2165, %v3527
        %3529 = vdwg.mxu0
        %3530 = vmatpush.bf16.msra.mxu0 %v3069
        %3531 = vmatpush.bf16.msra.mxu0 %v3061
        %3532 = vmatpush.bf16.msra.mxu0 %v3053
        %3533 = vmatpush.bf16.msra.mxu0 %v3045
        %3534 = vmatpush.bf16.msra.mxu0 %v3037
        %3535 = vmatpush.bf16.msra.mxu0 %v3029
        %3536 = vmatpush.bf16.msra.mxu0 %v3021
        %3537 = vmatpush.bf16.msra.mxu0 %v3013
        %3538 = vmatmul.bf16.gmra.mxu0 %v1903
        %v3539 = vpop.f32.mrf.mxu0
        %v3540 = vadd.f32 %v3526, %v3539
        %v3541 = vpop.f32.mrf.mxu0
        %v3542 = vadd.f32 %v3528, %v3541
        %3543 = vdwg.mxu0
        %3544 = vmatpush.bf16.msra.mxu0 %v3133
        %3545 = vmatpush.bf16.msra.mxu0 %v3125
        %3546 = vmatpush.bf16.msra.mxu0 %v3117
        %3547 = vmatpush.bf16.msra.mxu0 %v3109
        %3548 = vmatpush.bf16.msra.mxu0 %v3101
        %3549 = vmatpush.bf16.msra.mxu0 %v3093
        %3550 = vmatpush.bf16.msra.mxu0 %v3085
        %3551 = vmatpush.bf16.msra.mxu0 %v3077
        %3552 = vmatmul.bf16.gmra.mxu0 %v1904
        %v3553 = vpop.f32.mrf.mxu0
        %v3554 = vadd.f32 %v3540, %v3553
        %v3555 = vpop.f32.mrf.mxu0
        %v3556 = vadd.f32 %v3542, %v3555
        %3557 = vdwg.mxu0
        %3558 = vmatpush.bf16.msra.mxu0 %v3197
        %3559 = vmatpush.bf16.msra.mxu0 %v3189
        %3560 = vmatpush.bf16.msra.mxu0 %v3181
        %3561 = vmatpush.bf16.msra.mxu0 %v3173
        %3562 = vmatpush.bf16.msra.mxu0 %v3165
        %3563 = vmatpush.bf16.msra.mxu0 %v3157
        %3564 = vmatpush.bf16.msra.mxu0 %v3149
        %3565 = vmatpush.bf16.msra.mxu0 %v3141
        %3566 = vmatmul.bf16.gmra.mxu0 %v1905
        %v3567 = vpop.f32.mrf.mxu0
        %v3568 = vadd.f32 %v3554, %v3567
        %v3569 = vpop.f32.mrf.mxu0
        %v3570 = vadd.f32 %v3556, %v3569
        %3571 = vdwg.mxu0
        %3572 = vmatpush.bf16.msra.mxu0 %v3006
        %3573 = vmatpush.bf16.msra.mxu0 %v2998
        %3574 = vmatpush.bf16.msra.mxu0 %v2990
        %3575 = vmatpush.bf16.msra.mxu0 %v2982
        %3576 = vmatpush.bf16.msra.mxu0 %v2974
        %3577 = vmatpush.bf16.msra.mxu0 %v2966
        %3578 = vmatpush.bf16.msra.mxu0 %v2958
        %3579 = vmatpush.bf16.msra.mxu0 %v2950
        %3580 = vmatmul.bf16.gmra.mxu0 %v1902
        %v3581 = vpop.f32.mrf.mxu0
        %v3582 = vadd.f32 %v2166, %v3581
        %v3583 = vpop.f32.mrf.mxu0
        %v3584 = vadd.f32 %v2166, %v3583
        %3585 = vdwg.mxu0
        %3586 = vmatpush.bf16.msra.mxu0 %v3070
        %3587 = vmatpush.bf16.msra.mxu0 %v3062
        %3588 = vmatpush.bf16.msra.mxu0 %v3054
        %3589 = vmatpush.bf16.msra.mxu0 %v3046
        %3590 = vmatpush.bf16.msra.mxu0 %v3038
        %3591 = vmatpush.bf16.msra.mxu0 %v3030
        %3592 = vmatpush.bf16.msra.mxu0 %v3022
        %3593 = vmatpush.bf16.msra.mxu0 %v3014
        %3594 = vmatmul.bf16.gmra.mxu0 %v1903
        %v3595 = vpop.f32.mrf.mxu0
        %v3596 = vadd.f32 %v3582, %v3595
        %v3597 = vpop.f32.mrf.mxu0
        %v3598 = vadd.f32 %v3584, %v3597
        %3599 = vdwg.mxu0
        %3600 = vmatpush.bf16.msra.mxu0 %v3134
        %3601 = vmatpush.bf16.msra.mxu0 %v3126
        %3602 = vmatpush.bf16.msra.mxu0 %v3118
        %3603 = vmatpush.bf16.msra.mxu0 %v3110
        %3604 = vmatpush.bf16.msra.mxu0 %v3102
        %3605 = vmatpush.bf16.msra.mxu0 %v3094
        %3606 = vmatpush.bf16.msra.mxu0 %v3086
        %3607 = vmatpush.bf16.msra.mxu0 %v3078
        %3608 = vmatmul.bf16.gmra.mxu0 %v1904
        %v3609 = vpop.f32.mrf.mxu0
        %v3610 = vadd.f32 %v3596, %v3609
        %v3611 = vpop.f32.mrf.mxu0
        %v3612 = vadd.f32 %v3598, %v3611
        %3613 = vdwg.mxu0
        %3614 = vmatpush.bf16.msra.mxu0 %v3198
        %3615 = vmatpush.bf16.msra.mxu0 %v3190
        %3616 = vmatpush.bf16.msra.mxu0 %v3182
        %3617 = vmatpush.bf16.msra.mxu0 %v3174
        %3618 = vmatpush.bf16.msra.mxu0 %v3166
        %3619 = vmatpush.bf16.msra.mxu0 %v3158
        %3620 = vmatpush.bf16.msra.mxu0 %v3150
        %3621 = vmatpush.bf16.msra.mxu0 %v3142
        %3622 = vmatmul.bf16.gmra.mxu0 %v1905
        %v3623 = vpop.f32.mrf.mxu0
        %v3624 = vadd.f32 %v3610, %v3623
        %v3625 = vpop.f32.mrf.mxu0
        %v3626 = vadd.f32 %v3612, %v3625
        %3627 = vdwg.mxu0
        %3628 = vmatpush.bf16.msra.mxu0 %v3007
        %3629 = vmatpush.bf16.msra.mxu0 %v2999
        %3630 = vmatpush.bf16.msra.mxu0 %v2991
        %3631 = vmatpush.bf16.msra.mxu0 %v2983
        %3632 = vmatpush.bf16.msra.mxu0 %v2975
        %3633 = vmatpush.bf16.msra.mxu0 %v2967
        %3634 = vmatpush.bf16.msra.mxu0 %v2959
        %3635 = vmatpush.bf16.msra.mxu0 %v2951
        %3636 = vmatmul.bf16.gmra.mxu0 %v1902
        %v3637 = vpop.f32.mrf.mxu0
        %v3638 = vadd.f32 %v2167, %v3637
        %v3639 = vpop.f32.mrf.mxu0
        %v3640 = vadd.f32 %v2167, %v3639
        %3641 = vdwg.mxu0
        %3642 = vmatpush.bf16.msra.mxu0 %v3071
        %3643 = vmatpush.bf16.msra.mxu0 %v3063
        %3644 = vmatpush.bf16.msra.mxu0 %v3055
        %3645 = vmatpush.bf16.msra.mxu0 %v3047
        %3646 = vmatpush.bf16.msra.mxu0 %v3039
        %3647 = vmatpush.bf16.msra.mxu0 %v3031
        %3648 = vmatpush.bf16.msra.mxu0 %v3023
        %3649 = vmatpush.bf16.msra.mxu0 %v3015
        %3650 = vmatmul.bf16.gmra.mxu0 %v1903
        %v3651 = vpop.f32.mrf.mxu0
        %v3652 = vadd.f32 %v3638, %v3651
        %v3653 = vpop.f32.mrf.mxu0
        %v3654 = vadd.f32 %v3640, %v3653
        %3655 = vdwg.mxu0
        %3656 = vmatpush.bf16.msra.mxu0 %v3135
        %3657 = vmatpush.bf16.msra.mxu0 %v3127
        %3658 = vmatpush.bf16.msra.mxu0 %v3119
        %3659 = vmatpush.bf16.msra.mxu0 %v3111
        %3660 = vmatpush.bf16.msra.mxu0 %v3103
        %3661 = vmatpush.bf16.msra.mxu0 %v3095
        %3662 = vmatpush.bf16.msra.mxu0 %v3087
        %3663 = vmatpush.bf16.msra.mxu0 %v3079
        %3664 = vmatmul.bf16.gmra.mxu0 %v1904
        %v3665 = vpop.f32.mrf.mxu0
        %v3666 = vadd.f32 %v3652, %v3665
        %v3667 = vpop.f32.mrf.mxu0
        %v3668 = vadd.f32 %v3654, %v3667
        %3669 = vdwg.mxu0
        %3670 = vmatpush.bf16.msra.mxu0 %v3199
        %3671 = vmatpush.bf16.msra.mxu0 %v3191
        %3672 = vmatpush.bf16.msra.mxu0 %v3183
        %3673 = vmatpush.bf16.msra.mxu0 %v3175
        %3674 = vmatpush.bf16.msra.mxu0 %v3167
        %3675 = vmatpush.bf16.msra.mxu0 %v3159
        %3676 = vmatpush.bf16.msra.mxu0 %v3151
        %3677 = vmatpush.bf16.msra.mxu0 %v3143
        %3678 = vmatmul.bf16.gmra.mxu0 %v1905
        %v3679 = vpop.f32.mrf.mxu0
        %v3680 = vadd.f32 %v3666, %v3679
        %v3681 = vpop.f32.mrf.mxu0
        %v3682 = vadd.f32 %v3668, %v3681
        %3683 = vdwg.mxu0
        %3684 = vmatpush.bf16.msra.mxu0 %v3008
        %3685 = vmatpush.bf16.msra.mxu0 %v3000
        %3686 = vmatpush.bf16.msra.mxu0 %v2992
        %3687 = vmatpush.bf16.msra.mxu0 %v2984
        %3688 = vmatpush.bf16.msra.mxu0 %v2976
        %3689 = vmatpush.bf16.msra.mxu0 %v2968
        %3690 = vmatpush.bf16.msra.mxu0 %v2960
        %3691 = vmatpush.bf16.msra.mxu0 %v2952
        %3692 = vmatmul.bf16.gmra.mxu0 %v1902
        %v3693 = vpop.f32.mrf.mxu0
        %v3694 = vadd.f32 %v2168, %v3693
        %v3695 = vpop.f32.mrf.mxu0
        %v3696 = vadd.f32 %v2168, %v3695
        %3697 = vdwg.mxu0
        %3698 = vmatpush.bf16.msra.mxu0 %v3072
        %3699 = vmatpush.bf16.msra.mxu0 %v3064
        %3700 = vmatpush.bf16.msra.mxu0 %v3056
        %3701 = vmatpush.bf16.msra.mxu0 %v3048
        %3702 = vmatpush.bf16.msra.mxu0 %v3040
        %3703 = vmatpush.bf16.msra.mxu0 %v3032
        %3704 = vmatpush.bf16.msra.mxu0 %v3024
        %3705 = vmatpush.bf16.msra.mxu0 %v3016
        %3706 = vmatmul.bf16.gmra.mxu0 %v1903
        %v3707 = vpop.f32.mrf.mxu0
        %v3708 = vadd.f32 %v3694, %v3707
        %v3709 = vpop.f32.mrf.mxu0
        %v3710 = vadd.f32 %v3696, %v3709
        %3711 = vdwg.mxu0
        %3712 = vmatpush.bf16.msra.mxu0 %v3136
        %3713 = vmatpush.bf16.msra.mxu0 %v3128
        %3714 = vmatpush.bf16.msra.mxu0 %v3120
        %3715 = vmatpush.bf16.msra.mxu0 %v3112
        %3716 = vmatpush.bf16.msra.mxu0 %v3104
        %3717 = vmatpush.bf16.msra.mxu0 %v3096
        %3718 = vmatpush.bf16.msra.mxu0 %v3088
        %3719 = vmatpush.bf16.msra.mxu0 %v3080
        %3720 = vmatmul.bf16.gmra.mxu0 %v1904
        %v3721 = vpop.f32.mrf.mxu0
        %v3722 = vadd.f32 %v3708, %v3721
        %v3723 = vpop.f32.mrf.mxu0
        %v3724 = vadd.f32 %v3710, %v3723
        %3725 = vdwg.mxu0
        %3726 = vmatpush.bf16.msra.mxu0 %v3200
        %3727 = vmatpush.bf16.msra.mxu0 %v3192
        %3728 = vmatpush.bf16.msra.mxu0 %v3184
        %3729 = vmatpush.bf16.msra.mxu0 %v3176
        %3730 = vmatpush.bf16.msra.mxu0 %v3168
        %3731 = vmatpush.bf16.msra.mxu0 %v3160
        %3732 = vmatpush.bf16.msra.mxu0 %v3152
        %3733 = vmatpush.bf16.msra.mxu0 %v3144
        %3734 = vmatmul.bf16.gmra.mxu0 %v1905
        %v3735 = vpop.f32.mrf.mxu0
        %v3736 = vadd.f32 %v3722, %v3735
        %v3737 = vpop.f32.mrf.mxu0
        %v3738 = vadd.f32 %v3724, %v3737
        %3739 = vdwg.mxu0
        %3740 = vmatpush.bf16.msra.mxu0 %v3009
        %3741 = vmatpush.bf16.msra.mxu0 %v3001
        %3742 = vmatpush.bf16.msra.mxu0 %v2993
        %3743 = vmatpush.bf16.msra.mxu0 %v2985
        %3744 = vmatpush.bf16.msra.mxu0 %v2977
        %3745 = vmatpush.bf16.msra.mxu0 %v2969
        %3746 = vmatpush.bf16.msra.mxu0 %v2961
        %3747 = vmatpush.bf16.msra.mxu0 %v2953
        %3748 = vmatmul.bf16.gmra.mxu0 %v1902
        %v3749 = vpop.f32.mrf.mxu0
        %v3750 = vadd.f32 %v2169, %v3749
        %v3751 = vpop.f32.mrf.mxu0
        %v3752 = vadd.f32 %v2169, %v3751
        %3753 = vdwg.mxu0
        %3754 = vmatpush.bf16.msra.mxu0 %v3073
        %3755 = vmatpush.bf16.msra.mxu0 %v3065
        %3756 = vmatpush.bf16.msra.mxu0 %v3057
        %3757 = vmatpush.bf16.msra.mxu0 %v3049
        %3758 = vmatpush.bf16.msra.mxu0 %v3041
        %3759 = vmatpush.bf16.msra.mxu0 %v3033
        %3760 = vmatpush.bf16.msra.mxu0 %v3025
        %3761 = vmatpush.bf16.msra.mxu0 %v3017
        %3762 = vmatmul.bf16.gmra.mxu0 %v1903
        %v3763 = vpop.f32.mrf.mxu0
        %v3764 = vadd.f32 %v3750, %v3763
        %v3765 = vpop.f32.mrf.mxu0
        %v3766 = vadd.f32 %v3752, %v3765
        %3767 = vdwg.mxu0
        %3768 = vmatpush.bf16.msra.mxu0 %v3137
        %3769 = vmatpush.bf16.msra.mxu0 %v3129
        %3770 = vmatpush.bf16.msra.mxu0 %v3121
        %3771 = vmatpush.bf16.msra.mxu0 %v3113
        %3772 = vmatpush.bf16.msra.mxu0 %v3105
        %3773 = vmatpush.bf16.msra.mxu0 %v3097
        %3774 = vmatpush.bf16.msra.mxu0 %v3089
        %3775 = vmatpush.bf16.msra.mxu0 %v3081
        %3776 = vmatmul.bf16.gmra.mxu0 %v1904
        %v3777 = vpop.f32.mrf.mxu0
        %v3778 = vadd.f32 %v3764, %v3777
        %v3779 = vpop.f32.mrf.mxu0
        %v3780 = vadd.f32 %v3766, %v3779
        %3781 = vdwg.mxu0
        %3782 = vmatpush.bf16.msra.mxu0 %v3201
        %3783 = vmatpush.bf16.msra.mxu0 %v3193
        %3784 = vmatpush.bf16.msra.mxu0 %v3185
        %3785 = vmatpush.bf16.msra.mxu0 %v3177
        %3786 = vmatpush.bf16.msra.mxu0 %v3169
        %3787 = vmatpush.bf16.msra.mxu0 %v3161
        %3788 = vmatpush.bf16.msra.mxu0 %v3153
        %3789 = vmatpush.bf16.msra.mxu0 %v3145
        %3790 = vmatmul.bf16.gmra.mxu0 %v1905
        %v3791 = vpop.f32.mrf.mxu0
        %v3792 = vadd.f32 %v3778, %v3791
        %v3793 = vpop.f32.mrf.mxu0
        %v3794 = vadd.f32 %v3780, %v3793
        %3795 = vdwg.mxu0
        %3796 = vmatpush.bf16.msra.mxu0 %v3010
        %3797 = vmatpush.bf16.msra.mxu0 %v3002
        %3798 = vmatpush.bf16.msra.mxu0 %v2994
        %3799 = vmatpush.bf16.msra.mxu0 %v2986
        %3800 = vmatpush.bf16.msra.mxu0 %v2978
        %3801 = vmatpush.bf16.msra.mxu0 %v2970
        %3802 = vmatpush.bf16.msra.mxu0 %v2962
        %3803 = vmatpush.bf16.msra.mxu0 %v2954
        %3804 = vmatmul.bf16.gmra.mxu0 %v1902
        %v3805 = vpop.f32.mrf.mxu0
        %v3806 = vadd.f32 %v2170, %v3805
        %v3807 = vpop.f32.mrf.mxu0
        %v3808 = vadd.f32 %v2170, %v3807
        %3809 = vdwg.mxu0
        %3810 = vmatpush.bf16.msra.mxu0 %v3074
        %3811 = vmatpush.bf16.msra.mxu0 %v3066
        %3812 = vmatpush.bf16.msra.mxu0 %v3058
        %3813 = vmatpush.bf16.msra.mxu0 %v3050
        %3814 = vmatpush.bf16.msra.mxu0 %v3042
        %3815 = vmatpush.bf16.msra.mxu0 %v3034
        %3816 = vmatpush.bf16.msra.mxu0 %v3026
        %3817 = vmatpush.bf16.msra.mxu0 %v3018
        %3818 = vmatmul.bf16.gmra.mxu0 %v1903
        %v3819 = vpop.f32.mrf.mxu0
        %v3820 = vadd.f32 %v3806, %v3819
        %v3821 = vpop.f32.mrf.mxu0
        %v3822 = vadd.f32 %v3808, %v3821
        %3823 = vdwg.mxu0
        %3824 = vmatpush.bf16.msra.mxu0 %v3138
        %3825 = vmatpush.bf16.msra.mxu0 %v3130
        %3826 = vmatpush.bf16.msra.mxu0 %v3122
        %3827 = vmatpush.bf16.msra.mxu0 %v3114
        %3828 = vmatpush.bf16.msra.mxu0 %v3106
        %3829 = vmatpush.bf16.msra.mxu0 %v3098
        %3830 = vmatpush.bf16.msra.mxu0 %v3090
        %3831 = vmatpush.bf16.msra.mxu0 %v3082
        %3832 = vmatmul.bf16.gmra.mxu0 %v1904
        %v3833 = vpop.f32.mrf.mxu0
        %v3834 = vadd.f32 %v3820, %v3833
        %v3835 = vpop.f32.mrf.mxu0
        %v3836 = vadd.f32 %v3822, %v3835
        %3837 = vdwg.mxu0
        %3838 = vmatpush.bf16.msra.mxu0 %v3202
        %3839 = vmatpush.bf16.msra.mxu0 %v3194
        %3840 = vmatpush.bf16.msra.mxu0 %v3186
        %3841 = vmatpush.bf16.msra.mxu0 %v3178
        %3842 = vmatpush.bf16.msra.mxu0 %v3170
        %3843 = vmatpush.bf16.msra.mxu0 %v3162
        %3844 = vmatpush.bf16.msra.mxu0 %v3154
        %3845 = vmatpush.bf16.msra.mxu0 %v3146
        %3846 = vmatmul.bf16.gmra.mxu0 %v1905
        %v3847 = vpop.f32.mrf.mxu0
        %v3848 = vadd.f32 %v3834, %v3847
        %v3849 = vpop.f32.mrf.mxu0
        %v3850 = vadd.f32 %v3836, %v3849
        %3851 = vdwg.mxu0
        %3852 = vmatpush.bf16.msra.mxu0 %v3011
        %3853 = vmatpush.bf16.msra.mxu0 %v3003
        %3854 = vmatpush.bf16.msra.mxu0 %v2995
        %3855 = vmatpush.bf16.msra.mxu0 %v2987
        %3856 = vmatpush.bf16.msra.mxu0 %v2979
        %3857 = vmatpush.bf16.msra.mxu0 %v2971
        %3858 = vmatpush.bf16.msra.mxu0 %v2963
        %3859 = vmatpush.bf16.msra.mxu0 %v2955
        %3860 = vmatmul.bf16.gmra.mxu0 %v1902
        %v3861 = vpop.f32.mrf.mxu0
        %v3862 = vadd.f32 %v2171, %v3861
        %v3863 = vpop.f32.mrf.mxu0
        %v3864 = vadd.f32 %v2171, %v3863
        %3865 = vdwg.mxu0
        %3866 = vmatpush.bf16.msra.mxu0 %v3075
        %3867 = vmatpush.bf16.msra.mxu0 %v3067
        %3868 = vmatpush.bf16.msra.mxu0 %v3059
        %3869 = vmatpush.bf16.msra.mxu0 %v3051
        %3870 = vmatpush.bf16.msra.mxu0 %v3043
        %3871 = vmatpush.bf16.msra.mxu0 %v3035
        %3872 = vmatpush.bf16.msra.mxu0 %v3027
        %3873 = vmatpush.bf16.msra.mxu0 %v3019
        %3874 = vmatmul.bf16.gmra.mxu0 %v1903
        %v3875 = vpop.f32.mrf.mxu0
        %v3876 = vadd.f32 %v3862, %v3875
        %v3877 = vpop.f32.mrf.mxu0
        %v3878 = vadd.f32 %v3864, %v3877
        %3879 = vdwg.mxu0
        %3880 = vmatpush.bf16.msra.mxu0 %v3139
        %3881 = vmatpush.bf16.msra.mxu0 %v3131
        %3882 = vmatpush.bf16.msra.mxu0 %v3123
        %3883 = vmatpush.bf16.msra.mxu0 %v3115
        %3884 = vmatpush.bf16.msra.mxu0 %v3107
        %3885 = vmatpush.bf16.msra.mxu0 %v3099
        %3886 = vmatpush.bf16.msra.mxu0 %v3091
        %3887 = vmatpush.bf16.msra.mxu0 %v3083
        %3888 = vmatmul.bf16.gmra.mxu0 %v1904
        %v3889 = vpop.f32.mrf.mxu0
        %v3890 = vadd.f32 %v3876, %v3889
        %v3891 = vpop.f32.mrf.mxu0
        %v3892 = vadd.f32 %v3878, %v3891
        %3893 = vdwg.mxu0
        %3894 = vmatpush.bf16.msra.mxu0 %v3203
        %3895 = vmatpush.bf16.msra.mxu0 %v3195
        %3896 = vmatpush.bf16.msra.mxu0 %v3187
        %3897 = vmatpush.bf16.msra.mxu0 %v3179
        %3898 = vmatpush.bf16.msra.mxu0 %v3171
        %3899 = vmatpush.bf16.msra.mxu0 %v3163
        %3900 = vmatpush.bf16.msra.mxu0 %v3155
        %3901 = vmatpush.bf16.msra.mxu0 %v3147
        %3902 = vmatmul.bf16.gmra.mxu0 %v1905
        %v3903 = vpop.f32.mrf.mxu0
        %v3904 = vadd.f32 %v3890, %v3903
        %v3905 = vpop.f32.mrf.mxu0
        %v3906 = vadd.f32 %v3892, %v3905
        %3907 = vdwg.mxu0
        %v3908 = vld [vmem:[#allocation19] sm:$0xff]
        %v3909 = vld [vmem:[#allocation21] sm:$0xff]
        %v3910 = vadd.f32 %v3512, %v3514
        %v3911 = vrot.slane %v3910, 4
        %v3912 = vadd.f32 %v3910, %v3911
        %v3913 = vrot.slane %v3912, 2
        %v3914 = vadd.f32 %v3912, %v3913
        %v3915 = vrot.slane %v3914, 1
        %v3916 = vadd.f32 %v3914, %v3915
        %v3917 = vadd.f32 %v3568, %v3570
        %v3918 = vrot.slane %v3917, 4
        %v3919 = vadd.f32 %v3917, %v3918
        %v3920 = vrot.slane %v3919, 2
        %v3921 = vadd.f32 %v3919, %v3920
        %v3922 = vrot.slane %v3921, 1
        %v3923 = vadd.f32 %v3921, %v3922
        %v3924 = vadd.f32 %v3624, %v3626
        %v3925 = vrot.slane %v3924, 4
        %v3926 = vadd.f32 %v3924, %v3925
        %v3927 = vrot.slane %v3926, 2
        %v3928 = vadd.f32 %v3926, %v3927
        %v3929 = vrot.slane %v3928, 1
        %v3930 = vadd.f32 %v3928, %v3929
        %v3931 = vadd.f32 %v3680, %v3682
        %v3932 = vrot.slane %v3931, 4
        %v3933 = vadd.f32 %v3931, %v3932
        %v3934 = vrot.slane %v3933, 2
        %v3935 = vadd.f32 %v3933, %v3934
        %v3936 = vrot.slane %v3935, 1
        %v3937 = vadd.f32 %v3935, %v3936
        %v3938 = vadd.f32 %v3736, %v3738
        %v3939 = vrot.slane %v3938, 4
        %v3940 = vadd.f32 %v3938, %v3939
        %v3941 = vrot.slane %v3940, 2
        %v3942 = vadd.f32 %v3940, %v3941
        %v3943 = vrot.slane %v3942, 1
        %v3944 = vadd.f32 %v3942, %v3943
        %v3945 = vadd.f32 %v3792, %v3794
        %v3946 = vrot.slane %v3945, 4
        %v3947 = vadd.f32 %v3945, %v3946
        %v3948 = vrot.slane %v3947, 2
        %v3949 = vadd.f32 %v3947, %v3948
        %v3950 = vrot.slane %v3949, 1
        %v3951 = vadd.f32 %v3949, %v3950
        %v3952 = vadd.f32 %v3848, %v3850
        %v3953 = vrot.slane %v3952, 4
        %v3954 = vadd.f32 %v3952, %v3953
        %v3955 = vrot.slane %v3954, 2
        %v3956 = vadd.f32 %v3954, %v3955
        %v3957 = vrot.slane %v3956, 1
        %v3958 = vadd.f32 %v3956, %v3957
        %v3959 = vadd.f32 %v3904, %v3906
        %v3960 = vrot.slane %v3959, 4
        %v3961 = vadd.f32 %v3959, %v3960
        %v3962 = vrot.slane %v3961, 2
        %v3963 = vadd.f32 %v3961, %v3962
        %v3964 = vrot.slane %v3963, 1
        %v3965 = vadd.f32 %v3963, %v3964
        %v3966 = vmul.f32 %v3916, %v1092
        %v3967 = vmul.f32 %v3923, %v1092
        %v3968 = vmul.f32 %v3930, %v1092
        %v3969 = vmul.f32 %v3937, %v1092
        %v3970 = vmul.f32 %v3944, %v1092
        %v3971 = vmul.f32 %v3951, %v1092
        %v3972 = vmul.f32 %v3958, %v1092
        %v3973 = vmul.f32 %v3965, %v1092
        %v3974 = vmul.f32 %v3512, %v3512
        %v3975 = vmul.f32 %v3568, %v3568
        %v3976 = vmul.f32 %v3624, %v3624
        %v3977 = vmul.f32 %v3680, %v3680
        %v3978 = vmul.f32 %v3736, %v3736
        %v3979 = vmul.f32 %v3792, %v3792
        %v3980 = vmul.f32 %v3848, %v3848
        %v3981 = vmul.f32 %v3904, %v3904
        %v3982 = vmul.f32 %v3514, %v3514
        %v3983 = vmul.f32 %v3570, %v3570
        %v3984 = vmul.f32 %v3626, %v3626
        %v3985 = vmul.f32 %v3682, %v3682
        %v3986 = vmul.f32 %v3738, %v3738
        %v3987 = vmul.f32 %v3794, %v3794
        %v3988 = vmul.f32 %v3850, %v3850
        %v3989 = vmul.f32 %v3906, %v3906
        %v3990 = vadd.f32 %v3974, %v3982
        %v3991 = vrot.slane %v3990, 4
        %v3992 = vadd.f32 %v3990, %v3991
        %v3993 = vrot.slane %v3992, 2
        %v3994 = vadd.f32 %v3992, %v3993
        %v3995 = vrot.slane %v3994, 1
        %v3996 = vadd.f32 %v3994, %v3995
        %v3997 = vadd.f32 %v3975, %v3983
        %v3998 = vrot.slane %v3997, 4
        %v3999 = vadd.f32 %v3997, %v3998
        %v4000 = vrot.slane %v3999, 2
        %v4001 = vadd.f32 %v3999, %v4000
        %v4002 = vrot.slane %v4001, 1
        %v4003 = vadd.f32 %v4001, %v4002
        %v4004 = vadd.f32 %v3976, %v3984
        %v4005 = vrot.slane %v4004, 4
        %v4006 = vadd.f32 %v4004, %v4005
        %v4007 = vrot.slane %v4006, 2
        %v4008 = vadd.f32 %v4006, %v4007
        %v4009 = vrot.slane %v4008, 1
        %v4010 = vadd.f32 %v4008, %v4009
        %v4011 = vadd.f32 %v3977, %v3985
        %v4012 = vrot.slane %v4011, 4
        %v4013 = vadd.f32 %v4011, %v4012
        %v4014 = vrot.slane %v4013, 2
        %v4015 = vadd.f32 %v4013, %v4014
        %v4016 = vrot.slane %v4015, 1
        %v4017 = vadd.f32 %v4015, %v4016
        %v4018 = vadd.f32 %v3978, %v3986
        %v4019 = vrot.slane %v4018, 4
        %v4020 = vadd.f32 %v4018, %v4019
        %v4021 = vrot.slane %v4020, 2
        %v4022 = vadd.f32 %v4020, %v4021
        %v4023 = vrot.slane %v4022, 1
        %v4024 = vadd.f32 %v4022, %v4023
        %v4025 = vadd.f32 %v3979, %v3987
        %v4026 = vrot.slane %v4025, 4
        %v4027 = vadd.f32 %v4025, %v4026
        %v4028 = vrot.slane %v4027, 2
        %v4029 = vadd.f32 %v4027, %v4028
        %v4030 = vrot.slane %v4029, 1
        %v4031 = vadd.f32 %v4029, %v4030
        %v4032 = vadd.f32 %v3980, %v3988
        %v4033 = vrot.slane %v4032, 4
        %v4034 = vadd.f32 %v4032, %v4033
        %v4035 = vrot.slane %v4034, 2
        %v4036 = vadd.f32 %v4034, %v4035
        %v4037 = vrot.slane %v4036, 1
        %v4038 = vadd.f32 %v4036, %v4037
        %v4039 = vadd.f32 %v3981, %v3989
        %v4040 = vrot.slane %v4039, 4
        %v4041 = vadd.f32 %v4039, %v4040
        %v4042 = vrot.slane %v4041, 2
        %v4043 = vadd.f32 %v4041, %v4042
        %v4044 = vrot.slane %v4043, 1
        %v4045 = vadd.f32 %v4043, %v4044
        %v4046 = vmul.f32 %v3996, %v1092
        %v4047 = vmul.f32 %v4003, %v1092
        %v4048 = vmul.f32 %v4010, %v1092
        %v4049 = vmul.f32 %v4017, %v1092
        %v4050 = vmul.f32 %v4024, %v1092
        %v4051 = vmul.f32 %v4031, %v1092
        %v4052 = vmul.f32 %v4038, %v1092
        %v4053 = vmul.f32 %v4045, %v1092
        %v4054 = vmul.f32 %v3966, %v3966
        %v4055 = vmul.f32 %v3967, %v3967
        %v4056 = vmul.f32 %v3968, %v3968
        %v4057 = vmul.f32 %v3969, %v3969
        %v4058 = vmul.f32 %v3970, %v3970
        %v4059 = vmul.f32 %v3971, %v3971
        %v4060 = vmul.f32 %v3972, %v3972
        %v4061 = vmul.f32 %v3973, %v3973
        %v4062 = vsub.f32 %v4046, %v4054
        %v4063 = vsub.f32 %v4047, %v4055
        %v4064 = vsub.f32 %v4048, %v4056
        %v4065 = vsub.f32 %v4049, %v4057
        %v4066 = vsub.f32 %v4050, %v4058
        %v4067 = vsub.f32 %v4051, %v4059
        %v4068 = vsub.f32 %v4052, %v4060
        %v4069 = vsub.f32 %v4053, %v4061
        %v4070 = vadd.f32 %v4062, 0.8
        %v4071 = vadd.f32 %v4063, 0.8
        %v4072 = vadd.f32 %v4064, 0.8
        %v4073 = vadd.f32 %v4065, 0.8
        %v4074 = vadd.f32 %v4066, 0.8
        %v4075 = vadd.f32 %v4067, 0.8
        %v4076 = vadd.f32 %v4068, 0.8
        %v4077 = vadd.f32 %v4069, 0.8
        %v4078 = vrsqrt.pop %v4070
        %v4079 = vmul.f32 %v4078, %v4070
        %v4080 = vmul.f32 %v4079, %v4078
        %v4081 = vmul.f32 0.5, %v4080
        %v4082 = vsub.f32 1.5, %v4081
        %v4083 = vmul.f32 %v4078, %v4082
        %vm4084 = vweird.f32 %v4070
        %vm4085 = vweird.f32 %v4078
        %vm4086 = vmor %vm4084, %vm4085
        %v4087 = vsel %vm4086, %v4078, %v4083
        %v4088 = vrsqrt.pop %v4071
        %v4089 = vmul.f32 %v4088, %v4071
        %v4090 = vmul.f32 %v4089, %v4088
        %v4091 = vmul.f32 0.5, %v4090
        %v4092 = vsub.f32 1.5, %v4091
        %v4093 = vmul.f32 %v4088, %v4092
        %vm4094 = vweird.f32 %v4071
        %vm4095 = vweird.f32 %v4088
        %vm4096 = vmor %vm4094, %vm4095
        %v4097 = vsel %vm4096, %v4088, %v4093
        %v4098 = vrsqrt.pop %v4072
        %v4099 = vmul.f32 %v4098, %v4072
        %v4100 = vmul.f32 %v4099, %v4098
        %v4101 = vmul.f32 0.5, %v4100
        %v4102 = vsub.f32 1.5, %v4101
        %v4103 = vmul.f32 %v4098, %v4102
        %vm4104 = vweird.f32 %v4072
        %vm4105 = vweird.f32 %v4098
        %vm4106 = vmor %vm4104, %vm4105
        %v4107 = vsel %vm4106, %v4098, %v4103
        %v4108 = vrsqrt.pop %v4073
        %v4109 = vmul.f32 %v4108, %v4073
        %v4110 = vmul.f32 %v4109, %v4108
        %v4111 = vmul.f32 0.5, %v4110
        %v4112 = vsub.f32 1.5, %v4111
        %v4113 = vmul.f32 %v4108, %v4112
        %vm4114 = vweird.f32 %v4073
        %vm4115 = vweird.f32 %v4108
        %vm4116 = vmor %vm4114, %vm4115
        %v4117 = vsel %vm4116, %v4108, %v4113
        %v4118 = vrsqrt.pop %v4074
        %v4119 = vmul.f32 %v4118, %v4074
        %v4120 = vmul.f32 %v4119, %v4118
        %v4121 = vmul.f32 0.5, %v4120
        %v4122 = vsub.f32 1.5, %v4121
        %v4123 = vmul.f32 %v4118, %v4122
        %vm4124 = vweird.f32 %v4074
        %vm4125 = vweird.f32 %v4118
        %vm4126 = vmor %vm4124, %vm4125
        %v4127 = vsel %vm4126, %v4118, %v4123
        %v4128 = vrsqrt.pop %v4075
        %v4129 = vmul.f32 %v4128, %v4075
        %v4130 = vmul.f32 %v4129, %v4128
        %v4131 = vmul.f32 0.5, %v4130
        %v4132 = vsub.f32 1.5, %v4131
        %v4133 = vmul.f32 %v4128, %v4132
        %vm4134 = vweird.f32 %v4075
        %vm4135 = vweird.f32 %v4128
        %vm4136 = vmor %vm4134, %vm4135
        %v4137 = vsel %vm4136, %v4128, %v4133
        %v4138 = vrsqrt.pop %v4076
        %v4139 = vmul.f32 %v4138, %v4076
        %v4140 = vmul.f32 %v4139, %v4138
        %v4141 = vmul.f32 0.5, %v4140
        %v4142 = vsub.f32 1.5, %v4141
        %v4143 = vmul.f32 %v4138, %v4142
        %vm4144 = vweird.f32 %v4076
        %vm4145 = vweird.f32 %v4138
        %vm4146 = vmor %vm4144, %vm4145
        %v4147 = vsel %vm4146, %v4138, %v4143
        %v4148 = vrsqrt.pop %v4077
        %v4149 = vmul.f32 %v4148, %v4077
        %v4150 = vmul.f32 %v4149, %v4148
        %v4151 = vmul.f32 0.5, %v4150
        %v4152 = vsub.f32 1.5, %v4151
        %v4153 = vmul.f32 %v4148, %v4152
        %vm4154 = vweird.f32 %v4077
        %vm4155 = vweird.f32 %v4148
        %vm4156 = vmor %vm4154, %vm4155
        %v4157 = vsel %vm4156, %v4148, %v4153
        %v4159 = vperm.slane %v3908, 0
        %v4160 = vperm.slane %v3908, 1
        %v4161 = vperm.slane %v3908, 2
        %v4162 = vperm.slane %v3908, 3
        %v4163 = vperm.slane %v3908, 4
        %v4164 = vperm.slane %v3908, 5
        %v4165 = vperm.slane %v3908, 6
        %v4166 = vperm.slane %v3908, 7
        %v4175 = vmul.f32 %v4087, %v4159
        %v4176 = vmul.f32 %v4097, %v4160
        %v4177 = vmul.f32 %v4107, %v4161
        %v4178 = vmul.f32 %v4117, %v4162
        %v4179 = vmul.f32 %v4127, %v4163
        %v4180 = vmul.f32 %v4137, %v4164
        %v4181 = vmul.f32 %v4147, %v4165
        %v4182 = vmul.f32 %v4157, %v4166
        %v4183 = vmul.f32 %v3966, %v4175
        %v4184 = vmul.f32 %v3967, %v4176
        %v4185 = vmul.f32 %v3968, %v4177
        %v4186 = vmul.f32 %v3969, %v4178
        %v4187 = vmul.f32 %v3970, %v4179
        %v4188 = vmul.f32 %v3971, %v4180
        %v4189 = vmul.f32 %v3972, %v4181
        %v4190 = vmul.f32 %v3973, %v4182
        %v4199 = vrot.slane %v4184, 7
        %v4200 = vrot.slane %v4185, 6
        %v4201 = vrot.slane %v4186, 5
        %v4202 = vrot.slane %v4187, 4
        %v4203 = vrot.slane %v4188, 3
        %v4204 = vrot.slane %v4189, 2
        %v4205 = vrot.slane %v4190, 1
        %v4206 = vsel %vm1153, %v4183, %v4199
        %v4207 = vsel %vm1843, %v4200, %v4201
        %v4208 = vsel %vm1845, %v4206, %v4207
        %vm4209 = vcmask 1044484
        %v4210 = vsel %vm4209, %v4202, %v4203
        %vm4211 = vcmask 1046534
        %v4212 = vsel %vm4211, %v4204, %v4205
        %vm4213 = vcmask 1045508
        %v4214 = vsel %vm4213, %v4210, %v4212
        %v4215 = vsel %vm909, %v4208, %v4214
        %v4217 = vsub.f32 %v3909, %v4215
        %v4218 = vperm.slane %v4175, 0
        %v4219 = vperm.slane %v4176, 0
        %v4220 = vperm.slane %v4177, 0
        %v4221 = vperm.slane %v4178, 0
        %v4222 = vperm.slane %v4179, 0
        %v4223 = vperm.slane %v4180, 0
        %v4224 = vperm.slane %v4181, 0
        %v4225 = vperm.slane %v4182, 0
        %v4226 = vmul.f32 %v3512, %v4218
        %v4227 = vmul.f32 %v3568, %v4219
        %v4228 = vmul.f32 %v3624, %v4220
        %v4229 = vmul.f32 %v3680, %v4221
        %v4230 = vmul.f32 %v3736, %v4222
        %v4231 = vmul.f32 %v3792, %v4223
        %v4232 = vmul.f32 %v3848, %v4224
        %v4233 = vmul.f32 %v3904, %v4225
        %v4234 = vmul.f32 %v3514, %v4218
        %v4235 = vmul.f32 %v3570, %v4219
        %v4236 = vmul.f32 %v3626, %v4220
        %v4237 = vmul.f32 %v3682, %v4221
        %v4238 = vmul.f32 %v3738, %v4222
        %v4239 = vmul.f32 %v3794, %v4223
        %v4240 = vmul.f32 %v3850, %v4224
        %v4241 = vmul.f32 %v3906, %v4225
        %v4243 = vperm.slane %v4217, 0
        %v4244 = vperm.slane %v4217, 1
        %v4245 = vperm.slane %v4217, 2
        %v4246 = vperm.slane %v4217, 3
        %v4247 = vperm.slane %v4217, 4
        %v4248 = vperm.slane %v4217, 5
        %v4249 = vperm.slane %v4217, 6
        %v4250 = vperm.slane %v4217, 7
        %v4259 = vadd.f32 %v4226, %v4243
        %v4260 = vadd.f32 %v4227, %v4244
        %v4261 = vadd.f32 %v4228, %v4245
        %v4262 = vadd.f32 %v4229, %v4246
        %v4263 = vadd.f32 %v4230, %v4247
        %v4264 = vadd.f32 %v4231, %v4248
        %v4265 = vadd.f32 %v4232, %v4249
        %v4266 = vadd.f32 %v4233, %v4250
        %v4267 = vadd.f32 %v4234, %v4243
        %v4268 = vadd.f32 %v4235, %v4244
        %v4269 = vadd.f32 %v4236, %v4245
        %v4270 = vadd.f32 %v4237, %v4246
        %v4271 = vadd.f32 %v4238, %v4247
        %v4272 = vadd.f32 %v4239, %v4248
        %v4273 = vadd.f32 %v4240, %v4249
        %v4274 = vadd.f32 %v4241, %v4250
        %vm4275 = vcmp.gt.f32.partialorder %v4259, 0.0
        %vm4276 = vcmp.gt.f32.partialorder %v4260, 0.0
        %vm4277 = vcmp.gt.f32.partialorder %v4261, 0.0
        %vm4278 = vcmp.gt.f32.partialorder %v4262, 0.0
        %vm4279 = vcmp.gt.f32.partialorder %v4263, 0.0
        %vm4280 = vcmp.gt.f32.partialorder %v4264, 0.0
        %vm4281 = vcmp.gt.f32.partialorder %v4265, 0.0
        %vm4282 = vcmp.gt.f32.partialorder %v4266, 0.0
        %vm4283 = vcmp.gt.f32.partialorder %v4267, 0.0
        %vm4284 = vcmp.gt.f32.partialorder %v4268, 0.0
        %vm4285 = vcmp.gt.f32.partialorder %v4269, 0.0
        %vm4286 = vcmp.gt.f32.partialorder %v4270, 0.0
        %vm4287 = vcmp.gt.f32.partialorder %v4271, 0.0
        %vm4288 = vcmp.gt.f32.partialorder %v4272, 0.0
        %vm4289 = vcmp.gt.f32.partialorder %v4273, 0.0
        %vm4290 = vcmp.gt.f32.partialorder %v4274, 0.0
        %v4291 = vmul.f32 %v4259, 0.2
        %v4292 = vmul.f32 %v4260, 0.2
        %v4293 = vmul.f32 %v4261, 0.2
        %v4294 = vmul.f32 %v4262, 0.2
        %v4295 = vmul.f32 %v4263, 0.2
        %v4296 = vmul.f32 %v4264, 0.2
        %v4297 = vmul.f32 %v4265, 0.2
        %v4298 = vmul.f32 %v4266, 0.2
        %v4299 = vmul.f32 %v4267, 0.2
        %v4300 = vmul.f32 %v4268, 0.2
        %v4301 = vmul.f32 %v4269, 0.2
        %v4302 = vmul.f32 %v4270, 0.2
        %v4303 = vmul.f32 %v4271, 0.2
        %v4304 = vmul.f32 %v4272, 0.2
        %v4305 = vmul.f32 %v4273, 0.2
        %v4306 = vmul.f32 %v4274, 0.2
        %v4307 = vsel %vm4275, %v4259, %v4291
        %v4308 = vsel %vm4276, %v4260, %v4292
        %v4309 = vsel %vm4277, %v4261, %v4293
        %v4310 = vsel %vm4278, %v4262, %v4294
        %v4311 = vsel %vm4279, %v4263, %v4295
        %v4312 = vsel %vm4280, %v4264, %v4296
        %v4313 = vsel %vm4281, %v4265, %v4297
        %v4314 = vsel %vm4282, %v4266, %v4298
        %v4315 = vsel %vm4283, %v4267, %v4299
        %v4316 = vsel %vm4284, %v4268, %v4300
        %v4317 = vsel %vm4285, %v4269, %v4301
        %v4318 = vsel %vm4286, %v4270, %v4302
        %v4319 = vsel %vm4287, %v4271, %v4303
        %v4320 = vsel %vm4288, %v4272, %v4304
        %v4321 = vsel %vm4289, %v4273, %v4305
        %v4322 = vsel %vm4290, %v4274, %v4306
        %v4323 = vpack.c.bf16 %v4315, %v4307
        %v4324 = vpack.c.bf16 %v4316, %v4308
        %v4325 = vpack.c.bf16 %v4317, %v4309
        %v4326 = vpack.c.bf16 %v4318, %v4310
        %v4327 = vpack.c.bf16 %v4319, %v4311
        %v4328 = vpack.c.bf16 %v4320, %v4312
        %v4329 = vpack.c.bf16 %v4321, %v4313
        %v4330 = vpack.c.bf16 %v4322, %v4314
        %v4331 = vld [vmem:[#allocation22] sm:$0xff]
        %v4332 = vld [vmem:[#allocation22 + $0x8] sm:$0xff]
        %v4333 = vld [vmem:[#allocation22 + $0x10] sm:$0xff]
        %v4334 = vld [vmem:[#allocation22 + $0x18] sm:$0xff]
        %v4335 = vld [vmem:[#allocation22 + $0x20] sm:$0xff]
        %v4336 = vld [vmem:[#allocation22 + $0x28] sm:$0xff]
        %v4337 = vld [vmem:[#allocation22 + $0x30] sm:$0xff]
        %v4338 = vld [vmem:[#allocation22 + $0x38] sm:$0xff]
        %v4339 = vld [vmem:[#allocation22 + $0x40] sm:$0xff]
        %v4340 = vld [vmem:[#allocation22 + $0x48] sm:$0xff]
        %v4341 = vld [vmem:[#allocation22 + $0x50] sm:$0xff]
        %v4342 = vld [vmem:[#allocation22 + $0x58] sm:$0xff]
        %v4343 = vld [vmem:[#allocation22 + $0x60] sm:$0xff]
        %v4344 = vld [vmem:[#allocation22 + $0x68] sm:$0xff]
        %v4345 = vld [vmem:[#allocation22 + $0x70] sm:$0xff]
        %v4346 = vld [vmem:[#allocation22 + $0x78] sm:$0xff]
        %v4347 = vld [vmem:[#allocation22 + $0x80] sm:$0xff]
        %v4348 = vld [vmem:[#allocation22 + $0x88] sm:$0xff]
        %v4349 = vld [vmem:[#allocation22 + $0x90] sm:$0xff]
        %v4350 = vld [vmem:[#allocation22 + $0x98] sm:$0xff]
        %v4351 = vld [vmem:[#allocation22 + $0xa0] sm:$0xff]
        %v4352 = vld [vmem:[#allocation22 + $0xa8] sm:$0xff]
        %v4353 = vld [vmem:[#allocation22 + $0xb0] sm:$0xff]
        %v4354 = vld [vmem:[#allocation22 + $0xb8] sm:$0xff]
        %v4355 = vld [vmem:[#allocation22 + $0xc0] sm:$0xff]
        %v4356 = vld [vmem:[#allocation22 + $0xc8] sm:$0xff]
        %v4357 = vld [vmem:[#allocation22 + $0xd0] sm:$0xff]
        %v4358 = vld [vmem:[#allocation22 + $0xd8] sm:$0xff]
        %v4359 = vld [vmem:[#allocation22 + $0xe0] sm:$0xff]
        %v4360 = vld [vmem:[#allocation22 + $0xe8] sm:$0xff]
        %v4361 = vld [vmem:[#allocation22 + $0xf0] sm:$0xff]
        %v4362 = vld [vmem:[#allocation22 + $0xf8] sm:$0xff]
        %v4363 = vld [vmem:[#allocation22 + $0x100] sm:$0xff]
        %v4364 = vld [vmem:[#allocation22 + $0x108] sm:$0xff]
        %v4365 = vld [vmem:[#allocation22 + $0x110] sm:$0xff]
        %v4366 = vld [vmem:[#allocation22 + $0x118] sm:$0xff]
        %v4367 = vld [vmem:[#allocation22 + $0x120] sm:$0xff]
        %v4368 = vld [vmem:[#allocation22 + $0x128] sm:$0xff]
        %v4369 = vld [vmem:[#allocation22 + $0x130] sm:$0xff]
        %v4370 = vld [vmem:[#allocation22 + $0x138] sm:$0xff]
        %v4371 = vld [vmem:[#allocation22 + $0x140] sm:$0xff]
        %v4372 = vld [vmem:[#allocation22 + $0x148] sm:$0xff]
        %v4373 = vld [vmem:[#allocation22 + $0x150] sm:$0xff]
        %v4374 = vld [vmem:[#allocation22 + $0x158] sm:$0xff]
        %v4375 = vld [vmem:[#allocation22 + $0x160] sm:$0xff]
        %v4376 = vld [vmem:[#allocation22 + $0x168] sm:$0xff]
        %v4377 = vld [vmem:[#allocation22 + $0x170] sm:$0xff]
        %v4378 = vld [vmem:[#allocation22 + $0x178] sm:$0xff]
        %v4379 = vld [vmem:[#allocation22 + $0x180] sm:$0xff]
        %v4380 = vld [vmem:[#allocation22 + $0x188] sm:$0xff]
        %v4381 = vld [vmem:[#allocation22 + $0x190] sm:$0xff]
        %v4382 = vld [vmem:[#allocation22 + $0x198] sm:$0xff]
        %v4383 = vld [vmem:[#allocation22 + $0x1a0] sm:$0xff]
        %v4384 = vld [vmem:[#allocation22 + $0x1a8] sm:$0xff]
        %v4385 = vld [vmem:[#allocation22 + $0x1b0] sm:$0xff]
        %v4386 = vld [vmem:[#allocation22 + $0x1b8] sm:$0xff]
        %v4387 = vld [vmem:[#allocation22 + $0x1c0] sm:$0xff]
        %v4388 = vld [vmem:[#allocation22 + $0x1c8] sm:$0xff]
        %v4389 = vld [vmem:[#allocation22 + $0x1d0] sm:$0xff]
        %v4390 = vld [vmem:[#allocation22 + $0x1d8] sm:$0xff]
        %v4391 = vld [vmem:[#allocation22 + $0x1e0] sm:$0xff]
        %v4392 = vld [vmem:[#allocation22 + $0x1e8] sm:$0xff]
        %v4393 = vld [vmem:[#allocation22 + $0x1f0] sm:$0xff]
        %v4394 = vld [vmem:[#allocation22 + $0x1f8] sm:$0xff]
        %v4395 = vld [vmem:[#allocation22 + $0x200] sm:$0xff]
        %v4396 = vld [vmem:[#allocation22 + $0x208] sm:$0xff]
        %v4397 = vld [vmem:[#allocation22 + $0x210] sm:$0xff]
        %v4398 = vld [vmem:[#allocation22 + $0x218] sm:$0xff]
        %v4399 = vld [vmem:[#allocation22 + $0x220] sm:$0xff]
        %v4400 = vld [vmem:[#allocation22 + $0x228] sm:$0xff]
        %v4401 = vld [vmem:[#allocation22 + $0x230] sm:$0xff]
        %v4402 = vld [vmem:[#allocation22 + $0x238] sm:$0xff]
        %v4403 = vld [vmem:[#allocation22 + $0x240] sm:$0xff]
        %v4404 = vld [vmem:[#allocation22 + $0x248] sm:$0xff]
        %v4405 = vld [vmem:[#allocation22 + $0x250] sm:$0xff]
        %v4406 = vld [vmem:[#allocation22 + $0x258] sm:$0xff]
        %v4407 = vld [vmem:[#allocation22 + $0x260] sm:$0xff]
        %v4408 = vld [vmem:[#allocation22 + $0x268] sm:$0xff]
        %v4409 = vld [vmem:[#allocation22 + $0x270] sm:$0xff]
        %v4410 = vld [vmem:[#allocation22 + $0x278] sm:$0xff]
        %v4411 = vld [vmem:[#allocation22 + $0x280] sm:$0xff]
        %v4412 = vld [vmem:[#allocation22 + $0x288] sm:$0xff]
        %v4413 = vld [vmem:[#allocation22 + $0x290] sm:$0xff]
        %v4414 = vld [vmem:[#allocation22 + $0x298] sm:$0xff]
        %v4415 = vld [vmem:[#allocation22 + $0x2a0] sm:$0xff]
        %v4416 = vld [vmem:[#allocation22 + $0x2a8] sm:$0xff]
        %v4417 = vld [vmem:[#allocation22 + $0x2b0] sm:$0xff]
        %v4418 = vld [vmem:[#allocation22 + $0x2b8] sm:$0xff]
        %v4419 = vld [vmem:[#allocation22 + $0x2c0] sm:$0xff]
        %v4420 = vld [vmem:[#allocation22 + $0x2c8] sm:$0xff]
        %v4421 = vld [vmem:[#allocation22 + $0x2d0] sm:$0xff]
        %v4422 = vld [vmem:[#allocation22 + $0x2d8] sm:$0xff]
        %v4423 = vld [vmem:[#allocation22 + $0x2e0] sm:$0xff]
        %v4424 = vld [vmem:[#allocation22 + $0x2e8] sm:$0xff]
        %v4425 = vld [vmem:[#allocation22 + $0x2f0] sm:$0xff]
        %v4426 = vld [vmem:[#allocation22 + $0x2f8] sm:$0xff]
        %v4427 = vld [vmem:[#allocation22 + $0x300] sm:$0xff]
        %v4428 = vld [vmem:[#allocation22 + $0x308] sm:$0xff]
        %v4429 = vld [vmem:[#allocation22 + $0x310] sm:$0xff]
        %v4430 = vld [vmem:[#allocation22 + $0x318] sm:$0xff]
        %v4431 = vld [vmem:[#allocation22 + $0x320] sm:$0xff]
        %v4432 = vld [vmem:[#allocation22 + $0x328] sm:$0xff]
        %v4433 = vld [vmem:[#allocation22 + $0x330] sm:$0xff]
        %v4434 = vld [vmem:[#allocation22 + $0x338] sm:$0xff]
        %v4435 = vld [vmem:[#allocation22 + $0x340] sm:$0xff]
        %v4436 = vld [vmem:[#allocation22 + $0x348] sm:$0xff]
        %v4437 = vld [vmem:[#allocation22 + $0x350] sm:$0xff]
        %v4438 = vld [vmem:[#allocation22 + $0x358] sm:$0xff]
        %v4439 = vld [vmem:[#allocation22 + $0x360] sm:$0xff]
        %v4440 = vld [vmem:[#allocation22 + $0x368] sm:$0xff]
        %v4441 = vld [vmem:[#allocation22 + $0x370] sm:$0xff]
        %v4442 = vld [vmem:[#allocation22 + $0x378] sm:$0xff]
        %v4443 = vld [vmem:[#allocation22 + $0x380] sm:$0xff]
        %v4444 = vld [vmem:[#allocation22 + $0x388] sm:$0xff]
        %v4445 = vld [vmem:[#allocation22 + $0x390] sm:$0xff]
        %v4446 = vld [vmem:[#allocation22 + $0x398] sm:$0xff]
        %v4447 = vld [vmem:[#allocation22 + $0x3a0] sm:$0xff]
        %v4448 = vld [vmem:[#allocation22 + $0x3a8] sm:$0xff]
        %v4449 = vld [vmem:[#allocation22 + $0x3b0] sm:$0xff]
        %v4450 = vld [vmem:[#allocation22 + $0x3b8] sm:$0xff]
        %v4451 = vld [vmem:[#allocation22 + $0x3c0] sm:$0xff]
        %v4452 = vld [vmem:[#allocation22 + $0x3c8] sm:$0xff]
        %v4453 = vld [vmem:[#allocation22 + $0x3d0] sm:$0xff]
        %v4454 = vld [vmem:[#allocation22 + $0x3d8] sm:$0xff]
        %v4455 = vld [vmem:[#allocation22 + $0x3e0] sm:$0xff]
        %v4456 = vld [vmem:[#allocation22 + $0x3e8] sm:$0xff]
        %v4457 = vld [vmem:[#allocation22 + $0x3f0] sm:$0xff]
        %v4458 = vld [vmem:[#allocation22 + $0x3f8] sm:$0xff]
        %v4459 = vld [vmem:[#allocation24] sm:$0x3]
        %v4461 = vperm.slane %v4459, 0
        %v4462 = vperm.slane %v4459, 1
        %v4593 = vunpack.c.l.b16 %v4331
        %v4594 = vunpack.c.h.b16 %v4331
        %v4595 = vunpack.c.l.b16 %v4332
        %v4596 = vunpack.c.h.b16 %v4332
        %v4597 = vunpack.c.l.b16 %v4333
        %v4598 = vunpack.c.h.b16 %v4333
        %v4599 = vunpack.c.l.b16 %v4334
        %v4600 = vunpack.c.h.b16 %v4334
        %v4601 = vunpack.c.l.b16 %v4335
        %v4602 = vunpack.c.h.b16 %v4335
        %v4603 = vunpack.c.l.b16 %v4336
        %v4604 = vunpack.c.h.b16 %v4336
        %v4605 = vunpack.c.l.b16 %v4337
        %v4606 = vunpack.c.h.b16 %v4337
        %v4607 = vunpack.c.l.b16 %v4338
        %v4608 = vunpack.c.h.b16 %v4338
        %v4609 = vunpack.c.l.b16 %v4339
        %v4610 = vunpack.c.h.b16 %v4339
        %v4611 = vunpack.c.l.b16 %v4340
        %v4612 = vunpack.c.h.b16 %v4340
        %v4613 = vunpack.c.l.b16 %v4341
        %v4614 = vunpack.c.h.b16 %v4341
        %v4615 = vunpack.c.l.b16 %v4342
        %v4616 = vunpack.c.h.b16 %v4342
        %v4617 = vunpack.c.l.b16 %v4343
        %v4618 = vunpack.c.h.b16 %v4343
        %v4619 = vunpack.c.l.b16 %v4344
        %v4620 = vunpack.c.h.b16 %v4344
        %v4621 = vunpack.c.l.b16 %v4345
        %v4622 = vunpack.c.h.b16 %v4345
        %v4623 = vunpack.c.l.b16 %v4346
        %v4624 = vunpack.c.h.b16 %v4346
        %v4625 = vunpack.c.l.b16 %v4347
        %v4626 = vunpack.c.h.b16 %v4347
        %v4627 = vunpack.c.l.b16 %v4348
        %v4628 = vunpack.c.h.b16 %v4348
        %v4629 = vunpack.c.l.b16 %v4349
        %v4630 = vunpack.c.h.b16 %v4349
        %v4631 = vunpack.c.l.b16 %v4350
        %v4632 = vunpack.c.h.b16 %v4350
        %v4633 = vunpack.c.l.b16 %v4351
        %v4634 = vunpack.c.h.b16 %v4351
        %v4635 = vunpack.c.l.b16 %v4352
        %v4636 = vunpack.c.h.b16 %v4352
        %v4637 = vunpack.c.l.b16 %v4353
        %v4638 = vunpack.c.h.b16 %v4353
        %v4639 = vunpack.c.l.b16 %v4354
        %v4640 = vunpack.c.h.b16 %v4354
        %v4641 = vunpack.c.l.b16 %v4355
        %v4642 = vunpack.c.h.b16 %v4355
        %v4643 = vunpack.c.l.b16 %v4356
        %v4644 = vunpack.c.h.b16 %v4356
        %v4645 = vunpack.c.l.b16 %v4357
        %v4646 = vunpack.c.h.b16 %v4357
        %v4647 = vunpack.c.l.b16 %v4358
        %v4648 = vunpack.c.h.b16 %v4358
        %v4649 = vunpack.c.l.b16 %v4359
        %v4650 = vunpack.c.h.b16 %v4359
        %v4651 = vunpack.c.l.b16 %v4360
        %v4652 = vunpack.c.h.b16 %v4360
        %v4653 = vunpack.c.l.b16 %v4361
        %v4654 = vunpack.c.h.b16 %v4361
        %v4655 = vunpack.c.l.b16 %v4362
        %v4656 = vunpack.c.h.b16 %v4362
        %v4657 = vunpack.c.l.b16 %v4363
        %v4658 = vunpack.c.h.b16 %v4363
        %v4659 = vunpack.c.l.b16 %v4364
        %v4660 = vunpack.c.h.b16 %v4364
        %v4661 = vunpack.c.l.b16 %v4365
        %v4662 = vunpack.c.h.b16 %v4365
        %v4663 = vunpack.c.l.b16 %v4366
        %v4664 = vunpack.c.h.b16 %v4366
        %v4665 = vunpack.c.l.b16 %v4367
        %v4666 = vunpack.c.h.b16 %v4367
        %v4667 = vunpack.c.l.b16 %v4368
        %v4668 = vunpack.c.h.b16 %v4368
        %v4669 = vunpack.c.l.b16 %v4369
        %v4670 = vunpack.c.h.b16 %v4369
        %v4671 = vunpack.c.l.b16 %v4370
        %v4672 = vunpack.c.h.b16 %v4370
        %v4673 = vunpack.c.l.b16 %v4371
        %v4674 = vunpack.c.h.b16 %v4371
        %v4675 = vunpack.c.l.b16 %v4372
        %v4676 = vunpack.c.h.b16 %v4372
        %v4677 = vunpack.c.l.b16 %v4373
        %v4678 = vunpack.c.h.b16 %v4373
        %v4679 = vunpack.c.l.b16 %v4374
        %v4680 = vunpack.c.h.b16 %v4374
        %v4681 = vunpack.c.l.b16 %v4375
        %v4682 = vunpack.c.h.b16 %v4375
        %v4683 = vunpack.c.l.b16 %v4376
        %v4684 = vunpack.c.h.b16 %v4376
        %v4685 = vunpack.c.l.b16 %v4377
        %v4686 = vunpack.c.h.b16 %v4377
        %v4687 = vunpack.c.l.b16 %v4378
        %v4688 = vunpack.c.h.b16 %v4378
        %v4689 = vunpack.c.l.b16 %v4379
        %v4690 = vunpack.c.h.b16 %v4379
        %v4691 = vunpack.c.l.b16 %v4380
        %v4692 = vunpack.c.h.b16 %v4380
        %v4693 = vunpack.c.l.b16 %v4381
        %v4694 = vunpack.c.h.b16 %v4381
        %v4695 = vunpack.c.l.b16 %v4382
        %v4696 = vunpack.c.h.b16 %v4382
        %v4697 = vunpack.c.l.b16 %v4383
        %v4698 = vunpack.c.h.b16 %v4383
        %v4699 = vunpack.c.l.b16 %v4384
        %v4700 = vunpack.c.h.b16 %v4384
        %v4701 = vunpack.c.l.b16 %v4385
        %v4702 = vunpack.c.h.b16 %v4385
        %v4703 = vunpack.c.l.b16 %v4386
        %v4704 = vunpack.c.h.b16 %v4386
        %v4705 = vunpack.c.l.b16 %v4387
        %v4706 = vunpack.c.h.b16 %v4387
        %v4707 = vunpack.c.l.b16 %v4388
        %v4708 = vunpack.c.h.b16 %v4388
        %v4709 = vunpack.c.l.b16 %v4389
        %v4710 = vunpack.c.h.b16 %v4389
        %v4711 = vunpack.c.l.b16 %v4390
        %v4712 = vunpack.c.h.b16 %v4390
        %v4713 = vunpack.c.l.b16 %v4391
        %v4714 = vunpack.c.h.b16 %v4391
        %v4715 = vunpack.c.l.b16 %v4392
        %v4716 = vunpack.c.h.b16 %v4392
        %v4717 = vunpack.c.l.b16 %v4393
        %v4718 = vunpack.c.h.b16 %v4393
        %v4719 = vunpack.c.l.b16 %v4394
        %v4720 = vunpack.c.h.b16 %v4394
        %v4721 = vunpack.c.l.b16 %v4395
        %v4722 = vunpack.c.h.b16 %v4395
        %v4723 = vunpack.c.l.b16 %v4396
        %v4724 = vunpack.c.h.b16 %v4396
        %v4725 = vunpack.c.l.b16 %v4397
        %v4726 = vunpack.c.h.b16 %v4397
        %v4727 = vunpack.c.l.b16 %v4398
        %v4728 = vunpack.c.h.b16 %v4398
        %v4729 = vunpack.c.l.b16 %v4399
        %v4730 = vunpack.c.h.b16 %v4399
        %v4731 = vunpack.c.l.b16 %v4400
        %v4732 = vunpack.c.h.b16 %v4400
        %v4733 = vunpack.c.l.b16 %v4401
        %v4734 = vunpack.c.h.b16 %v4401
        %v4735 = vunpack.c.l.b16 %v4402
        %v4736 = vunpack.c.h.b16 %v4402
        %v4737 = vunpack.c.l.b16 %v4403
        %v4738 = vunpack.c.h.b16 %v4403
        %v4739 = vunpack.c.l.b16 %v4404
        %v4740 = vunpack.c.h.b16 %v4404
        %v4741 = vunpack.c.l.b16 %v4405
        %v4742 = vunpack.c.h.b16 %v4405
        %v4743 = vunpack.c.l.b16 %v4406
        %v4744 = vunpack.c.h.b16 %v4406
        %v4745 = vunpack.c.l.b16 %v4407
        %v4746 = vunpack.c.h.b16 %v4407
        %v4747 = vunpack.c.l.b16 %v4408
        %v4748 = vunpack.c.h.b16 %v4408
        %v4749 = vunpack.c.l.b16 %v4409
        %v4750 = vunpack.c.h.b16 %v4409
        %v4751 = vunpack.c.l.b16 %v4410
        %v4752 = vunpack.c.h.b16 %v4410
        %v4753 = vunpack.c.l.b16 %v4411
        %v4754 = vunpack.c.h.b16 %v4411
        %v4755 = vunpack.c.l.b16 %v4412
        %v4756 = vunpack.c.h.b16 %v4412
        %v4757 = vunpack.c.l.b16 %v4413
        %v4758 = vunpack.c.h.b16 %v4413
        %v4759 = vunpack.c.l.b16 %v4414
        %v4760 = vunpack.c.h.b16 %v4414
        %v4761 = vunpack.c.l.b16 %v4415
        %v4762 = vunpack.c.h.b16 %v4415
        %v4763 = vunpack.c.l.b16 %v4416
        %v4764 = vunpack.c.h.b16 %v4416
        %v4765 = vunpack.c.l.b16 %v4417
        %v4766 = vunpack.c.h.b16 %v4417
        %v4767 = vunpack.c.l.b16 %v4418
        %v4768 = vunpack.c.h.b16 %v4418
        %v4769 = vunpack.c.l.b16 %v4419
        %v4770 = vunpack.c.h.b16 %v4419
        %v4771 = vunpack.c.l.b16 %v4420
        %v4772 = vunpack.c.h.b16 %v4420
        %v4773 = vunpack.c.l.b16 %v4421
        %v4774 = vunpack.c.h.b16 %v4421
        %v4775 = vunpack.c.l.b16 %v4422
        %v4776 = vunpack.c.h.b16 %v4422
        %v4777 = vunpack.c.l.b16 %v4423
        %v4778 = vunpack.c.h.b16 %v4423
        %v4779 = vunpack.c.l.b16 %v4424
        %v4780 = vunpack.c.h.b16 %v4424
        %v4781 = vunpack.c.l.b16 %v4425
        %v4782 = vunpack.c.h.b16 %v4425
        %v4783 = vunpack.c.l.b16 %v4426
        %v4784 = vunpack.c.h.b16 %v4426
        %v4785 = vunpack.c.l.b16 %v4427
        %v4786 = vunpack.c.h.b16 %v4427
        %v4787 = vunpack.c.l.b16 %v4428
        %v4788 = vunpack.c.h.b16 %v4428
        %v4789 = vunpack.c.l.b16 %v4429
        %v4790 = vunpack.c.h.b16 %v4429
        %v4791 = vunpack.c.l.b16 %v4430
        %v4792 = vunpack.c.h.b16 %v4430
        %v4793 = vunpack.c.l.b16 %v4431
        %v4794 = vunpack.c.h.b16 %v4431
        %v4795 = vunpack.c.l.b16 %v4432
        %v4796 = vunpack.c.h.b16 %v4432
        %v4797 = vunpack.c.l.b16 %v4433
        %v4798 = vunpack.c.h.b16 %v4433
        %v4799 = vunpack.c.l.b16 %v4434
        %v4800 = vunpack.c.h.b16 %v4434
        %v4801 = vunpack.c.l.b16 %v4435
        %v4802 = vunpack.c.h.b16 %v4435
        %v4803 = vunpack.c.l.b16 %v4436
        %v4804 = vunpack.c.h.b16 %v4436
        %v4805 = vunpack.c.l.b16 %v4437
        %v4806 = vunpack.c.h.b16 %v4437
        %v4807 = vunpack.c.l.b16 %v4438
        %v4808 = vunpack.c.h.b16 %v4438
        %v4809 = vunpack.c.l.b16 %v4439
        %v4810 = vunpack.c.h.b16 %v4439
        %v4811 = vunpack.c.l.b16 %v4440
        %v4812 = vunpack.c.h.b16 %v4440
        %v4813 = vunpack.c.l.b16 %v4441
        %v4814 = vunpack.c.h.b16 %v4441
        %v4815 = vunpack.c.l.b16 %v4442
        %v4816 = vunpack.c.h.b16 %v4442
        %v4817 = vunpack.c.l.b16 %v4443
        %v4818 = vunpack.c.h.b16 %v4443
        %v4819 = vunpack.c.l.b16 %v4444
        %v4820 = vunpack.c.h.b16 %v4444
        %v4821 = vunpack.c.l.b16 %v4445
        %v4822 = vunpack.c.h.b16 %v4445
        %v4823 = vunpack.c.l.b16 %v4446
        %v4824 = vunpack.c.h.b16 %v4446
        %v4825 = vunpack.c.l.b16 %v4447
        %v4826 = vunpack.c.h.b16 %v4447
        %v4827 = vunpack.c.l.b16 %v4448
        %v4828 = vunpack.c.h.b16 %v4448
        %v4829 = vunpack.c.l.b16 %v4449
        %v4830 = vunpack.c.h.b16 %v4449
        %v4831 = vunpack.c.l.b16 %v4450
        %v4832 = vunpack.c.h.b16 %v4450
        %v4833 = vunpack.c.l.b16 %v4451
        %v4834 = vunpack.c.h.b16 %v4451
        %v4835 = vunpack.c.l.b16 %v4452
        %v4836 = vunpack.c.h.b16 %v4452
        %v4837 = vunpack.c.l.b16 %v4453
        %v4838 = vunpack.c.h.b16 %v4453
        %v4839 = vunpack.c.l.b16 %v4454
        %v4840 = vunpack.c.h.b16 %v4454
        %v4841 = vunpack.c.l.b16 %v4455
        %v4842 = vunpack.c.h.b16 %v4455
        %v4843 = vunpack.c.l.b16 %v4456
        %v4844 = vunpack.c.h.b16 %v4456
        %v4845 = vunpack.c.l.b16 %v4457
        %v4846 = vunpack.c.h.b16 %v4457
        %v4847 = vunpack.c.l.b16 %v4458
        %v4848 = vunpack.c.h.b16 %v4458
        %v4849 = vpack.c.b16 %v4595, %v4593
        %v4850 = vpack.c.b16 %v4596, %v4594
        %v4851 = vpack.c.b16 %v4599, %v4597
        %v4852 = vpack.c.b16 %v4600, %v4598
        %v4853 = vpack.c.b16 %v4603, %v4601
        %v4854 = vpack.c.b16 %v4604, %v4602
        %v4855 = vpack.c.b16 %v4607, %v4605
        %v4856 = vpack.c.b16 %v4608, %v4606
        %v4857 = vpack.c.b16 %v4611, %v4609
        %v4858 = vpack.c.b16 %v4612, %v4610
        %v4859 = vpack.c.b16 %v4615, %v4613
        %v4860 = vpack.c.b16 %v4616, %v4614
        %v4861 = vpack.c.b16 %v4619, %v4617
        %v4862 = vpack.c.b16 %v4620, %v4618
        %v4863 = vpack.c.b16 %v4623, %v4621
        %v4864 = vpack.c.b16 %v4624, %v4622
        %v4865 = vpack.c.b16 %v4627, %v4625
        %v4866 = vpack.c.b16 %v4628, %v4626
        %v4867 = vpack.c.b16 %v4631, %v4629
        %v4868 = vpack.c.b16 %v4632, %v4630
        %v4869 = vpack.c.b16 %v4635, %v4633
        %v4870 = vpack.c.b16 %v4636, %v4634
        %v4871 = vpack.c.b16 %v4639, %v4637
        %v4872 = vpack.c.b16 %v4640, %v4638
        %v4873 = vpack.c.b16 %v4643, %v4641
        %v4874 = vpack.c.b16 %v4644, %v4642
        %v4875 = vpack.c.b16 %v4647, %v4645
        %v4876 = vpack.c.b16 %v4648, %v4646
        %v4877 = vpack.c.b16 %v4651, %v4649
        %v4878 = vpack.c.b16 %v4652, %v4650
        %v4879 = vpack.c.b16 %v4655, %v4653
        %v4880 = vpack.c.b16 %v4656, %v4654
        %v4881 = vpack.c.b16 %v4659, %v4657
        %v4882 = vpack.c.b16 %v4660, %v4658
        %v4883 = vpack.c.b16 %v4663, %v4661
        %v4884 = vpack.c.b16 %v4664, %v4662
        %v4885 = vpack.c.b16 %v4667, %v4665
        %v4886 = vpack.c.b16 %v4668, %v4666
        %v4887 = vpack.c.b16 %v4671, %v4669
        %v4888 = vpack.c.b16 %v4672, %v4670
        %v4889 = vpack.c.b16 %v4675, %v4673
        %v4890 = vpack.c.b16 %v4676, %v4674
        %v4891 = vpack.c.b16 %v4679, %v4677
        %v4892 = vpack.c.b16 %v4680, %v4678
        %v4893 = vpack.c.b16 %v4683, %v4681
        %v4894 = vpack.c.b16 %v4684, %v4682
        %v4895 = vpack.c.b16 %v4687, %v4685
        %v4896 = vpack.c.b16 %v4688, %v4686
        %v4897 = vpack.c.b16 %v4691, %v4689
        %v4898 = vpack.c.b16 %v4692, %v4690
        %v4899 = vpack.c.b16 %v4695, %v4693
        %v4900 = vpack.c.b16 %v4696, %v4694
        %v4901 = vpack.c.b16 %v4699, %v4697
        %v4902 = vpack.c.b16 %v4700, %v4698
        %v4903 = vpack.c.b16 %v4703, %v4701
        %v4904 = vpack.c.b16 %v4704, %v4702
        %v4905 = vpack.c.b16 %v4707, %v4705
        %v4906 = vpack.c.b16 %v4708, %v4706
        %v4907 = vpack.c.b16 %v4711, %v4709
        %v4908 = vpack.c.b16 %v4712, %v4710
        %v4909 = vpack.c.b16 %v4715, %v4713
        %v4910 = vpack.c.b16 %v4716, %v4714
        %v4911 = vpack.c.b16 %v4719, %v4717
        %v4912 = vpack.c.b16 %v4720, %v4718
        %v4913 = vpack.c.b16 %v4723, %v4721
        %v4914 = vpack.c.b16 %v4724, %v4722
        %v4915 = vpack.c.b16 %v4727, %v4725
        %v4916 = vpack.c.b16 %v4728, %v4726
        %v4917 = vpack.c.b16 %v4731, %v4729
        %v4918 = vpack.c.b16 %v4732, %v4730
        %v4919 = vpack.c.b16 %v4735, %v4733
        %v4920 = vpack.c.b16 %v4736, %v4734
        %v4921 = vpack.c.b16 %v4739, %v4737
        %v4922 = vpack.c.b16 %v4740, %v4738
        %v4923 = vpack.c.b16 %v4743, %v4741
        %v4924 = vpack.c.b16 %v4744, %v4742
        %v4925 = vpack.c.b16 %v4747, %v4745
        %v4926 = vpack.c.b16 %v4748, %v4746
        %v4927 = vpack.c.b16 %v4751, %v4749
        %v4928 = vpack.c.b16 %v4752, %v4750
        %v4929 = vpack.c.b16 %v4755, %v4753
        %v4930 = vpack.c.b16 %v4756, %v4754
        %v4931 = vpack.c.b16 %v4759, %v4757
        %v4932 = vpack.c.b16 %v4760, %v4758
        %v4933 = vpack.c.b16 %v4763, %v4761
        %v4934 = vpack.c.b16 %v4764, %v4762
        %v4935 = vpack.c.b16 %v4767, %v4765
        %v4936 = vpack.c.b16 %v4768, %v4766
        %v4937 = vpack.c.b16 %v4771, %v4769
        %v4938 = vpack.c.b16 %v4772, %v4770
        %v4939 = vpack.c.b16 %v4775, %v4773
        %v4940 = vpack.c.b16 %v4776, %v4774
        %v4941 = vpack.c.b16 %v4779, %v4777
        %v4942 = vpack.c.b16 %v4780, %v4778
        %v4943 = vpack.c.b16 %v4783, %v4781
        %v4944 = vpack.c.b16 %v4784, %v4782
        %v4945 = vpack.c.b16 %v4787, %v4785
        %v4946 = vpack.c.b16 %v4788, %v4786
        %v4947 = vpack.c.b16 %v4791, %v4789
        %v4948 = vpack.c.b16 %v4792, %v4790
        %v4949 = vpack.c.b16 %v4795, %v4793
        %v4950 = vpack.c.b16 %v4796, %v4794
        %v4951 = vpack.c.b16 %v4799, %v4797
        %v4952 = vpack.c.b16 %v4800, %v4798
        %v4953 = vpack.c.b16 %v4803, %v4801
        %v4954 = vpack.c.b16 %v4804, %v4802
        %v4955 = vpack.c.b16 %v4807, %v4805
        %v4956 = vpack.c.b16 %v4808, %v4806
        %v4957 = vpack.c.b16 %v4811, %v4809
        %v4958 = vpack.c.b16 %v4812, %v4810
        %v4959 = vpack.c.b16 %v4815, %v4813
        %v4960 = vpack.c.b16 %v4816, %v4814
        %v4961 = vpack.c.b16 %v4819, %v4817
        %v4962 = vpack.c.b16 %v4820, %v4818
        %v4963 = vpack.c.b16 %v4823, %v4821
        %v4964 = vpack.c.b16 %v4824, %v4822
        %v4965 = vpack.c.b16 %v4827, %v4825
        %v4966 = vpack.c.b16 %v4828, %v4826
        %v4967 = vpack.c.b16 %v4831, %v4829
        %v4968 = vpack.c.b16 %v4832, %v4830
        %v4969 = vpack.c.b16 %v4835, %v4833
        %v4970 = vpack.c.b16 %v4836, %v4834
        %v4971 = vpack.c.b16 %v4839, %v4837
        %v4972 = vpack.c.b16 %v4840, %v4838
        %v4973 = vpack.c.b16 %v4843, %v4841
        %v4974 = vpack.c.b16 %v4844, %v4842
        %v4975 = vpack.c.b16 %v4847, %v4845
        %v4976 = vpack.c.b16 %v4848, %v4846
        %5105 = vmatpush.bf16.msra.mxu0 %v4863
        %5106 = vmatpush.bf16.msra.mxu0 %v4861
        %5107 = vmatpush.bf16.msra.mxu0 %v4859
        %5108 = vmatpush.bf16.msra.mxu0 %v4857
        %5109 = vmatpush.bf16.msra.mxu0 %v4855
        %5110 = vmatpush.bf16.msra.mxu0 %v4853
        %5111 = vmatpush.bf16.msra.mxu0 %v4851
        %5112 = vmatpush.bf16.msra.mxu0 %v4849
        %5113 = vmatmul.bf16.gmra.mxu0 %v4323
        %v5114 = vpop.f32.mrf.mxu0
        %v5115 = vadd.f32 %v4461, %v5114
        %v5116 = vpop.f32.mrf.mxu0
        %v5117 = vadd.f32 %v4461, %v5116
        %5118 = vdwg.mxu0
        %5119 = vmatpush.bf16.msra.mxu0 %v4879
        %5120 = vmatpush.bf16.msra.mxu0 %v4877
        %5121 = vmatpush.bf16.msra.mxu0 %v4875
        %5122 = vmatpush.bf16.msra.mxu0 %v4873
        %5123 = vmatpush.bf16.msra.mxu0 %v4871
        %5124 = vmatpush.bf16.msra.mxu0 %v4869
        %5125 = vmatpush.bf16.msra.mxu0 %v4867
        %5126 = vmatpush.bf16.msra.mxu0 %v4865
        %5127 = vmatmul.bf16.gmra.mxu0 %v4324
        %v5128 = vpop.f32.mrf.mxu0
        %v5129 = vadd.f32 %v5115, %v5128
        %v5130 = vpop.f32.mrf.mxu0
        %v5131 = vadd.f32 %v5117, %v5130
        %5132 = vdwg.mxu0
        %5133 = vmatpush.bf16.msra.mxu0 %v4895
        %5134 = vmatpush.bf16.msra.mxu0 %v4893
        %5135 = vmatpush.bf16.msra.mxu0 %v4891
        %5136 = vmatpush.bf16.msra.mxu0 %v4889
        %5137 = vmatpush.bf16.msra.mxu0 %v4887
        %5138 = vmatpush.bf16.msra.mxu0 %v4885
        %5139 = vmatpush.bf16.msra.mxu0 %v4883
        %5140 = vmatpush.bf16.msra.mxu0 %v4881
        %5141 = vmatmul.bf16.gmra.mxu0 %v4325
        %v5142 = vpop.f32.mrf.mxu0
        %v5143 = vadd.f32 %v5129, %v5142
        %v5144 = vpop.f32.mrf.mxu0
        %v5145 = vadd.f32 %v5131, %v5144
        %5146 = vdwg.mxu0
        %5147 = vmatpush.bf16.msra.mxu0 %v4911
        %5148 = vmatpush.bf16.msra.mxu0 %v4909
        %5149 = vmatpush.bf16.msra.mxu0 %v4907
        %5150 = vmatpush.bf16.msra.mxu0 %v4905
        %5151 = vmatpush.bf16.msra.mxu0 %v4903
        %5152 = vmatpush.bf16.msra.mxu0 %v4901
        %5153 = vmatpush.bf16.msra.mxu0 %v4899
        %5154 = vmatpush.bf16.msra.mxu0 %v4897
        %5155 = vmatmul.bf16.gmra.mxu0 %v4326
        %v5156 = vpop.f32.mrf.mxu0
        %v5157 = vadd.f32 %v5143, %v5156
        %v5158 = vpop.f32.mrf.mxu0
        %v5159 = vadd.f32 %v5145, %v5158
        %5160 = vdwg.mxu0
        %5161 = vmatpush.bf16.msra.mxu0 %v4927
        %5162 = vmatpush.bf16.msra.mxu0 %v4925
        %5163 = vmatpush.bf16.msra.mxu0 %v4923
        %5164 = vmatpush.bf16.msra.mxu0 %v4921
        %5165 = vmatpush.bf16.msra.mxu0 %v4919
        %5166 = vmatpush.bf16.msra.mxu0 %v4917
        %5167 = vmatpush.bf16.msra.mxu0 %v4915
        %5168 = vmatpush.bf16.msra.mxu0 %v4913
        %5169 = vmatmul.bf16.gmra.mxu0 %v4327
        %v5170 = vpop.f32.mrf.mxu0
        %v5171 = vadd.f32 %v5157, %v5170
        %v5172 = vpop.f32.mrf.mxu0
        %v5173 = vadd.f32 %v5159, %v5172
        %5174 = vdwg.mxu0
        %5175 = vmatpush.bf16.msra.mxu0 %v4943
        %5176 = vmatpush.bf16.msra.mxu0 %v4941
        %5177 = vmatpush.bf16.msra.mxu0 %v4939
        %5178 = vmatpush.bf16.msra.mxu0 %v4937
        %5179 = vmatpush.bf16.msra.mxu0 %v4935
        %5180 = vmatpush.bf16.msra.mxu0 %v4933
        %5181 = vmatpush.bf16.msra.mxu0 %v4931
        %5182 = vmatpush.bf16.msra.mxu0 %v4929
        %5183 = vmatmul.bf16.gmra.mxu0 %v4328
        %v5184 = vpop.f32.mrf.mxu0
        %v5185 = vadd.f32 %v5171, %v5184
        %v5186 = vpop.f32.mrf.mxu0
        %v5187 = vadd.f32 %v5173, %v5186
        %5188 = vdwg.mxu0
        %5189 = vmatpush.bf16.msra.mxu0 %v4959
        %5190 = vmatpush.bf16.msra.mxu0 %v4957
        %5191 = vmatpush.bf16.msra.mxu0 %v4955
        %5192 = vmatpush.bf16.msra.mxu0 %v4953
        %5193 = vmatpush.bf16.msra.mxu0 %v4951
        %5194 = vmatpush.bf16.msra.mxu0 %v4949
        %5195 = vmatpush.bf16.msra.mxu0 %v4947
        %5196 = vmatpush.bf16.msra.mxu0 %v4945
        %5197 = vmatmul.bf16.gmra.mxu0 %v4329
        %v5198 = vpop.f32.mrf.mxu0
        %v5199 = vadd.f32 %v5185, %v5198
        %v5200 = vpop.f32.mrf.mxu0
        %v5201 = vadd.f32 %v5187, %v5200
        %5202 = vdwg.mxu0
        %5203 = vmatpush.bf16.msra.mxu0 %v4975
        %5204 = vmatpush.bf16.msra.mxu0 %v4973
        %5205 = vmatpush.bf16.msra.mxu0 %v4971
        %5206 = vmatpush.bf16.msra.mxu0 %v4969
        %5207 = vmatpush.bf16.msra.mxu0 %v4967
        %5208 = vmatpush.bf16.msra.mxu0 %v4965
        %5209 = vmatpush.bf16.msra.mxu0 %v4963
        %5210 = vmatpush.bf16.msra.mxu0 %v4961
        %5211 = vmatmul.bf16.gmra.mxu0 %v4330
        %v5212 = vpop.f32.mrf.mxu0
        %v5213 = vadd.f32 %v5199, %v5212
        %v5214 = vpop.f32.mrf.mxu0
        %v5215 = vadd.f32 %v5201, %v5214
        %5216 = vdwg.mxu0
        %5217 = vmatpush.bf16.msra.mxu0 %v4864
        %5218 = vmatpush.bf16.msra.mxu0 %v4862
        %5219 = vmatpush.bf16.msra.mxu0 %v4860
        %5220 = vmatpush.bf16.msra.mxu0 %v4858
        %5221 = vmatpush.bf16.msra.mxu0 %v4856
        %5222 = vmatpush.bf16.msra.mxu0 %v4854
        %5223 = vmatpush.bf16.msra.mxu0 %v4852
        %5224 = vmatpush.bf16.msra.mxu0 %v4850
        %5225 = vmatmul.bf16.gmra.mxu0 %v4323
        %v5226 = vpop.f32.mrf.mxu0
        %v5227 = vadd.f32 %v4462, %v5226
        %v5228 = vpop.f32.mrf.mxu0
        %v5229 = vadd.f32 %v4462, %v5228
        %5230 = vdwg.mxu0
        %5231 = vmatpush.bf16.msra.mxu0 %v4880
        %5232 = vmatpush.bf16.msra.mxu0 %v4878
        %5233 = vmatpush.bf16.msra.mxu0 %v4876
        %5234 = vmatpush.bf16.msra.mxu0 %v4874
        %5235 = vmatpush.bf16.msra.mxu0 %v4872
        %5236 = vmatpush.bf16.msra.mxu0 %v4870
        %5237 = vmatpush.bf16.msra.mxu0 %v4868
        %5238 = vmatpush.bf16.msra.mxu0 %v4866
        %5239 = vmatmul.bf16.gmra.mxu0 %v4324
        %v5240 = vpop.f32.mrf.mxu0
        %v5241 = vadd.f32 %v5227, %v5240
        %v5242 = vpop.f32.mrf.mxu0
        %v5243 = vadd.f32 %v5229, %v5242
        %5244 = vdwg.mxu0
        %5245 = vmatpush.bf16.msra.mxu0 %v4896
        %5246 = vmatpush.bf16.msra.mxu0 %v4894
        %5247 = vmatpush.bf16.msra.mxu0 %v4892
        %5248 = vmatpush.bf16.msra.mxu0 %v4890
        %5249 = vmatpush.bf16.msra.mxu0 %v4888
        %5250 = vmatpush.bf16.msra.mxu0 %v4886
        %5251 = vmatpush.bf16.msra.mxu0 %v4884
        %5252 = vmatpush.bf16.msra.mxu0 %v4882
        %5253 = vmatmul.bf16.gmra.mxu0 %v4325
        %v5254 = vpop.f32.mrf.mxu0
        %v5255 = vadd.f32 %v5241, %v5254
        %v5256 = vpop.f32.mrf.mxu0
        %v5257 = vadd.f32 %v5243, %v5256
        %5258 = vdwg.mxu0
        %5259 = vmatpush.bf16.msra.mxu0 %v4912
        %5260 = vmatpush.bf16.msra.mxu0 %v4910
        %5261 = vmatpush.bf16.msra.mxu0 %v4908
        %5262 = vmatpush.bf16.msra.mxu0 %v4906
        %5263 = vmatpush.bf16.msra.mxu0 %v4904
        %5264 = vmatpush.bf16.msra.mxu0 %v4902
        %5265 = vmatpush.bf16.msra.mxu0 %v4900
        %5266 = vmatpush.bf16.msra.mxu0 %v4898
        %5267 = vmatmul.bf16.gmra.mxu0 %v4326
        %v5268 = vpop.f32.mrf.mxu0
        %v5269 = vadd.f32 %v5255, %v5268
        %v5270 = vpop.f32.mrf.mxu0
        %v5271 = vadd.f32 %v5257, %v5270
        %5272 = vdwg.mxu0
        %5273 = vmatpush.bf16.msra.mxu0 %v4928
        %5274 = vmatpush.bf16.msra.mxu0 %v4926
        %5275 = vmatpush.bf16.msra.mxu0 %v4924
        %5276 = vmatpush.bf16.msra.mxu0 %v4922
        %5277 = vmatpush.bf16.msra.mxu0 %v4920
        %5278 = vmatpush.bf16.msra.mxu0 %v4918
        %5279 = vmatpush.bf16.msra.mxu0 %v4916
        %5280 = vmatpush.bf16.msra.mxu0 %v4914
        %5281 = vmatmul.bf16.gmra.mxu0 %v4327
        %v5282 = vpop.f32.mrf.mxu0
        %v5283 = vadd.f32 %v5269, %v5282
        %v5284 = vpop.f32.mrf.mxu0
        %v5285 = vadd.f32 %v5271, %v5284
        %5286 = vdwg.mxu0
        %5287 = vmatpush.bf16.msra.mxu0 %v4944
        %5288 = vmatpush.bf16.msra.mxu0 %v4942
        %5289 = vmatpush.bf16.msra.mxu0 %v4940
        %5290 = vmatpush.bf16.msra.mxu0 %v4938
        %5291 = vmatpush.bf16.msra.mxu0 %v4936
        %5292 = vmatpush.bf16.msra.mxu0 %v4934
        %5293 = vmatpush.bf16.msra.mxu0 %v4932
        %5294 = vmatpush.bf16.msra.mxu0 %v4930
        %5295 = vmatmul.bf16.gmra.mxu0 %v4328
        %v5296 = vpop.f32.mrf.mxu0
        %v5297 = vadd.f32 %v5283, %v5296
        %v5298 = vpop.f32.mrf.mxu0
        %v5299 = vadd.f32 %v5285, %v5298
        %5300 = vdwg.mxu0
        %5301 = vmatpush.bf16.msra.mxu0 %v4960
        %5302 = vmatpush.bf16.msra.mxu0 %v4958
        %5303 = vmatpush.bf16.msra.mxu0 %v4956
        %5304 = vmatpush.bf16.msra.mxu0 %v4954
        %5305 = vmatpush.bf16.msra.mxu0 %v4952
        %5306 = vmatpush.bf16.msra.mxu0 %v4950
        %5307 = vmatpush.bf16.msra.mxu0 %v4948
        %5308 = vmatpush.bf16.msra.mxu0 %v4946
        %5309 = vmatmul.bf16.gmra.mxu0 %v4329
        %v5310 = vpop.f32.mrf.mxu0
        %v5311 = vadd.f32 %v5297, %v5310
        %v5312 = vpop.f32.mrf.mxu0
        %v5313 = vadd.f32 %v5299, %v5312
        %5314 = vdwg.mxu0
        %5315 = vmatpush.bf16.msra.mxu0 %v4976
        %5316 = vmatpush.bf16.msra.mxu0 %v4974
        %5317 = vmatpush.bf16.msra.mxu0 %v4972
        %5318 = vmatpush.bf16.msra.mxu0 %v4970
        %5319 = vmatpush.bf16.msra.mxu0 %v4968
        %5320 = vmatpush.bf16.msra.mxu0 %v4966
        %5321 = vmatpush.bf16.msra.mxu0 %v4964
        %5322 = vmatpush.bf16.msra.mxu0 %v4962
        %5323 = vmatmul.bf16.gmra.mxu0 %v4330
        %v5324 = vpop.f32.mrf.mxu0
        %v5325 = vadd.f32 %v5311, %v5324
        %v5326 = vpop.f32.mrf.mxu0
        %v5327 = vadd.f32 %v5313, %v5326
        %5328 = vdwg.mxu0
        %v5329 = vtanh.pop %v5213
        %v5330 = vtanh.pop %v5325
        %v5331 = vtanh.pop %v5215
        %v5332 = vtanh.pop %v5327
        %5333 = vst [vmem:[%s848] sm:$0xff] %v5329
        %5334 = vst [vmem:[%s848 + $0x8] sm:$0xff] %v5330
        %5335 = vst [vmem:[%s848 + $0x10] sm:$0xff] %v5331
        %5336 = vst [vmem:[%s848 + $0x18] sm:$0xff] %v5332
        %p5337 = scmp.lt.s32.totalorder %s38, 3
        %s5338 = scalar_select %p5337, %s38, 3
        %s5339 = smul.addr %s5338, 4
        %s5340 = smul.addr %s5339, 8
        %s5341 = scalar_lea.vmem %s19, %s5340
        // Predicated region
        $region157: #{generator_forward.1} parent=95 // pred_check
          %p5342 = pneg %p465
        $region158: #{generator_forward.1} parent=95 // pred_check_branch
          %5344 = sbr.rel (%p5342) target = $region160
        $region159: #{generator_forward.1} parent=95 // pred_region
          _
        $region160: #{generator_forward.1} parent=95 // pred_fallthru
          _
      $region96: #{generator_forward.1} parent=5 // pred_fallthru
        _
      %p5345 = scmp.le.s32.totalorder 2, %s33
      // Predicated region
      $region161: #{generator_forward.1} parent=5 // pred_check
        %p5346 = pneg %p5345
      $region162: #{generator_forward.1} parent=5 // pred_check_branch
        %5348 = sbr.rel (%p5346) target = $region164
      $region163: #{generator_forward.1} parent=5 // pred_region
        %s5349 = ssub.s32 %s33, 2
        // Predicated region
        $region165: #{generator_forward.1} parent=163 // pred_check
          %p5350 = pneg %p471
        $region166: #{generator_forward.1} parent=163 // pred_check_branch
          %5352 = sbr.rel (%p5350) target = $region168
        $region167: #{generator_forward.1} parent=163 // pred_region
          %p5353 = scmp.lt.s32.totalorder %s39, 3
          %s5354 = scalar_select %p5353, %s39, 3
          %s5355 = smul.addr %s5354, 4
          %s5356 = smul.addr %s5355, 8
          %s5357 = scalar_lea.vmem %s19, %s5356
        $region168: #{generator_forward.1} parent=163 // pred_fallthru
          _
      $region164: #{generator_forward.1} parent=5 // pred_fallthru
        _
    $region6: #{generator_forward.1} parent=1 // loop_footer
      %s37 = sadd.s32 1, %s33
    $region7: #{generator_forward.1} parent=1 // loop_footer_branch
      %32 = sbr.rel target = $region3
    $region8: #{generator_forward.1} parent=1 // loop_exit
      _
    %5358 = vsyncpa [#allocation3], 1
    %s5359 = scalar_lea.sflag [#allocation3], 1
    %5360 = vsyncpa %s5359, 1
    %5361 = vsyncpa [#allocation5], 1
    %5362 = vsyncpa [#allocation8], 1
    %5363 = vsyncpa [#allocation11], 1
    %5364 = vsyncpa [#allocation14], 1
    %5365 = vsyncpa [#allocation17], 1
    %5366 = vsyncpa [#allocation20], 1
    %5367 = vsyncpa [#allocation23], 1

</llo_original>
